<compile_context>
chip_gen: v7x
topology: tpu7x:2x2x1
jax: 0.10.0
libtpu: 0.0.40
codegen_flags: <defaults>
</compile_context>

<pallas_src>
import numpy as np

import jax
import jax.numpy as jnp
from jax import lax
from jax.experimental import pallas as pl
from jax.experimental.pallas import tpu as pltpu

MULTI = 8


# ----------------------------------------------------------------------------
# Static geometry of the net_mode=2 conv stack (conv->ReLU only, no BN / pool).
# ----------------------------------------------------------------------------
def build_plan(input_channel, input_size, repeat=1, multi=MULTI):
    specs = [(input_channel, multi, 7, 2, 1)]
    for i in range(repeat):
        specs.append((multi * 2 ** i, multi * 2 ** (i + 1), 5, 2, 1))
    specs.append((multi * 2 ** repeat, multi * 2 ** (repeat + 1), 3, 2, 1))

    layers = []
    size = input_size
    for idx, (ci, co, k, s, p) in enumerate(specs):
        size_pad = size + 2 * p
        size_out = (size_pad - k) // s + 1
        p_next = specs[idx + 1][4] if idx + 1 < len(specs) else 0
        layers.append(dict(
            ci=ci, co=co, k=k, s=s, p=p,
            hin_pad=size_pad,                       # padded input height (==width)
            hout=size_out,                          # output height (==width)
            p_next=p_next,                          # zero-padding of the next layer
            row_in=size_pad * ci,                   # flat padded input row length
            row_out=(size_out + 2 * p_next) * co,   # flat padded output row length
        ))
        size = size_out
    fc_size = size * size * specs[-1][1]
    return layers, fc_size


# ----------------------------------------------------------------------------
# Init-time weight pre-layout.
# ----------------------------------------------------------------------------
def _expand_conv_layer(w, b, meta):
    """Expand a PyTorch Conv2d weight (Co,Ci,kh,kw) into per-kernel-row Toeplitz
    matrices acting on flattened padded image rows (lane layout = (w, c)):

      M[i] : (W_in_pad*Ci, (W_out+2*p_next)*Co)   (zero columns at the borders)
      b_t  : (1, (W_out+2*p_next)*Co)             (zero at the borders)

    so that  relu(b_t + sum_i in_padded_row(s*oh + i) @ M[i])  is exactly the
    PyTorch conv+bias+ReLU output row, already embedded in the next layer's
    zero-padded frame.
    """
    w = np.asarray(w, np.float32)
    b = np.asarray(b, np.float32)
    co, ci, kh, kw = w.shape
    s, p_next = meta["s"], meta["p_next"]
    wout, win_pad = meta["hout"], meta["hin_pad"]
    row_out = (wout + 2 * p_next) * co

    M = np.zeros((kh, win_pad * ci, row_out), np.float32)
    bt = np.zeros((1, row_out), np.float32)
    for i in range(kh):
        for ow in range(wout):
            dst = (p_next + ow) * co
            for j in range(kw):
                wp = s * ow + j                      # column inside the padded row
                M[i, wp * ci:(wp + 1) * ci, dst:dst + co] = w[:, :, i, j].T
    for ow in range(wout):
        dst = (p_next + ow) * co
        bt[0, dst:dst + co] = b
    return jnp.asarray(M), jnp.asarray(bt)


def init_params(key, output_dim, input_channel, input_size, branch_dim, repeat=1):
    """Returns (params, raw, static):
      raw    -- PyTorch-layout synthetic parameters (used by the XLA reference)
      params -- pre-laid-out / pre-expanded parameters consumed by the kernel
    # TODO(synk): the module uses nn.init.orthogonal_; values here are
    # deterministic scaled-normal placeholders (biases zero, as in the module).
    """
    layers, fc_size = build_plan(input_channel, input_size, repeat=repeat)
    n_conv = len(layers)
    keys = jax.random.split(key, n_conv + 3)

    raw = {"conv": []}
    packed_conv = []
    for k_, meta in zip(keys[:n_conv], layers):
        ci, co, ksz, s, p = meta["ci"], meta["co"], meta["k"], meta["s"], meta["p"]
        fan_in = ci * ksz * ksz
        w = jax.random.normal(k_, (co, ci, ksz, ksz), jnp.float32) / jnp.sqrt(fan_in)
        b = jnp.zeros((co,), jnp.float32)
        raw["conv"].append((w, b, s, p))
        packed_conv.append(_expand_conv_layer(w, b, meta))

    kf, kc, ka = keys[n_conv:]
    wfc = jax.random.normal(kf, (branch_dim, fc_size), jnp.float32) / jnp.sqrt(fc_size)
    bfc = jnp.zeros((branch_dim,), jnp.float32)
    wc = jax.random.normal(kc, (1, branch_dim), jnp.float32) / jnp.sqrt(branch_dim)
    bc = jnp.zeros((1,), jnp.float32)
    wa = jax.random.normal(ka, (output_dim, branch_dim), jnp.float32) / jnp.sqrt(branch_dim)
    ba = jnp.zeros((output_dim,), jnp.float32)
    logstd = jnp.zeros((output_dim,), jnp.float32)
    raw.update(fc=(wfc, bfc), critic=(wc, bc), actor=(wa, ba), logstd=logstd)

    # FC weight: stored as (K, N) with rows permuted from PyTorch's (C,H,W)
    # flatten order to the kernel's (H,W,C) feature order (identity when the
    # final spatial size is 1x1, as in this config).
    last = layers[-1]
    hw, co = last["hout"], last["co"]
    perm = np.zeros((fc_size,), np.int64)
    for oh in range(hw):
        for ow in range(hw):
            for c in range(co):
                perm[(oh * hw + ow) * co + c] = c * hw * hw + oh * hw + ow
    wfc_packed = jnp.asarray(np.asarray(wfc).T[perm, :])     # (fc_size, branch)
    bfc_packed = jnp.asarray(np.asarray(bfc)[None, :])       # (1, branch)

    # Fused critic|actor head, padded to a lane-dense 128-wide output.
    head_n = max(128, ((1 + output_dim + 127) // 128) * 128)
    wh = np.zeros((branch_dim, head_n), np.float32)
    bh = np.zeros((1, head_n), np.float32)
    wh[:, 0] = np.asarray(wc)[0, :]
    wh[:, 1:1 + output_dim] = np.asarray(wa).T
    bh[0, 0] = np.asarray(bc)[0]
    bh[0, 1:1 + output_dim] = np.asarray(ba)

    params = {
        "conv": packed_conv,
        "wfc": wfc_packed, "bfc": bfc_packed,
        "wh": jnp.asarray(wh), "bh": jnp.asarray(bh),
        "logstd": logstd,
    }
    static = dict(layers=layers, fc_size=fc_size, head_n=head_n,
                  branch_dim=branch_dim, output_dim=output_dim)
    return params, raw, static


# ----------------------------------------------------------------------------
# Fused forward (== ActorCriticConv.forward with net_mode=2).
# ----------------------------------------------------------------------------
def make_forward(static):
    layers = static["layers"]
    L = len(layers)
    fc_size = static["fc_size"]
    branch_dim = static["branch_dim"]
    output_dim = static["output_dim"]
    head_n = static["head_n"]
    p0 = layers[0]["p"]
    f32 = jnp.float32

    # -------------------- the single fused kernel (one batch element / step) ----
    def kernel(*refs):
        x_ref = refs[0]
        conv_refs = refs[1:1 + 2 * L]
        wfc_ref, bfc_ref, wh_ref, bh_ref = refs[1 + 2 * L:5 + 2 * L]
        out_ref = refs[5 + 2 * L]
        pad_refs = refs[6 + 2 * L:]        # VMEM scratch: padded activation frames

        # Zero the padded frames; only interior rows get overwritten below, so the
        # spatial zero-padding for the next conv layer comes for free.
        for pr in pad_refs:
            pr[...] = jnp.zeros_like(pr)

        def in_row(layer_idx, r):
            if layer_idx == 0:
                return x_ref[0, r:r + 1, :]
            return pad_refs[layer_idx - 1][r:r + 1, :]

        feat = None
        for l, meta in enumerate(layers):
            m_ref, b_ref = conv_refs[2 * l], conv_refs[2 * l + 1]
            k, s = meta["k"], meta["s"]
            hout, p_next = meta["hout"], meta["p_next"]

            bias = b_ref[...]                              # (1, row_out)
            accs = [bias] * hout
            for i in range(k):                             # static unroll: kernel rows
                mi = m_ref[i]                              # (row_in, row_out)
                for oh in range(hout):                     # static unroll: output rows
                    accs[oh] = accs[oh] + jnp.dot(
                        in_row(l, s * oh + i), mi, preferred_element_type=f32)

            if l < L - 1:
                for oh in range(hout):                     # conv + bias + ReLU
                    pad_refs[l][p_next + oh:p_next + oh + 1, :] = jnp.maximum(accs[oh], 0.0)
            else:
                rows = [jnp.maximum(a, 0.0) for a in accs]
                feat = rows[0] if len(rows) == 1 else jnp.concatenate(rows, axis=-1)

        # FC trunk + fused (critic | actor) head; output is 128-lane dense.
        h = jnp.maximum(
            jnp.dot(feat, wfc_ref[...], preferred_element_type=f32) + bfc_ref[...], 0.0)
        out_ref[0] = jnp.dot(h, wh_ref[...], preferred_element_type=f32) + bh_ref[...]

    # -------------------- BlockSpecs: every operand is one full-array block -----
    def _full(shape):
        return pl.BlockSpec(shape, lambda n: (0,) * len(shape))

    in_specs = [pl.BlockSpec((1, layers[0]["hin_pad"], layers[0]["row_in"]),
                             lambda n: (n, 0, 0))]
    for meta in layers:
        in_specs.append(_full((meta["k"], meta["row_in"], meta["row_out"])))
        in_specs.append(_full((1, meta["row_out"])))
    in_specs += [_full((fc_size, branch_dim)), _full((1, branch_dim)),
                 _full((branch_dim, head_n)), _full((1, head_n))]
    out_spec = pl.BlockSpec((1, 1, head_n), lambda n: (n, 0, 0))
    scratch_shapes = [
        pltpu.VMEM((meta["hout"] + 2 * meta["p_next"], meta["row_out"]), f32)
        for meta in layers[:-1]]

    def forward(params, x, std_scale):
        n = x.shape[0]
        # NCHW -> zero-padded NHWC, each padded image row flattened to (w, c) lanes.
        xp = jnp.pad(jnp.transpose(x, (0, 2, 3, 1)),
                     ((0, 0), (p0, p0), (p0, p0), (0, 0)))
        xflat = xp.reshape(n, layers[0]["hin_pad"], layers[0]["row_in"])

        flat_in = [xflat]
        for (m, bt) in params["conv"]:
            flat_in += [m, bt]
        flat_in += [params["wfc"], params["bfc"], params["wh"], params["bh"]]

        out = pl.pallas_call(
            kernel,
            out_shape=jax.ShapeDtypeStruct((n, 1, head_n), f32),
            grid=(n,),
            in_specs=in_specs,
            out_specs=out_spec,
            scratch_shapes=scratch_shapes,
            compiler_params=pltpu.CompilerParams(
                dimension_semantics=("parallel",)),
        )(*flat_in)[:, 0, :]

        critic_out = out[:, 0:1]
        actor_mean = out[:, 1:1 + output_dim]
        # TODO(synk): DiagGaussian is not defined in the provided snippet; we
        # return the diagonal-Gaussian parameters (mean, std) instead of a
        # torch.distributions object.  std = std_scale * exp(learned logstd).
        actor_std = (std_scale * jnp.exp(params["logstd"])[None, :]
                     * jnp.ones_like(actor_mean))
        return critic_out, (actor_mean, actor_std)

    return jax.jit(forward)


# ----------------------------------------------------------------------------
# Plain-JAX (XLA) reference of the same module, for correctness checking.
# ----------------------------------------------------------------------------
def reference_forward(raw, x, std_scale):
    prec = jax.lax.Precision.HIGHEST
    for (w, b, s, p) in raw["conv"]:
        x = lax.conv_general_dilated(
            x, w, window_strides=(s, s), padding=[(p, p), (p, p)],
            dimension_numbers=("NCHW", "OIHW", "NCHW"), precision=prec)
        x = jnp.maximum(x + b[None, :, None, None], 0.0)
    x = x.reshape(x.shape[0], -1)
    wfc, bfc = raw["fc"]
    x = jnp.maximum(jnp.dot(x, wfc.T, precision=prec) + bfc[None, :], 0.0)
    wc, bc = raw["critic"]
    wa, ba = raw["actor"]
    critic = jnp.dot(x, wc.T, precision=prec) + bc[None, :]
    mean = jnp.dot(x, wa.T, precision=prec) + ba[None, :]
    std = std_scale * jnp.exp(raw["logstd"])[None, :] * jnp.ones_like(mean)
    return critic, (mean, std)


# ----------------------------------------------------------------------------
if __name__ == "__main__":
    key = jax.random.PRNGKey(0)
    kx, kp = jax.random.split(key)

    batch, input_channel, input_size = 2, 4, 16
    output_dim, branch_dim, std_scale = 6, 64, 0.5

    x = jax.random.normal(kx, (batch, input_channel, input_size, input_size),
                          jnp.float32)
    params, raw, static = init_params(kp, output_dim, input_channel, input_size,
                                      branch_dim)
    forward = make_forward(static)

    critic_out, (actor_mean, actor_std) = forward(params, x, std_scale)
    jax.block_until_ready((critic_out, actor_mean, actor_std))

    assert critic_out.shape == (batch, 1)
    assert actor_mean.shape == (batch, output_dim)
    assert actor_std.shape == (batch, output_dim)

    # Cross-check the fused Pallas forward against the XLA reference.
    ref_critic, (ref_mean, ref_std) = reference_forward(raw, x, std_scale)
    np.testing.assert_allclose(np.asarray(critic_out), np.asarray(ref_critic),
                               rtol=5e-2, atol=5e-2)
    np.testing.assert_allclose(np.asarray(actor_mean), np.asarray(ref_mean),
                               rtol=5e-2, atol=5e-2)
    np.testing.assert_allclose(np.asarray(actor_std), np.asarray(ref_std),
                               rtol=5e-2, atol=5e-2)

    print("KERNEL_OK")
</pallas_src>

<mosaic_0001>
module attributes {stable_mosaic.version = 11 : i64} {
  func.func @kernel(%arg0: i32, %arg1: memref<1x18x72xf32, #tpu.memory_space<vmem>>, %arg2: memref<7x72x64xf32, #tpu.memory_space<vmem>>, %arg3: memref<1x64xf32, #tpu.memory_space<vmem>>, %arg4: memref<5x64x64xf32, #tpu.memory_space<vmem>>, %arg5: memref<1x64xf32, #tpu.memory_space<vmem>>, %arg6: memref<3x64x32xf32, #tpu.memory_space<vmem>>, %arg7: memref<1x32xf32, #tpu.memory_space<vmem>>, %arg8: memref<32x64xf32, #tpu.memory_space<vmem>>, %arg9: memref<1x64xf32, #tpu.memory_space<vmem>>, %arg10: memref<64x128xf32, #tpu.memory_space<vmem>>, %arg11: memref<1x128xf32, #tpu.memory_space<vmem>>, %arg12: memref<1x1x128xf32, #tpu.memory_space<vmem>>, %arg13: memref<8x64xf32, #tpu.memory_space<vmem>>, %arg14: memref<4x64xf32, #tpu.memory_space<vmem>>) attributes {dimension_semantics = [#tpu.dimension_semantics<parallel>], iteration_bounds = array<i64: 2>, scalar_prefetch = 0 : i64, scratch_operands = 2 : i64, tpu.core_type = #tpu.core_type<tc>, window_params = [{transform_indices = @transform_0, window_bounds = array<i64: 1, 18, 72>}, {pipeline_mode = #tpu.pipeline_mode<synchronous>, transform_indices = @transform_1, window_bounds = array<i64: 7, 72, 64>}, {pipeline_mode = #tpu.pipeline_mode<synchronous>, transform_indices = @transform_2, window_bounds = array<i64: 1, 64>}, {pipeline_mode = #tpu.pipeline_mode<synchronous>, transform_indices = @transform_3, window_bounds = array<i64: 5, 64, 64>}, {pipeline_mode = #tpu.pipeline_mode<synchronous>, transform_indices = @transform_4, window_bounds = array<i64: 1, 64>}, {pipeline_mode = #tpu.pipeline_mode<synchronous>, transform_indices = @transform_5, window_bounds = array<i64: 3, 64, 32>}, {pipeline_mode = #tpu.pipeline_mode<synchronous>, transform_indices = @transform_6, window_bounds = array<i64: 1, 32>}, {pipeline_mode = #tpu.pipeline_mode<synchronous>, transform_indices = @transform_7, window_bounds = array<i64: 32, 64>}, {pipeline_mode = #tpu.pipeline_mode<synchronous>, transform_indices = @transform_8, window_bounds = array<i64: 1, 64>}, {pipeline_mode = #tpu.pipeline_mode<synchronous>, transform_indices = @transform_9, window_bounds = array<i64: 64, 128>}, {pipeline_mode = #tpu.pipeline_mode<synchronous>, transform_indices = @transform_10, window_bounds = array<i64: 1, 128>}, {transform_indices = @transform_11, window_bounds = array<i64: 1, 1, 128>}]} {
    %cst = arith.constant 0.000000e+00 : f32
    %0 = vector.broadcast %cst : f32 to vector<8x64xf32>
    %c0 = arith.constant 0 : index
    %c0_0 = arith.constant 0 : index
    %1 = vector.load %arg13[%c0, %c0_0] : memref<8x64xf32, #tpu.memory_space<vmem>>, vector<8x64xf32>
    tpu.vector_store %arg13[%c0, %c0_0], %0 {strides = array<i32>} : memref<8x64xf32, #tpu.memory_space<vmem>>, vector<8x64xf32>,
    %cst_1 = arith.constant 0.000000e+00 : f32
    %2 = vector.broadcast %cst_1 : f32 to vector<4x64xf32>
    %c0_2 = arith.constant 0 : index
    %c0_3 = arith.constant 0 : index
    %3 = vector.load %arg14[%c0_2, %c0_3] : memref<4x64xf32, #tpu.memory_space<vmem>>, vector<4x64xf32>
    tpu.vector_store %arg14[%c0_2, %c0_3], %2 {strides = array<i32>} : memref<4x64xf32, #tpu.memory_space<vmem>>, vector<4x64xf32>,
    %c0_4 = arith.constant 0 : index
    %c0_5 = arith.constant 0 : index
    %4 = vector.load %arg3[%c0_4, %c0_5] : memref<1x64xf32, #tpu.memory_space<vmem>>, vector<1x64xf32>
    %c0_6 = arith.constant 0 : index
    %c0_7 = arith.constant 0 : index
    %c0_8 = arith.constant 0 : index
    %5 = vector.load %arg2[%c0_6, %c0_7, %c0_8] : memref<7x72x64xf32, #tpu.memory_space<vmem>>, vector<1x72x64xf32>
    %6 = vector.shape_cast %5 : vector<1x72x64xf32> to vector<72x64xf32>
    %c0_9 = arith.constant 0 : index
    %c0_10 = arith.constant 0 : index
    %c0_11 = arith.constant 0 : index
    %7 = vector.load %arg1[%c0_9, %c0_10, %c0_11] : memref<1x18x72xf32, #tpu.memory_space<vmem>>, vector<1x1x72xf32>
    %8 = vector.shape_cast %7 : vector<1x1x72xf32> to vector<1x72xf32>
    %cst_12 = arith.constant dense<0.000000e+00> : vector<1x64xf32>
    %9 = tpu.matmul %8, %6, %cst_12 {dimension_numbers = #tpu.dot_dimension_numbers<[1], [0], [0], [1], [0, 0, 1, 1], [], []>} : vector<1x72xf32>, vector<72x64xf32>, vector<1x64xf32> -> vector<1x64xf32>
    %10 = arith.addf %4, %9 : vector<1x64xf32>
    %c0_13 = arith.constant 0 : index
    %c2 = arith.constant 2 : index
    %c0_14 = arith.constant 0 : index
    %11 = vector.load %arg1[%c0_13, %c2, %c0_14] : memref<1x18x72xf32, #tpu.memory_space<vmem>>, vector<1x1x72xf32>
    %12 = vector.shape_cast %11 : vector<1x1x72xf32> to vector<1x72xf32>
    %cst_15 = arith.constant dense<0.000000e+00> : vector<1x64xf32>
    %13 = tpu.matmul %12, %6, %cst_15 {dimension_numbers = #tpu.dot_dimension_numbers<[1], [0], [0], [1], [0, 0, 1, 1], [], []>} : vector<1x72xf32>, vector<72x64xf32>, vector<1x64xf32> -> vector<1x64xf32>
    %14 = arith.addf %4, %13 : vector<1x64xf32>
    %c0_16 = arith.constant 0 : index
    %c4 = arith.constant 4 : index
    %c0_17 = arith.constant 0 : index
    %15 = vector.load %arg1[%c0_16, %c4, %c0_17] : memref<1x18x72xf32, #tpu.memory_space<vmem>>, vector<1x1x72xf32>
    %16 = vector.shape_cast %15 : vector<1x1x72xf32> to vector<1x72xf32>
    %cst_18 = arith.constant dense<0.000000e+00> : vector<1x64xf32>
    %17 = tpu.matmul %16, %6, %cst_18 {dimension_numbers = #tpu.dot_dimension_numbers<[1], [0], [0], [1], [0, 0, 1, 1], [], []>} : vector<1x72xf32>, vector<72x64xf32>, vector<1x64xf32> -> vector<1x64xf32>
    %18 = arith.addf %4, %17 : vector<1x64xf32>
    %c0_19 = arith.constant 0 : index
    %c6 = arith.constant 6 : index
    %c0_20 = arith.constant 0 : index
    %19 = vector.load %arg1[%c0_19, %c6, %c0_20] : memref<1x18x72xf32, #tpu.memory_space<vmem>>, vector<1x1x72xf32>
    %20 = vector.shape_cast %19 : vector<1x1x72xf32> to vector<1x72xf32>
    %cst_21 = arith.constant dense<0.000000e+00> : vector<1x64xf32>
    %21 = tpu.matmul %20, %6, %cst_21 {dimension_numbers = #tpu.dot_dimension_numbers<[1], [0], [0], [1], [0, 0, 1, 1], [], []>} : vector<1x72xf32>, vector<72x64xf32>, vector<1x64xf32> -> vector<1x64xf32>
    %22 = arith.addf %4, %21 : vector<1x64xf32>
    %c0_22 = arith.constant 0 : index
    %c8 = arith.constant 8 : index
    %c0_23 = arith.constant 0 : index
    %23 = vector.load %arg1[%c0_22, %c8, %c0_23] : memref<1x18x72xf32, #tpu.memory_space<vmem>>, vector<1x1x72xf32>
    %24 = vector.shape_cast %23 : vector<1x1x72xf32> to vector<1x72xf32>
    %cst_24 = arith.constant dense<0.000000e+00> : vector<1x64xf32>
    %25 = tpu.matmul %24, %6, %cst_24 {dimension_numbers = #tpu.dot_dimension_numbers<[1], [0], [0], [1], [0, 0, 1, 1], [], []>} : vector<1x72xf32>, vector<72x64xf32>, vector<1x64xf32> -> vector<1x64xf32>
    %26 = arith.addf %4, %25 : vector<1x64xf32>
    %c0_25 = arith.constant 0 : index
    %c10 = arith.constant 10 : index
    %c0_26 = arith.constant 0 : index
    %27 = vector.load %arg1[%c0_25, %c10, %c0_26] : memref<1x18x72xf32, #tpu.memory_space<vmem>>, vector<1x1x72xf32>
    %28 = vector.shape_cast %27 : vector<1x1x72xf32> to vector<1x72xf32>
    %cst_27 = arith.constant dense<0.000000e+00> : vector<1x64xf32>
    %29 = tpu.matmul %28, %6, %cst_27 {dimension_numbers = #tpu.dot_dimension_numbers<[1], [0], [0], [1], [0, 0, 1, 1], [], []>} : vector<1x72xf32>, vector<72x64xf32>, vector<1x64xf32> -> vector<1x64xf32>
    %30 = arith.addf %4, %29 : vector<1x64xf32>
    %c1 = arith.constant 1 : index
    %c0_28 = arith.constant 0 : index
    %c0_29 = arith.constant 0 : index
    %31 = vector.load %arg2[%c1, %c0_28, %c0_29] : memref<7x72x64xf32, #tpu.memory_space<vmem>>, vector<1x72x64xf32>
    %32 = vector.shape_cast %31 : vector<1x72x64xf32> to vector<72x64xf32>
    %c0_30 = arith.constant 0 : index
    %c1_31 = arith.constant 1 : index
    %c0_32 = arith.constant 0 : index
    %33 = vector.load %arg1[%c0_30, %c1_31, %c0_32] : memref<1x18x72xf32, #tpu.memory_space<vmem>>, vector<1x1x72xf32>
    %34 = vector.shape_cast %33 : vector<1x1x72xf32> to vector<1x72xf32>
    %cst_33 = arith.constant dense<0.000000e+00> : vector<1x64xf32>
    %35 = tpu.matmul %34, %32, %cst_33 {dimension_numbers = #tpu.dot_dimension_numbers<[1], [0], [0], [1], [0, 0, 1, 1], [], []>} : vector<1x72xf32>, vector<72x64xf32>, vector<1x64xf32> -> vector<1x64xf32>
    %36 = arith.addf %10, %35 : vector<1x64xf32>
    %c0_34 = arith.constant 0 : index
    %c3 = arith.constant 3 : index
    %c0_35 = arith.constant 0 : index
    %37 = vector.load %arg1[%c0_34, %c3, %c0_35] : memref<1x18x72xf32, #tpu.memory_space<vmem>>, vector<1x1x72xf32>
    %38 = vector.shape_cast %37 : vector<1x1x72xf32> to vector<1x72xf32>
    %cst_36 = arith.constant dense<0.000000e+00> : vector<1x64xf32>
    %39 = tpu.matmul %38, %32, %cst_36 {dimension_numbers = #tpu.dot_dimension_numbers<[1], [0], [0], [1], [0, 0, 1, 1], [], []>} : vector<1x72xf32>, vector<72x64xf32>, vector<1x64xf32> -> vector<1x64xf32>
    %40 = arith.addf %14, %39 : vector<1x64xf32>
    %c0_37 = arith.constant 0 : index
    %c5 = arith.constant 5 : index
    %c0_38 = arith.constant 0 : index
    %41 = vector.load %arg1[%c0_37, %c5, %c0_38] : memref<1x18x72xf32, #tpu.memory_space<vmem>>, vector<1x1x72xf32>
    %42 = vector.shape_cast %41 : vector<1x1x72xf32> to vector<1x72xf32>
    %cst_39 = arith.constant dense<0.000000e+00> : vector<1x64xf32>
    %43 = tpu.matmul %42, %32, %cst_39 {dimension_numbers = #tpu.dot_dimension_numbers<[1], [0], [0], [1], [0, 0, 1, 1], [], []>} : vector<1x72xf32>, vector<72x64xf32>, vector<1x64xf32> -> vector<1x64xf32>
    %44 = arith.addf %18, %43 : vector<1x64xf32>
    %c0_40 = arith.constant 0 : index
    %c7 = arith.constant 7 : index
    %c0_41 = arith.constant 0 : index
    %45 = vector.load %arg1[%c0_40, %c7, %c0_41] : memref<1x18x72xf32, #tpu.memory_space<vmem>>, vector<1x1x72xf32>
    %46 = vector.shape_cast %45 : vector<1x1x72xf32> to vector<1x72xf32>
    %cst_42 = arith.constant dense<0.000000e+00> : vector<1x64xf32>
    %47 = tpu.matmul %46, %32, %cst_42 {dimension_numbers = #tpu.dot_dimension_numbers<[1], [0], [0], [1], [0, 0, 1, 1], [], []>} : vector<1x72xf32>, vector<72x64xf32>, vector<1x64xf32> -> vector<1x64xf32>
    %48 = arith.addf %22, %47 : vector<1x64xf32>
    %c0_43 = arith.constant 0 : index
    %c9 = arith.constant 9 : index
    %c0_44 = arith.constant 0 : index
    %49 = vector.load %arg1[%c0_43, %c9, %c0_44] : memref<1x18x72xf32, #tpu.memory_space<vmem>>, vector<1x1x72xf32>
    %50 = vector.shape_cast %49 : vector<1x1x72xf32> to vector<1x72xf32>
    %cst_45 = arith.constant dense<0.000000e+00> : vector<1x64xf32>
    %51 = tpu.matmul %50, %32, %cst_45 {dimension_numbers = #tpu.dot_dimension_numbers<[1], [0], [0], [1], [0, 0, 1, 1], [], []>} : vector<1x72xf32>, vector<72x64xf32>, vector<1x64xf32> -> vector<1x64xf32>
    %52 = arith.addf %26, %51 : vector<1x64xf32>
    %c0_46 = arith.constant 0 : index
    %c11 = arith.constant 11 : index
    %c0_47 = arith.constant 0 : index
    %53 = vector.load %arg1[%c0_46, %c11, %c0_47] : memref<1x18x72xf32, #tpu.memory_space<vmem>>, vector<1x1x72xf32>
    %54 = vector.shape_cast %53 : vector<1x1x72xf32> to vector<1x72xf32>
    %cst_48 = arith.constant dense<0.000000e+00> : vector<1x64xf32>
    %55 = tpu.matmul %54, %32, %cst_48 {dimension_numbers = #tpu.dot_dimension_numbers<[1], [0], [0], [1], [0, 0, 1, 1], [], []>} : vector<1x72xf32>, vector<72x64xf32>, vector<1x64xf32> -> vector<1x64xf32>
    %56 = arith.addf %30, %55 : vector<1x64xf32>
    %c2_49 = arith.constant 2 : index
    %c0_50 = arith.constant 0 : index
    %c0_51 = arith.constant 0 : index
    %57 = vector.load %arg2[%c2_49, %c0_50, %c0_51] : memref<7x72x64xf32, #tpu.memory_space<vmem>>, vector<1x72x64xf32>
    %58 = vector.shape_cast %57 : vector<1x72x64xf32> to vector<72x64xf32>
    %c0_52 = arith.constant 0 : index
    %c2_53 = arith.constant 2 : index
    %c0_54 = arith.constant 0 : index
    %59 = vector.load %arg1[%c0_52, %c2_53, %c0_54] : memref<1x18x72xf32, #tpu.memory_space<vmem>>, vector<1x1x72xf32>
    %60 = vector.shape_cast %59 : vector<1x1x72xf32> to vector<1x72xf32>
    %cst_55 = arith.constant dense<0.000000e+00> : vector<1x64xf32>
    %61 = tpu.matmul %60, %58, %cst_55 {dimension_numbers = #tpu.dot_dimension_numbers<[1], [0], [0], [1], [0, 0, 1, 1], [], []>} : vector<1x72xf32>, vector<72x64xf32>, vector<1x64xf32> -> vector<1x64xf32>
    %62 = arith.addf %36, %61 : vector<1x64xf32>
    %c0_56 = arith.constant 0 : index
    %c4_57 = arith.constant 4 : index
    %c0_58 = arith.constant 0 : index
    %63 = vector.load %arg1[%c0_56, %c4_57, %c0_58] : memref<1x18x72xf32, #tpu.memory_space<vmem>>, vector<1x1x72xf32>
    %64 = vector.shape_cast %63 : vector<1x1x72xf32> to vector<1x72xf32>
    %cst_59 = arith.constant dense<0.000000e+00> : vector<1x64xf32>
    %65 = tpu.matmul %64, %58, %cst_59 {dimension_numbers = #tpu.dot_dimension_numbers<[1], [0], [0], [1], [0, 0, 1, 1], [], []>} : vector<1x72xf32>, vector<72x64xf32>, vector<1x64xf32> -> vector<1x64xf32>
    %66 = arith.addf %40, %65 : vector<1x64xf32>
    %c0_60 = arith.constant 0 : index
    %c6_61 = arith.constant 6 : index
    %c0_62 = arith.constant 0 : index
    %67 = vector.load %arg1[%c0_60, %c6_61, %c0_62] : memref<1x18x72xf32, #tpu.memory_space<vmem>>, vector<1x1x72xf32>
    %68 = vector.shape_cast %67 : vector<1x1x72xf32> to vector<1x72xf32>
    %cst_63 = arith.constant dense<0.000000e+00> : vector<1x64xf32>
    %69 = tpu.matmul %68, %58, %cst_63 {dimension_numbers = #tpu.dot_dimension_numbers<[1], [0], [0], [1], [0, 0, 1, 1], [], []>} : vector<1x72xf32>, vector<72x64xf32>, vector<1x64xf32> -> vector<1x64xf32>
    %70 = arith.addf %44, %69 : vector<1x64xf32>
    %c0_64 = arith.constant 0 : index
    %c8_65 = arith.constant 8 : index
    %c0_66 = arith.constant 0 : index
    %71 = vector.load %arg1[%c0_64, %c8_65, %c0_66] : memref<1x18x72xf32, #tpu.memory_space<vmem>>, vector<1x1x72xf32>
    %72 = vector.shape_cast %71 : vector<1x1x72xf32> to vector<1x72xf32>
    %cst_67 = arith.constant dense<0.000000e+00> : vector<1x64xf32>
    %73 = tpu.matmul %72, %58, %cst_67 {dimension_numbers = #tpu.dot_dimension_numbers<[1], [0], [0], [1], [0, 0, 1, 1], [], []>} : vector<1x72xf32>, vector<72x64xf32>, vector<1x64xf32> -> vector<1x64xf32>
    %74 = arith.addf %48, %73 : vector<1x64xf32>
    %c0_68 = arith.constant 0 : index
    %c10_69 = arith.constant 10 : index
    %c0_70 = arith.constant 0 : index
    %75 = vector.load %arg1[%c0_68, %c10_69, %c0_70] : memref<1x18x72xf32, #tpu.memory_space<vmem>>, vector<1x1x72xf32>
    %76 = vector.shape_cast %75 : vector<1x1x72xf32> to vector<1x72xf32>
    %cst_71 = arith.constant dense<0.000000e+00> : vector<1x64xf32>
    %77 = tpu.matmul %76, %58, %cst_71 {dimension_numbers = #tpu.dot_dimension_numbers<[1], [0], [0], [1], [0, 0, 1, 1], [], []>} : vector<1x72xf32>, vector<72x64xf32>, vector<1x64xf32> -> vector<1x64xf32>
    %78 = arith.addf %52, %77 : vector<1x64xf32>
    %c0_72 = arith.constant 0 : index
    %c12 = arith.constant 12 : index
    %c0_73 = arith.constant 0 : index
    %79 = vector.load %arg1[%c0_72, %c12, %c0_73] : memref<1x18x72xf32, #tpu.memory_space<vmem>>, vector<1x1x72xf32>
    %80 = vector.shape_cast %79 : vector<1x1x72xf32> to vector<1x72xf32>
    %cst_74 = arith.constant dense<0.000000e+00> : vector<1x64xf32>
    %81 = tpu.matmul %80, %58, %cst_74 {dimension_numbers = #tpu.dot_dimension_numbers<[1], [0], [0], [1], [0, 0, 1, 1], [], []>} : vector<1x72xf32>, vector<72x64xf32>, vector<1x64xf32> -> vector<1x64xf32>
    %82 = arith.addf %56, %81 : vector<1x64xf32>
    %c3_75 = arith.constant 3 : index
    %c0_76 = arith.constant 0 : index
    %c0_77 = arith.constant 0 : index
    %83 = vector.load %arg2[%c3_75, %c0_76, %c0_77] : memref<7x72x64xf32, #tpu.memory_space<vmem>>, vector<1x72x64xf32>
    %84 = vector.shape_cast %83 : vector<1x72x64xf32> to vector<72x64xf32>
    %c0_78 = arith.constant 0 : index
    %c3_79 = arith.constant 3 : index
    %c0_80 = arith.constant 0 : index
    %85 = vector.load %arg1[%c0_78, %c3_79, %c0_80] : memref<1x18x72xf32, #tpu.memory_space<vmem>>, vector<1x1x72xf32>
    %86 = vector.shape_cast %85 : vector<1x1x72xf32> to vector<1x72xf32>
    %cst_81 = arith.constant dense<0.000000e+00> : vector<1x64xf32>
    %87 = tpu.matmul %86, %84, %cst_81 {dimension_numbers = #tpu.dot_dimension_numbers<[1], [0], [0], [1], [0, 0, 1, 1], [], []>} : vector<1x72xf32>, vector<72x64xf32>, vector<1x64xf32> -> vector<1x64xf32>
    %88 = arith.addf %62, %87 : vector<1x64xf32>
    %c0_82 = arith.constant 0 : index
    %c5_83 = arith.constant 5 : index
    %c0_84 = arith.constant 0 : index
    %89 = vector.load %arg1[%c0_82, %c5_83, %c0_84] : memref<1x18x72xf32, #tpu.memory_space<vmem>>, vector<1x1x72xf32>
    %90 = vector.shape_cast %89 : vector<1x1x72xf32> to vector<1x72xf32>
    %cst_85 = arith.constant dense<0.000000e+00> : vector<1x64xf32>
    %91 = tpu.matmul %90, %84, %cst_85 {dimension_numbers = #tpu.dot_dimension_numbers<[1], [0], [0], [1], [0, 0, 1, 1], [], []>} : vector<1x72xf32>, vector<72x64xf32>, vector<1x64xf32> -> vector<1x64xf32>
    %92 = arith.addf %66, %91 : vector<1x64xf32>
    %c0_86 = arith.constant 0 : index
    %c7_87 = arith.constant 7 : index
    %c0_88 = arith.constant 0 : index
    %93 = vector.load %arg1[%c0_86, %c7_87, %c0_88] : memref<1x18x72xf32, #tpu.memory_space<vmem>>, vector<1x1x72xf32>
    %94 = vector.shape_cast %93 : vector<1x1x72xf32> to vector<1x72xf32>
    %cst_89 = arith.constant dense<0.000000e+00> : vector<1x64xf32>
    %95 = tpu.matmul %94, %84, %cst_89 {dimension_numbers = #tpu.dot_dimension_numbers<[1], [0], [0], [1], [0, 0, 1, 1], [], []>} : vector<1x72xf32>, vector<72x64xf32>, vector<1x64xf32> -> vector<1x64xf32>
    %96 = arith.addf %70, %95 : vector<1x64xf32>
    %c0_90 = arith.constant 0 : index
    %c9_91 = arith.constant 9 : index
    %c0_92 = arith.constant 0 : index
    %97 = vector.load %arg1[%c0_90, %c9_91, %c0_92] : memref<1x18x72xf32, #tpu.memory_space<vmem>>, vector<1x1x72xf32>
    %98 = vector.shape_cast %97 : vector<1x1x72xf32> to vector<1x72xf32>
    %cst_93 = arith.constant dense<0.000000e+00> : vector<1x64xf32>
    %99 = tpu.matmul %98, %84, %cst_93 {dimension_numbers = #tpu.dot_dimension_numbers<[1], [0], [0], [1], [0, 0, 1, 1], [], []>} : vector<1x72xf32>, vector<72x64xf32>, vector<1x64xf32> -> vector<1x64xf32>
    %100 = arith.addf %74, %99 : vector<1x64xf32>
    %c0_94 = arith.constant 0 : index
    %c11_95 = arith.constant 11 : index
    %c0_96 = arith.constant 0 : index
    %101 = vector.load %arg1[%c0_94, %c11_95, %c0_96] : memref<1x18x72xf32, #tpu.memory_space<vmem>>, vector<1x1x72xf32>
    %102 = vector.shape_cast %101 : vector<1x1x72xf32> to vector<1x72xf32>
    %cst_97 = arith.constant dense<0.000000e+00> : vector<1x64xf32>
    %103 = tpu.matmul %102, %84, %cst_97 {dimension_numbers = #tpu.dot_dimension_numbers<[1], [0], [0], [1], [0, 0, 1, 1], [], []>} : vector<1x72xf32>, vector<72x64xf32>, vector<1x64xf32> -> vector<1x64xf32>
    %104 = arith.addf %78, %103 : vector<1x64xf32>
    %c0_98 = arith.constant 0 : index
    %c13 = arith.constant 13 : index
    %c0_99 = arith.constant 0 : index
    %105 = vector.load %arg1[%c0_98, %c13, %c0_99] : memref<1x18x72xf32, #tpu.memory_space<vmem>>, vector<1x1x72xf32>
    %106 = vector.shape_cast %105 : vector<1x1x72xf32> to vector<1x72xf32>
    %cst_100 = arith.constant dense<0.000000e+00> : vector<1x64xf32>
    %107 = tpu.matmul %106, %84, %cst_100 {dimension_numbers = #tpu.dot_dimension_numbers<[1], [0], [0], [1], [0, 0, 1, 1], [], []>} : vector<1x72xf32>, vector<72x64xf32>, vector<1x64xf32> -> vector<1x64xf32>
    %108 = arith.addf %82, %107 : vector<1x64xf32>
    %c4_101 = arith.constant 4 : index
    %c0_102 = arith.constant 0 : index
    %c0_103 = arith.constant 0 : index
    %109 = vector.load %arg2[%c4_101, %c0_102, %c0_103] : memref<7x72x64xf32, #tpu.memory_space<vmem>>, vector<1x72x64xf32>
    %110 = vector.shape_cast %109 : vector<1x72x64xf32> to vector<72x64xf32>
    %c0_104 = arith.constant 0 : index
    %c4_105 = arith.constant 4 : index
    %c0_106 = arith.constant 0 : index
    %111 = vector.load %arg1[%c0_104, %c4_105, %c0_106] : memref<1x18x72xf32, #tpu.memory_space<vmem>>, vector<1x1x72xf32>
    %112 = vector.shape_cast %111 : vector<1x1x72xf32> to vector<1x72xf32>
    %cst_107 = arith.constant dense<0.000000e+00> : vector<1x64xf32>
    %113 = tpu.matmul %112, %110, %cst_107 {dimension_numbers = #tpu.dot_dimension_numbers<[1], [0], [0], [1], [0, 0, 1, 1], [], []>} : vector<1x72xf32>, vector<72x64xf32>, vector<1x64xf32> -> vector<1x64xf32>
    %114 = arith.addf %88, %113 : vector<1x64xf32>
    %c0_108 = arith.constant 0 : index
    %c6_109 = arith.constant 6 : index
    %c0_110 = arith.constant 0 : index
    %115 = vector.load %arg1[%c0_108, %c6_109, %c0_110] : memref<1x18x72xf32, #tpu.memory_space<vmem>>, vector<1x1x72xf32>
    %116 = vector.shape_cast %115 : vector<1x1x72xf32> to vector<1x72xf32>
    %cst_111 = arith.constant dense<0.000000e+00> : vector<1x64xf32>
    %117 = tpu.matmul %116, %110, %cst_111 {dimension_numbers = #tpu.dot_dimension_numbers<[1], [0], [0], [1], [0, 0, 1, 1], [], []>} : vector<1x72xf32>, vector<72x64xf32>, vector<1x64xf32> -> vector<1x64xf32>
    %118 = arith.addf %92, %117 : vector<1x64xf32>
    %c0_112 = arith.constant 0 : index
    %c8_113 = arith.constant 8 : index
    %c0_114 = arith.constant 0 : index
    %119 = vector.load %arg1[%c0_112, %c8_113, %c0_114] : memref<1x18x72xf32, #tpu.memory_space<vmem>>, vector<1x1x72xf32>
    %120 = vector.shape_cast %119 : vector<1x1x72xf32> to vector<1x72xf32>
    %cst_115 = arith.constant dense<0.000000e+00> : vector<1x64xf32>
    %121 = tpu.matmul %120, %110, %cst_115 {dimension_numbers = #tpu.dot_dimension_numbers<[1], [0], [0], [1], [0, 0, 1, 1], [], []>} : vector<1x72xf32>, vector<72x64xf32>, vector<1x64xf32> -> vector<1x64xf32>
    %122 = arith.addf %96, %121 : vector<1x64xf32>
    %c0_116 = arith.constant 0 : index
    %c10_117 = arith.constant 10 : index
    %c0_118 = arith.constant 0 : index
    %123 = vector.load %arg1[%c0_116, %c10_117, %c0_118] : memref<1x18x72xf32, #tpu.memory_space<vmem>>, vector<1x1x72xf32>
    %124 = vector.shape_cast %123 : vector<1x1x72xf32> to vector<1x72xf32>
    %cst_119 = arith.constant dense<0.000000e+00> : vector<1x64xf32>
    %125 = tpu.matmul %124, %110, %cst_119 {dimension_numbers = #tpu.dot_dimension_numbers<[1], [0], [0], [1], [0, 0, 1, 1], [], []>} : vector<1x72xf32>, vector<72x64xf32>, vector<1x64xf32> -> vector<1x64xf32>
    %126 = arith.addf %100, %125 : vector<1x64xf32>
    %c0_120 = arith.constant 0 : index
    %c12_121 = arith.constant 12 : index
    %c0_122 = arith.constant 0 : index
    %127 = vector.load %arg1[%c0_120, %c12_121, %c0_122] : memref<1x18x72xf32, #tpu.memory_space<vmem>>, vector<1x1x72xf32>
    %128 = vector.shape_cast %127 : vector<1x1x72xf32> to vector<1x72xf32>
    %cst_123 = arith.constant dense<0.000000e+00> : vector<1x64xf32>
    %129 = tpu.matmul %128, %110, %cst_123 {dimension_numbers = #tpu.dot_dimension_numbers<[1], [0], [0], [1], [0, 0, 1, 1], [], []>} : vector<1x72xf32>, vector<72x64xf32>, vector<1x64xf32> -> vector<1x64xf32>
    %130 = arith.addf %104, %129 : vector<1x64xf32>
    %c0_124 = arith.constant 0 : index
    %c14 = arith.constant 14 : index
    %c0_125 = arith.constant 0 : index
    %131 = vector.load %arg1[%c0_124, %c14, %c0_125] : memref<1x18x72xf32, #tpu.memory_space<vmem>>, vector<1x1x72xf32>
    %132 = vector.shape_cast %131 : vector<1x1x72xf32> to vector<1x72xf32>
    %cst_126 = arith.constant dense<0.000000e+00> : vector<1x64xf32>
    %133 = tpu.matmul %132, %110, %cst_126 {dimension_numbers = #tpu.dot_dimension_numbers<[1], [0], [0], [1], [0, 0, 1, 1], [], []>} : vector<1x72xf32>, vector<72x64xf32>, vector<1x64xf32> -> vector<1x64xf32>
    %134 = arith.addf %108, %133 : vector<1x64xf32>
    %c5_127 = arith.constant 5 : index
    %c0_128 = arith.constant 0 : index
    %c0_129 = arith.constant 0 : index
    %135 = vector.load %arg2[%c5_127, %c0_128, %c0_129] : memref<7x72x64xf32, #tpu.memory_space<vmem>>, vector<1x72x64xf32>
    %136 = vector.shape_cast %135 : vector<1x72x64xf32> to vector<72x64xf32>
    %c0_130 = arith.constant 0 : index
    %c5_131 = arith.constant 5 : index
    %c0_132 = arith.constant 0 : index
    %137 = vector.load %arg1[%c0_130, %c5_131, %c0_132] : memref<1x18x72xf32, #tpu.memory_space<vmem>>, vector<1x1x72xf32>
    %138 = vector.shape_cast %137 : vector<1x1x72xf32> to vector<1x72xf32>
    %cst_133 = arith.constant dense<0.000000e+00> : vector<1x64xf32>
    %139 = tpu.matmul %138, %136, %cst_133 {dimension_numbers = #tpu.dot_dimension_numbers<[1], [0], [0], [1], [0, 0, 1, 1], [], []>} : vector<1x72xf32>, vector<72x64xf32>, vector<1x64xf32> -> vector<1x64xf32>
    %140 = arith.addf %114, %139 : vector<1x64xf32>
    %c0_134 = arith.constant 0 : index
    %c7_135 = arith.constant 7 : index
    %c0_136 = arith.constant 0 : index
    %141 = vector.load %arg1[%c0_134, %c7_135, %c0_136] : memref<1x18x72xf32, #tpu.memory_space<vmem>>, vector<1x1x72xf32>
    %142 = vector.shape_cast %141 : vector<1x1x72xf32> to vector<1x72xf32>
    %cst_137 = arith.constant dense<0.000000e+00> : vector<1x64xf32>
    %143 = tpu.matmul %142, %136, %cst_137 {dimension_numbers = #tpu.dot_dimension_numbers<[1], [0], [0], [1], [0, 0, 1, 1], [], []>} : vector<1x72xf32>, vector<72x64xf32>, vector<1x64xf32> -> vector<1x64xf32>
    %144 = arith.addf %118, %143 : vector<1x64xf32>
    %c0_138 = arith.constant 0 : index
    %c9_139 = arith.constant 9 : index
    %c0_140 = arith.constant 0 : index
    %145 = vector.load %arg1[%c0_138, %c9_139, %c0_140] : memref<1x18x72xf32, #tpu.memory_space<vmem>>, vector<1x1x72xf32>
    %146 = vector.shape_cast %145 : vector<1x1x72xf32> to vector<1x72xf32>
    %cst_141 = arith.constant dense<0.000000e+00> : vector<1x64xf32>
    %147 = tpu.matmul %146, %136, %cst_141 {dimension_numbers = #tpu.dot_dimension_numbers<[1], [0], [0], [1], [0, 0, 1, 1], [], []>} : vector<1x72xf32>, vector<72x64xf32>, vector<1x64xf32> -> vector<1x64xf32>
    %148 = arith.addf %122, %147 : vector<1x64xf32>
    %c0_142 = arith.constant 0 : index
    %c11_143 = arith.constant 11 : index
    %c0_144 = arith.constant 0 : index
    %149 = vector.load %arg1[%c0_142, %c11_143, %c0_144] : memref<1x18x72xf32, #tpu.memory_space<vmem>>, vector<1x1x72xf32>
    %150 = vector.shape_cast %149 : vector<1x1x72xf32> to vector<1x72xf32>
    %cst_145 = arith.constant dense<0.000000e+00> : vector<1x64xf32>
    %151 = tpu.matmul %150, %136, %cst_145 {dimension_numbers = #tpu.dot_dimension_numbers<[1], [0], [0], [1], [0, 0, 1, 1], [], []>} : vector<1x72xf32>, vector<72x64xf32>, vector<1x64xf32> -> vector<1x64xf32>
    %152 = arith.addf %126, %151 : vector<1x64xf32>
    %c0_146 = arith.constant 0 : index
    %c13_147 = arith.constant 13 : index
    %c0_148 = arith.constant 0 : index
    %153 = vector.load %arg1[%c0_146, %c13_147, %c0_148] : memref<1x18x72xf32, #tpu.memory_space<vmem>>, vector<1x1x72xf32>
    %154 = vector.shape_cast %153 : vector<1x1x72xf32> to vector<1x72xf32>
    %cst_149 = arith.constant dense<0.000000e+00> : vector<1x64xf32>
    %155 = tpu.matmul %154, %136, %cst_149 {dimension_numbers = #tpu.dot_dimension_numbers<[1], [0], [0], [1], [0, 0, 1, 1], [], []>} : vector<1x72xf32>, vector<72x64xf32>, vector<1x64xf32> -> vector<1x64xf32>
    %156 = arith.addf %130, %155 : vector<1x64xf32>
    %c0_150 = arith.constant 0 : index
    %c15 = arith.constant 15 : index
    %c0_151 = arith.constant 0 : index
    %157 = vector.load %arg1[%c0_150, %c15, %c0_151] : memref<1x18x72xf32, #tpu.memory_space<vmem>>, vector<1x1x72xf32>
    %158 = vector.shape_cast %157 : vector<1x1x72xf32> to vector<1x72xf32>
    %cst_152 = arith.constant dense<0.000000e+00> : vector<1x64xf32>
    %159 = tpu.matmul %158, %136, %cst_152 {dimension_numbers = #tpu.dot_dimension_numbers<[1], [0], [0], [1], [0, 0, 1, 1], [], []>} : vector<1x72xf32>, vector<72x64xf32>, vector<1x64xf32> -> vector<1x64xf32>
    %160 = arith.addf %134, %159 : vector<1x64xf32>
    %c6_153 = arith.constant 6 : index
    %c0_154 = arith.constant 0 : index
    %c0_155 = arith.constant 0 : index
    %161 = vector.load %arg2[%c6_153, %c0_154, %c0_155] : memref<7x72x64xf32, #tpu.memory_space<vmem>>, vector<1x72x64xf32>
    %162 = vector.shape_cast %161 : vector<1x72x64xf32> to vector<72x64xf32>
    %c0_156 = arith.constant 0 : index
    %c6_157 = arith.constant 6 : index
    %c0_158 = arith.constant 0 : index
    %163 = vector.load %arg1[%c0_156, %c6_157, %c0_158] : memref<1x18x72xf32, #tpu.memory_space<vmem>>, vector<1x1x72xf32>
    %164 = vector.shape_cast %163 : vector<1x1x72xf32> to vector<1x72xf32>
    %cst_159 = arith.constant dense<0.000000e+00> : vector<1x64xf32>
    %165 = tpu.matmul %164, %162, %cst_159 {dimension_numbers = #tpu.dot_dimension_numbers<[1], [0], [0], [1], [0, 0, 1, 1], [], []>} : vector<1x72xf32>, vector<72x64xf32>, vector<1x64xf32> -> vector<1x64xf32>
    %166 = arith.addf %140, %165 : vector<1x64xf32>
    %c0_160 = arith.constant 0 : index
    %c8_161 = arith.constant 8 : index
    %c0_162 = arith.constant 0 : index
    %167 = vector.load %arg1[%c0_160, %c8_161, %c0_162] : memref<1x18x72xf32, #tpu.memory_space<vmem>>, vector<1x1x72xf32>
    %168 = vector.shape_cast %167 : vector<1x1x72xf32> to vector<1x72xf32>
    %cst_163 = arith.constant dense<0.000000e+00> : vector<1x64xf32>
    %169 = tpu.matmul %168, %162, %cst_163 {dimension_numbers = #tpu.dot_dimension_numbers<[1], [0], [0], [1], [0, 0, 1, 1], [], []>} : vector<1x72xf32>, vector<72x64xf32>, vector<1x64xf32> -> vector<1x64xf32>
    %170 = arith.addf %144, %169 : vector<1x64xf32>
    %c0_164 = arith.constant 0 : index
    %c10_165 = arith.constant 10 : index
    %c0_166 = arith.constant 0 : index
    %171 = vector.load %arg1[%c0_164, %c10_165, %c0_166] : memref<1x18x72xf32, #tpu.memory_space<vmem>>, vector<1x1x72xf32>
    %172 = vector.shape_cast %171 : vector<1x1x72xf32> to vector<1x72xf32>
    %cst_167 = arith.constant dense<0.000000e+00> : vector<1x64xf32>
    %173 = tpu.matmul %172, %162, %cst_167 {dimension_numbers = #tpu.dot_dimension_numbers<[1], [0], [0], [1], [0, 0, 1, 1], [], []>} : vector<1x72xf32>, vector<72x64xf32>, vector<1x64xf32> -> vector<1x64xf32>
    %174 = arith.addf %148, %173 : vector<1x64xf32>
    %c0_168 = arith.constant 0 : index
    %c12_169 = arith.constant 12 : index
    %c0_170 = arith.constant 0 : index
    %175 = vector.load %arg1[%c0_168, %c12_169, %c0_170] : memref<1x18x72xf32, #tpu.memory_space<vmem>>, vector<1x1x72xf32>
    %176 = vector.shape_cast %175 : vector<1x1x72xf32> to vector<1x72xf32>
    %cst_171 = arith.constant dense<0.000000e+00> : vector<1x64xf32>
    %177 = tpu.matmul %176, %162, %cst_171 {dimension_numbers = #tpu.dot_dimension_numbers<[1], [0], [0], [1], [0, 0, 1, 1], [], []>} : vector<1x72xf32>, vector<72x64xf32>, vector<1x64xf32> -> vector<1x64xf32>
    %178 = arith.addf %152, %177 : vector<1x64xf32>
    %c0_172 = arith.constant 0 : index
    %c14_173 = arith.constant 14 : index
    %c0_174 = arith.constant 0 : index
    %179 = vector.load %arg1[%c0_172, %c14_173, %c0_174] : memref<1x18x72xf32, #tpu.memory_space<vmem>>, vector<1x1x72xf32>
    %180 = vector.shape_cast %179 : vector<1x1x72xf32> to vector<1x72xf32>
    %cst_175 = arith.constant dense<0.000000e+00> : vector<1x64xf32>
    %181 = tpu.matmul %180, %162, %cst_175 {dimension_numbers = #tpu.dot_dimension_numbers<[1], [0], [0], [1], [0, 0, 1, 1], [], []>} : vector<1x72xf32>, vector<72x64xf32>, vector<1x64xf32> -> vector<1x64xf32>
    %182 = arith.addf %156, %181 : vector<1x64xf32>
    %c0_176 = arith.constant 0 : index
    %c16 = arith.constant 16 : index
    %c0_177 = arith.constant 0 : index
    %183 = vector.load %arg1[%c0_176, %c16, %c0_177] : memref<1x18x72xf32, #tpu.memory_space<vmem>>, vector<1x1x72xf32>
    %184 = vector.shape_cast %183 : vector<1x1x72xf32> to vector<1x72xf32>
    %cst_178 = arith.constant dense<0.000000e+00> : vector<1x64xf32>
    %185 = tpu.matmul %184, %162, %cst_178 {dimension_numbers = #tpu.dot_dimension_numbers<[1], [0], [0], [1], [0, 0, 1, 1], [], []>} : vector<1x72xf32>, vector<72x64xf32>, vector<1x64xf32> -> vector<1x64xf32>
    %186 = arith.addf %160, %185 : vector<1x64xf32>
    %cst_179 = arith.constant 0.000000e+00 : f32
    %187 = vector.broadcast %cst_179 : f32 to vector<1x64xf32>
    %188 = arith.maximumf %166, %187 : vector<1x64xf32>
    %c1_180 = arith.constant 1 : index
    %c0_181 = arith.constant 0 : index
    %189 = vector.load %arg13[%c1_180, %c0_181] : memref<8x64xf32, #tpu.memory_space<vmem>>, vector<1x64xf32>
    tpu.vector_store %arg13[%c1_180, %c0_181], %188 {strides = array<i32>} : memref<8x64xf32, #tpu.memory_space<vmem>>, vector<1x64xf32>,
    %cst_182 = arith.constant 0.000000e+00 : f32
    %190 = vector.broadcast %cst_182 : f32 to vector<1x64xf32>
    %191 = arith.maximumf %170, %190 : vector<1x64xf32>
    %c2_183 = arith.constant 2 : index
    %c0_184 = arith.constant 0 : index
    %192 = vector.load %arg13[%c2_183, %c0_184] : memref<8x64xf32, #tpu.memory_space<vmem>>, vector<1x64xf32>
    tpu.vector_store %arg13[%c2_183, %c0_184], %191 {strides = array<i32>} : memref<8x64xf32, #tpu.memory_space<vmem>>, vector<1x64xf32>,
    %cst_185 = arith.constant 0.000000e+00 : f32
    %193 = vector.broadcast %cst_185 : f32 to vector<1x64xf32>
    %194 = arith.maximumf %174, %193 : vector<1x64xf32>
    %c3_186 = arith.constant 3 : index
    %c0_187 = arith.constant 0 : index
    %195 = vector.load %arg13[%c3_186, %c0_187] : memref<8x64xf32, #tpu.memory_space<vmem>>, vector<1x64xf32>
    tpu.vector_store %arg13[%c3_186, %c0_187], %194 {strides = array<i32>} : memref<8x64xf32, #tpu.memory_space<vmem>>, vector<1x64xf32>,
    %cst_188 = arith.constant 0.000000e+00 : f32
    %196 = vector.broadcast %cst_188 : f32 to vector<1x64xf32>
    %197 = arith.maximumf %178, %196 : vector<1x64xf32>
    %c4_189 = arith.constant 4 : index
    %c0_190 = arith.constant 0 : index
    %198 = vector.load %arg13[%c4_189, %c0_190] : memref<8x64xf32, #tpu.memory_space<vmem>>, vector<1x64xf32>
    tpu.vector_store %arg13[%c4_189, %c0_190], %197 {strides = array<i32>} : memref<8x64xf32, #tpu.memory_space<vmem>>, vector<1x64xf32>,
    %cst_191 = arith.constant 0.000000e+00 : f32
    %199 = vector.broadcast %cst_191 : f32 to vector<1x64xf32>
    %200 = arith.maximumf %182, %199 : vector<1x64xf32>
    %c5_192 = arith.constant 5 : index
    %c0_193 = arith.constant 0 : index
    %201 = vector.load %arg13[%c5_192, %c0_193] : memref<8x64xf32, #tpu.memory_space<vmem>>, vector<1x64xf32>
    tpu.vector_store %arg13[%c5_192, %c0_193], %200 {strides = array<i32>} : memref<8x64xf32, #tpu.memory_space<vmem>>, vector<1x64xf32>,
    %cst_194 = arith.constant 0.000000e+00 : f32
    %202 = vector.broadcast %cst_194 : f32 to vector<1x64xf32>
    %203 = arith.maximumf %186, %202 : vector<1x64xf32>
    %c6_195 = arith.constant 6 : index
    %c0_196 = arith.constant 0 : index
    %204 = vector.load %arg13[%c6_195, %c0_196] : memref<8x64xf32, #tpu.memory_space<vmem>>, vector<1x64xf32>
    tpu.vector_store %arg13[%c6_195, %c0_196], %203 {strides = array<i32>} : memref<8x64xf32, #tpu.memory_space<vmem>>, vector<1x64xf32>,
    %c0_197 = arith.constant 0 : index
    %c0_198 = arith.constant 0 : index
    %205 = vector.load %arg5[%c0_197, %c0_198] : memref<1x64xf32, #tpu.memory_space<vmem>>, vector<1x64xf32>
    %c0_199 = arith.constant 0 : index
    %c0_200 = arith.constant 0 : index
    %c0_201 = arith.constant 0 : index
    %206 = vector.load %arg4[%c0_199, %c0_200, %c0_201] : memref<5x64x64xf32, #tpu.memory_space<vmem>>, vector<1x64x64xf32>
    %207 = vector.shape_cast %206 : vector<1x64x64xf32> to vector<64x64xf32>
    %c0_202 = arith.constant 0 : index
    %c0_203 = arith.constant 0 : index
    %208 = vector.load %arg13[%c0_202, %c0_203] : memref<8x64xf32, #tpu.memory_space<vmem>>, vector<1x64xf32>
    %cst_204 = arith.constant dense<0.000000e+00> : vector<1x64xf32>
    %209 = tpu.matmul %208, %207, %cst_204 {dimension_numbers = #tpu.dot_dimension_numbers<[1], [0], [0], [1], [0, 0, 1, 1], [], []>} : vector<1x64xf32>, vector<64x64xf32>, vector<1x64xf32> -> vector<1x64xf32>
    %210 = arith.addf %205, %209 : vector<1x64xf32>
    %c2_205 = arith.constant 2 : index
    %c0_206 = arith.constant 0 : index
    %211 = vector.load %arg13[%c2_205, %c0_206] : memref<8x64xf32, #tpu.memory_space<vmem>>, vector<1x64xf32>
    %cst_207 = arith.constant dense<0.000000e+00> : vector<1x64xf32>
    %212 = tpu.matmul %211, %207, %cst_207 {dimension_numbers = #tpu.dot_dimension_numbers<[1], [0], [0], [1], [0, 0, 1, 1], [], []>} : vector<1x64xf32>, vector<64x64xf32>, vector<1x64xf32> -> vector<1x64xf32>
    %213 = arith.addf %205, %212 : vector<1x64xf32>
    %c1_208 = arith.constant 1 : index
    %c0_209 = arith.constant 0 : index
    %c0_210 = arith.constant 0 : index
    %214 = vector.load %arg4[%c1_208, %c0_209, %c0_210] : memref<5x64x64xf32, #tpu.memory_space<vmem>>, vector<1x64x64xf32>
    %215 = vector.shape_cast %214 : vector<1x64x64xf32> to vector<64x64xf32>
    %c1_211 = arith.constant 1 : index
    %c0_212 = arith.constant 0 : index
    %216 = vector.load %arg13[%c1_211, %c0_212] : memref<8x64xf32, #tpu.memory_space<vmem>>, vector<1x64xf32>
    %cst_213 = arith.constant dense<0.000000e+00> : vector<1x64xf32>
    %217 = tpu.matmul %216, %215, %cst_213 {dimension_numbers = #tpu.dot_dimension_numbers<[1], [0], [0], [1], [0, 0, 1, 1], [], []>} : vector<1x64xf32>, vector<64x64xf32>, vector<1x64xf32> -> vector<1x64xf32>
    %218 = arith.addf %210, %217 : vector<1x64xf32>
    %c3_214 = arith.constant 3 : index
    %c0_215 = arith.constant 0 : index
    %219 = vector.load %arg13[%c3_214, %c0_215] : memref<8x64xf32, #tpu.memory_space<vmem>>, vector<1x64xf32>
    %cst_216 = arith.constant dense<0.000000e+00> : vector<1x64xf32>
    %220 = tpu.matmul %219, %215, %cst_216 {dimension_numbers = #tpu.dot_dimension_numbers<[1], [0], [0], [1], [0, 0, 1, 1], [], []>} : vector<1x64xf32>, vector<64x64xf32>, vector<1x64xf32> -> vector<1x64xf32>
    %221 = arith.addf %213, %220 : vector<1x64xf32>
    %c2_217 = arith.constant 2 : index
    %c0_218 = arith.constant 0 : index
    %c0_219 = arith.constant 0 : index
    %222 = vector.load %arg4[%c2_217, %c0_218, %c0_219] : memref<5x64x64xf32, #tpu.memory_space<vmem>>, vector<1x64x64xf32>
    %223 = vector.shape_cast %222 : vector<1x64x64xf32> to vector<64x64xf32>
    %c2_220 = arith.constant 2 : index
    %c0_221 = arith.constant 0 : index
    %224 = vector.load %arg13[%c2_220, %c0_221] : memref<8x64xf32, #tpu.memory_space<vmem>>, vector<1x64xf32>
    %cst_222 = arith.constant dense<0.000000e+00> : vector<1x64xf32>
    %225 = tpu.matmul %224, %223, %cst_222 {dimension_numbers = #tpu.dot_dimension_numbers<[1], [0], [0], [1], [0, 0, 1, 1], [], []>} : vector<1x64xf32>, vector<64x64xf32>, vector<1x64xf32> -> vector<1x64xf32>
    %226 = arith.addf %218, %225 : vector<1x64xf32>
    %c4_223 = arith.constant 4 : index
    %c0_224 = arith.constant 0 : index
    %227 = vector.load %arg13[%c4_223, %c0_224] : memref<8x64xf32, #tpu.memory_space<vmem>>, vector<1x64xf32>
    %cst_225 = arith.constant dense<0.000000e+00> : vector<1x64xf32>
    %228 = tpu.matmul %227, %223, %cst_225 {dimension_numbers = #tpu.dot_dimension_numbers<[1], [0], [0], [1], [0, 0, 1, 1], [], []>} : vector<1x64xf32>, vector<64x64xf32>, vector<1x64xf32> -> vector<1x64xf32>
    %229 = arith.addf %221, %228 : vector<1x64xf32>
    %c3_226 = arith.constant 3 : index
    %c0_227 = arith.constant 0 : index
    %c0_228 = arith.constant 0 : index
    %230 = vector.load %arg4[%c3_226, %c0_227, %c0_228] : memref<5x64x64xf32, #tpu.memory_space<vmem>>, vector<1x64x64xf32>
    %231 = vector.shape_cast %230 : vector<1x64x64xf32> to vector<64x64xf32>
    %c3_229 = arith.constant 3 : index
    %c0_230 = arith.constant 0 : index
    %232 = vector.load %arg13[%c3_229, %c0_230] : memref<8x64xf32, #tpu.memory_space<vmem>>, vector<1x64xf32>
    %cst_231 = arith.constant dense<0.000000e+00> : vector<1x64xf32>
    %233 = tpu.matmul %232, %231, %cst_231 {dimension_numbers = #tpu.dot_dimension_numbers<[1], [0], [0], [1], [0, 0, 1, 1], [], []>} : vector<1x64xf32>, vector<64x64xf32>, vector<1x64xf32> -> vector<1x64xf32>
    %234 = arith.addf %226, %233 : vector<1x64xf32>
    %c5_232 = arith.constant 5 : index
    %c0_233 = arith.constant 0 : index
    %235 = vector.load %arg13[%c5_232, %c0_233] : memref<8x64xf32, #tpu.memory_space<vmem>>, vector<1x64xf32>
    %cst_234 = arith.constant dense<0.000000e+00> : vector<1x64xf32>
    %236 = tpu.matmul %235, %231, %cst_234 {dimension_numbers = #tpu.dot_dimension_numbers<[1], [0], [0], [1], [0, 0, 1, 1], [], []>} : vector<1x64xf32>, vector<64x64xf32>, vector<1x64xf32> -> vector<1x64xf32>
    %237 = arith.addf %229, %236 : vector<1x64xf32>
    %c4_235 = arith.constant 4 : index
    %c0_236 = arith.constant 0 : index
    %c0_237 = arith.constant 0 : index
    %238 = vector.load %arg4[%c4_235, %c0_236, %c0_237] : memref<5x64x64xf32, #tpu.memory_space<vmem>>, vector<1x64x64xf32>
    %239 = vector.shape_cast %238 : vector<1x64x64xf32> to vector<64x64xf32>
    %c4_238 = arith.constant 4 : index
    %c0_239 = arith.constant 0 : index
    %240 = vector.load %arg13[%c4_238, %c0_239] : memref<8x64xf32, #tpu.memory_space<vmem>>, vector<1x64xf32>
    %cst_240 = arith.constant dense<0.000000e+00> : vector<1x64xf32>
    %241 = tpu.matmul %240, %239, %cst_240 {dimension_numbers = #tpu.dot_dimension_numbers<[1], [0], [0], [1], [0, 0, 1, 1], [], []>} : vector<1x64xf32>, vector<64x64xf32>, vector<1x64xf32> -> vector<1x64xf32>
    %242 = arith.addf %234, %241 : vector<1x64xf32>
    %c6_241 = arith.constant 6 : index
    %c0_242 = arith.constant 0 : index
    %243 = vector.load %arg13[%c6_241, %c0_242] : memref<8x64xf32, #tpu.memory_space<vmem>>, vector<1x64xf32>
    %cst_243 = arith.constant dense<0.000000e+00> : vector<1x64xf32>
    %244 = tpu.matmul %243, %239, %cst_243 {dimension_numbers = #tpu.dot_dimension_numbers<[1], [0], [0], [1], [0, 0, 1, 1], [], []>} : vector<1x64xf32>, vector<64x64xf32>, vector<1x64xf32> -> vector<1x64xf32>
    %245 = arith.addf %237, %244 : vector<1x64xf32>
    %cst_244 = arith.constant 0.000000e+00 : f32
    %246 = vector.broadcast %cst_244 : f32 to vector<1x64xf32>
    %247 = arith.maximumf %242, %246 : vector<1x64xf32>
    %c1_245 = arith.constant 1 : index
    %c0_246 = arith.constant 0 : index
    %248 = vector.load %arg14[%c1_245, %c0_246] : memref<4x64xf32, #tpu.memory_space<vmem>>, vector<1x64xf32>
    tpu.vector_store %arg14[%c1_245, %c0_246], %247 {strides = array<i32>} : memref<4x64xf32, #tpu.memory_space<vmem>>, vector<1x64xf32>,
    %cst_247 = arith.constant 0.000000e+00 : f32
    %249 = vector.broadcast %cst_247 : f32 to vector<1x64xf32>
    %250 = arith.maximumf %245, %249 : vector<1x64xf32>
    %c2_248 = arith.constant 2 : index
    %c0_249 = arith.constant 0 : index
    %251 = vector.load %arg14[%c2_248, %c0_249] : memref<4x64xf32, #tpu.memory_space<vmem>>, vector<1x64xf32>
    tpu.vector_store %arg14[%c2_248, %c0_249], %250 {strides = array<i32>} : memref<4x64xf32, #tpu.memory_space<vmem>>, vector<1x64xf32>,
    %c0_250 = arith.constant 0 : index
    %c0_251 = arith.constant 0 : index
    %252 = vector.load %arg7[%c0_250, %c0_251] : memref<1x32xf32, #tpu.memory_space<vmem>>, vector<1x32xf32>
    %c0_252 = arith.constant 0 : index
    %c0_253 = arith.constant 0 : index
    %c0_254 = arith.constant 0 : index
    %253 = vector.load %arg6[%c0_252, %c0_253, %c0_254] : memref<3x64x32xf32, #tpu.memory_space<vmem>>, vector<1x64x32xf32>
    %254 = vector.shape_cast %253 : vector<1x64x32xf32> to vector<64x32xf32>
    %c0_255 = arith.constant 0 : index
    %c0_256 = arith.constant 0 : index
    %255 = vector.load %arg14[%c0_255, %c0_256] : memref<4x64xf32, #tpu.memory_space<vmem>>, vector<1x64xf32>
    %cst_257 = arith.constant dense<0.000000e+00> : vector<1x32xf32>
    %256 = tpu.matmul %255, %254, %cst_257 {dimension_numbers = #tpu.dot_dimension_numbers<[1], [0], [0], [1], [0, 0, 1, 1], [], []>} : vector<1x64xf32>, vector<64x32xf32>, vector<1x32xf32> -> vector<1x32xf32>
    %257 = arith.addf %252, %256 : vector<1x32xf32>
    %c1_258 = arith.constant 1 : index
    %c0_259 = arith.constant 0 : index
    %c0_260 = arith.constant 0 : index
    %258 = vector.load %arg6[%c1_258, %c0_259, %c0_260] : memref<3x64x32xf32, #tpu.memory_space<vmem>>, vector<1x64x32xf32>
    %259 = vector.shape_cast %258 : vector<1x64x32xf32> to vector<64x32xf32>
    %c1_261 = arith.constant 1 : index
    %c0_262 = arith.constant 0 : index
    %260 = vector.load %arg14[%c1_261, %c0_262] : memref<4x64xf32, #tpu.memory_space<vmem>>, vector<1x64xf32>
    %cst_263 = arith.constant dense<0.000000e+00> : vector<1x32xf32>
    %261 = tpu.matmul %260, %259, %cst_263 {dimension_numbers = #tpu.dot_dimension_numbers<[1], [0], [0], [1], [0, 0, 1, 1], [], []>} : vector<1x64xf32>, vector<64x32xf32>, vector<1x32xf32> -> vector<1x32xf32>
    %262 = arith.addf %257, %261 : vector<1x32xf32>
    %c2_264 = arith.constant 2 : index
    %c0_265 = arith.constant 0 : index
    %c0_266 = arith.constant 0 : index
    %263 = vector.load %arg6[%c2_264, %c0_265, %c0_266] : memref<3x64x32xf32, #tpu.memory_space<vmem>>, vector<1x64x32xf32>
    %264 = vector.shape_cast %263 : vector<1x64x32xf32> to vector<64x32xf32>
    %c2_267 = arith.constant 2 : index
    %c0_268 = arith.constant 0 : index
    %265 = vector.load %arg14[%c2_267, %c0_268] : memref<4x64xf32, #tpu.memory_space<vmem>>, vector<1x64xf32>
    %cst_269 = arith.constant dense<0.000000e+00> : vector<1x32xf32>
    %266 = tpu.matmul %265, %264, %cst_269 {dimension_numbers = #tpu.dot_dimension_numbers<[1], [0], [0], [1], [0, 0, 1, 1], [], []>} : vector<1x64xf32>, vector<64x32xf32>, vector<1x32xf32> -> vector<1x32xf32>
    %267 = arith.addf %262, %266 : vector<1x32xf32>
    %cst_270 = arith.constant 0.000000e+00 : f32
    %268 = vector.broadcast %cst_270 : f32 to vector<1x32xf32>
    %269 = arith.maximumf %267, %268 : vector<1x32xf32>
    %c0_271 = arith.constant 0 : index
    %c0_272 = arith.constant 0 : index
    %270 = vector.load %arg8[%c0_271, %c0_272] : memref<32x64xf32, #tpu.memory_space<vmem>>, vector<32x64xf32>
    %cst_273 = arith.constant dense<0.000000e+00> : vector<1x64xf32>
    %271 = tpu.matmul %269, %270, %cst_273 {dimension_numbers = #tpu.dot_dimension_numbers<[1], [0], [0], [1], [0, 0, 1, 1], [], []>} : vector<1x32xf32>, vector<32x64xf32>, vector<1x64xf32> -> vector<1x64xf32>
    %c0_274 = arith.constant 0 : index
    %c0_275 = arith.constant 0 : index
    %272 = vector.load %arg9[%c0_274, %c0_275] : memref<1x64xf32, #tpu.memory_space<vmem>>, vector<1x64xf32>
    %273 = arith.addf %271, %272 : vector<1x64xf32>
    %cst_276 = arith.constant 0.000000e+00 : f32
    %274 = vector.broadcast %cst_276 : f32 to vector<1x64xf32>
    %275 = arith.maximumf %273, %274 : vector<1x64xf32>
    %c0_277 = arith.constant 0 : index
    %c0_278 = arith.constant 0 : index
    %276 = vector.load %arg10[%c0_277, %c0_278] : memref<64x128xf32, #tpu.memory_space<vmem>>, vector<64x128xf32>
    %cst_279 = arith.constant dense<0.000000e+00> : vector<1x128xf32>
    %277 = tpu.matmul %275, %276, %cst_279 {dimension_numbers = #tpu.dot_dimension_numbers<[1], [0], [0], [1], [0, 0, 1, 1], [], []>} : vector<1x64xf32>, vector<64x128xf32>, vector<1x128xf32> -> vector<1x128xf32>
    %c0_280 = arith.constant 0 : index
    %c0_281 = arith.constant 0 : index
    %278 = vector.load %arg11[%c0_280, %c0_281] : memref<1x128xf32, #tpu.memory_space<vmem>>, vector<1x128xf32>
    %279 = arith.addf %277, %278 : vector<1x128xf32>
    %c0_282 = arith.constant 0 : index
    %c0_283 = arith.constant 0 : index
    %c0_284 = arith.constant 0 : index
    %280 = vector.load %arg12[%c0_282, %c0_283, %c0_284] : memref<1x1x128xf32, #tpu.memory_space<vmem>>, vector<1x1x128xf32>
    %281 = vector.shape_cast %280 : vector<1x1x128xf32> to vector<1x128xf32>
    %282 = vector.shape_cast %279 : vector<1x128xf32> to vector<1x1x128xf32>
    tpu.vector_store %arg12[%c0_282, %c0_283, %c0_284], %282 {strides = array<i32>} : memref<1x1x128xf32, #tpu.memory_space<vmem>>, vector<1x1x128xf32>,
    return
  }
  func.func @transform_0(%arg0: i32) -> (i32, i32, i32) {
    %c0_i32 = arith.constant 0 : i32
    %c0_i32_0 = arith.constant 0 : i32
    %c0_i32_1 = arith.constant 0 : i32
    return %arg0, %c0_i32, %c0_i32_0 : i32, i32, i32
  }
  func.func @transform_1(%arg0: i32) -> (i32, i32, i32) {
    %c0_i32 = arith.constant 0 : i32
    %c0_i32_0 = arith.constant 0 : i32
    %c0_i32_1 = arith.constant 0 : i32
    %c0_i32_2 = arith.constant 0 : i32
    return %c0_i32, %c0_i32_0, %c0_i32_1 : i32, i32, i32
  }
  func.func @transform_2(%arg0: i32) -> (i32, i32) {
    %c0_i32 = arith.constant 0 : i32
    %c0_i32_0 = arith.constant 0 : i32
    %c0_i32_1 = arith.constant 0 : i32
    return %c0_i32, %c0_i32_0 : i32, i32
  }
  func.func @transform_3(%arg0: i32) -> (i32, i32, i32) {
    %c0_i32 = arith.constant 0 : i32
    %c0_i32_0 = arith.constant 0 : i32
    %c0_i32_1 = arith.constant 0 : i32
    %c0_i32_2 = arith.constant 0 : i32
    return %c0_i32, %c0_i32_0, %c0_i32_1 : i32, i32, i32
  }
  func.func @transform_4(%arg0: i32) -> (i32, i32) {
    %c0_i32 = arith.constant 0 : i32
    %c0_i32_0 = arith.constant 0 : i32
    %c0_i32_1 = arith.constant 0 : i32
    return %c0_i32, %c0_i32_0 : i32, i32
  }
  func.func @transform_5(%arg0: i32) -> (i32, i32, i32) {
    %c0_i32 = arith.constant 0 : i32
    %c0_i32_0 = arith.constant 0 : i32
    %c0_i32_1 = arith.constant 0 : i32
    %c0_i32_2 = arith.constant 0 : i32
    return %c0_i32, %c0_i32_0, %c0_i32_1 : i32, i32, i32
  }
  func.func @transform_6(%arg0: i32) -> (i32, i32) {
    %c0_i32 = arith.constant 0 : i32
    %c0_i32_0 = arith.constant 0 : i32
    %c0_i32_1 = arith.constant 0 : i32
    return %c0_i32, %c0_i32_0 : i32, i32
  }
  func.func @transform_7(%arg0: i32) -> (i32, i32) {
    %c0_i32 = arith.constant 0 : i32
    %c0_i32_0 = arith.constant 0 : i32
    %c0_i32_1 = arith.constant 0 : i32
    return %c0_i32, %c0_i32_0 : i32, i32
  }
  func.func @transform_8(%arg0: i32) -> (i32, i32) {
    %c0_i32 = arith.constant 0 : i32
    %c0_i32_0 = arith.constant 0 : i32
    %c0_i32_1 = arith.constant 0 : i32
    return %c0_i32, %c0_i32_0 : i32, i32
  }
  func.func @transform_9(%arg0: i32) -> (i32, i32) {
    %c0_i32 = arith.constant 0 : i32
    %c0_i32_0 = arith.constant 0 : i32
    %c0_i32_1 = arith.constant 0 : i32
    return %c0_i32, %c0_i32_0 : i32, i32
  }
  func.func @transform_10(%arg0: i32) -> (i32, i32) {
    %c0_i32 = arith.constant 0 : i32
    %c0_i32_0 = arith.constant 0 : i32
    %c0_i32_1 = arith.constant 0 : i32
    return %c0_i32, %c0_i32_0 : i32, i32
  }
  func.func @transform_11(%arg0: i32) -> (i32, i32, i32) {
    %c0_i32 = arith.constant 0 : i32
    %c0_i32_0 = arith.constant 0 : i32
    %c0_i32_1 = arith.constant 0 : i32
    return %arg0, %c0_i32, %c0_i32_0 : i32, i32, i32
  }
}

</mosaic_0001>

<llo_original>
// kernel: mul.9
$region0: #{mul.9}
  #allocation2 [shape = 's32[1]{0}', space=sflag, size = 0x4, scoped, tag = 'scoped memory for mul.9']
  %s0 = inlined_call_operand.vmem [shape: f32[6], index: 0, kind: input, shape index: {}]
  %s1 = inlined_call_operand.hbm [shape: f32[2,6], index: 1, kind: output, shape index: {}]
  $region1: #{mul.9} parent=0
    #allocation0 [shape = 'u8[1024]{0}', space=vmem, size = 0x400, scoped, tag = 'operand span for operand 1']
    #allocation1 [shape = 's32[1]{0}', space=sflag, size = 0x4, scoped, tag = 'scoped memory for mul.9']
    %2 = vsyncpa [#allocation1], 0
    // Predicated region
    $region2: #{mul.9} parent=1 // pred_check
      _
    $region3: #{mul.9} parent=1 // pred_check_branch
      %4 = sbr.rel (0) target = $region5
    $region4: #{mul.9} parent=1 // pred_region
      _
    $region5: #{mul.9} parent=1 // pred_fallthru
      _
    %v5 = vld [vmem:[%s0] ss:$0 sm:$0xff]
    %6 = vst [vmem:[#allocation0] sm:$0x3] %v5
    %s8 = ssub.s32 32, 32
    %9 = vsyncadd [#allocation1], %s8
    %s11 = sshll.u32 [#allocation0], 4
    %s12 = int_to_ptr.vmem [resolvable:$true] %s11
    %14 = dma.vmem_to_hbm [thread:$0]  %s12, 32, %s1, [#allocation1]
    %15 = dma.done [#allocation1], 32
    %16 = vsyncpa [#allocation1], 1

// kernel: forward.1
$region0: #{forward.1}
  #allocation0 [shape = 'u32[]', space=smem, size = 0x4, offset = 0x4, fixed_abs, tag = 'smem constant byte address 0x4 - core index']
  #allocation1 [shape = 'u32[144,128]{1,0:T(1,128)}', space=vmem, size = 0x12000, scoped, tag = 'internal scratch']
  #allocation2 [shape = 'f32[8,64]{1,0:T(8,128)}', space=vmem, size = 0x1000, scoped, tag = 'scratch operand']
  #allocation3 [shape = 'f32[4,64]{1,0:T(4,128)}', space=vmem, size = 0x800, scoped, tag = 'scratch operand']
  %s0 = inlined_call_operand.vmem [shape: f32[2,18,72], index: 0, kind: input, shape index: {}]
  %s1 = inlined_call_operand.vmem [shape: f32[7,72,64], index: 1, kind: input, shape index: {}]
  %s2 = inlined_call_operand.vmem [shape: f32[1,64], index: 2, kind: input, shape index: {}]
  %s3 = inlined_call_operand.vmem [shape: f32[5,64,64], index: 3, kind: input, shape index: {}]
  %s4 = inlined_call_operand.vmem [shape: f32[1,64], index: 4, kind: input, shape index: {}]
  %s5 = inlined_call_operand.vmem [shape: f32[3,64,32], index: 5, kind: input, shape index: {}]
  %s6 = inlined_call_operand.vmem [shape: f32[1,32], index: 6, kind: input, shape index: {}]
  %s7 = inlined_call_operand.vmem [shape: f32[32,64], index: 7, kind: input, shape index: {}]
  %s8 = inlined_call_operand.vmem [shape: f32[1,64], index: 8, kind: input, shape index: {}]
  %s9 = inlined_call_operand.vmem [shape: f32[64,128], index: 9, kind: input, shape index: {}]
  %s10 = inlined_call_operand.vmem [shape: f32[1,128], index: 10, kind: input, shape index: {}]
  %s11 = inlined_call_operand.vmem [shape: f32[2,1,128], index: 11, kind: output, shape index: {}]
  %s12 = sld [smem:[#allocation0]]
  $region77: #{forward.1} parent=0
    _
  %s14 = ssub.s32 1, %s12
  %s15 = scalar_select 0, %s14, %s12
  loop: start=0, step=1, limit=4
  $region2: #{forward.1} parent=0 // loop_pre_header
    _
  $region3: #{forward.1} parent=0 // loop_header
    %s17 = sphi 0, %s21
    %p18 = scmp.ge.s32.totalorder %s17, 4
    %s27 = sphi 0, %s29
    %s30 = sphi 0, %s27
    %s31 = sphi 0, %s30
    %s47 = sphi 0, %s31
    %s51 = sphi 0, %s51
    %s53 = sphi 0, %s51
    %s54 = sphi 0, %s53
    %s68 = sphi 0, %s54
    %s72 = sphi 0, %s72
    %s74 = sphi 0, %s72
    %s75 = sphi 0, %s74
    %s89 = sphi 0, %s75
    %s93 = sphi 0, %s93
    %s95 = sphi 0, %s93
    %s96 = sphi 0, %s95
    %s110 = sphi 0, %s96
    %s114 = sphi 0, %s114
    %s116 = sphi 0, %s114
    %s117 = sphi 0, %s116
    %s131 = sphi 0, %s117
    %s135 = sphi 0, %s135
    %s137 = sphi 0, %s135
    %s138 = sphi 0, %s137
    %s152 = sphi 0, %s138
    %s156 = sphi 0, %s156
    %s158 = sphi 0, %s156
    %s159 = sphi 0, %s158
    %s173 = sphi 0, %s159
    %s177 = sphi 0, %s177
    %s179 = sphi 0, %s177
    %s180 = sphi 0, %s179
    %s194 = sphi 0, %s180
    %s198 = sphi 0, %s198
    %s200 = sphi 0, %s198
    %s201 = sphi 0, %s200
    %s215 = sphi 0, %s201
    %s219 = sphi 0, %s219
    %s221 = sphi 0, %s219
    %s222 = sphi 0, %s221
    %s236 = sphi 0, %s222
    %s240 = sphi 0, %s240
    %s242 = sphi 0, %s240
    %s243 = sphi 0, %s242
    %s257 = sphi 0, %s243
    %s263 = sphi 0, %s265
    %s266 = sphi 0, %s263
    %s267 = sphi 0, %s266
    %s283 = sphi 0, %s267
  $region4: #{forward.1} parent=0 // loop_header_branch
    %20 = sbr.rel (%p18) target = $region8
  $region5: #{forward.1} parent=0 // loop_body
    %s22 = ssub.s32 %s17, 1
    %s23 = ssub.s32 %s17, 2
    %s24 = sadd.s32 %s17, 1
    %s25 = ssub.s32 %s17, %s24
    %p26 = scmp.eq.s32.totalorder %s25, 0
    %s28 = sadd.s32 %s27, 1
    %s29 = scalar_select %p26, %s27, %s28
    %p32 = pneg %p26
    %p33 = scmp.eq.s32.totalorder %s17, 1
    %p34 = por %p32, %p33
    %p35 = scmp.ne.s32.totalorder %s27, %s30
    %p36 = scmp.eq.s32.totalorder %s17, 0
    %p37 = por %p35, %p36
    %p38 = scmp.ne.s32.totalorder %s27, %s30
    %p39 = scmp.eq.s32.totalorder %s22, 1
    %p40 = por %p38, %p39
    %p41 = scmp.ne.s32.totalorder %s30, %s31
    %p42 = scmp.eq.s32.totalorder %s22, 0
    %p43 = por %p41, %p42
    %p44 = scmp.ne.s32.totalorder %s30, %s31
    %p45 = scmp.eq.s32.totalorder %s23, 1
    %p46 = por %p44, %p45
    %p48 = scmp.ne.s32.totalorder %s31, %s47
    %p49 = scmp.eq.s32.totalorder %s23, 0
    %p50 = por %p48, %p49
    %s52 = sadd.s32 %s51, 1
    %p55 = scmp.eq.s32.totalorder %s17, 1
    %p56 = scmp.ne.s32.totalorder %s51, %s53
    %p57 = scmp.eq.s32.totalorder %s17, 0
    %p58 = por %p56, %p57
    %p59 = scmp.ne.s32.totalorder %s51, %s53
    %p60 = scmp.eq.s32.totalorder %s22, 1
    %p61 = por %p59, %p60
    %p62 = scmp.ne.s32.totalorder %s53, %s54
    %p63 = scmp.eq.s32.totalorder %s22, 0
    %p64 = por %p62, %p63
    %p65 = scmp.ne.s32.totalorder %s53, %s54
    %p66 = scmp.eq.s32.totalorder %s23, 1
    %p67 = por %p65, %p66
    %p69 = scmp.ne.s32.totalorder %s54, %s68
    %p70 = scmp.eq.s32.totalorder %s23, 0
    %p71 = por %p69, %p70
    %s73 = sadd.s32 %s72, 1
    %p76 = scmp.eq.s32.totalorder %s17, 1
    %p77 = scmp.ne.s32.totalorder %s72, %s74
    %p78 = scmp.eq.s32.totalorder %s17, 0
    %p79 = por %p77, %p78
    %p80 = scmp.ne.s32.totalorder %s72, %s74
    %p81 = scmp.eq.s32.totalorder %s22, 1
    %p82 = por %p80, %p81
    %p83 = scmp.ne.s32.totalorder %s74, %s75
    %p84 = scmp.eq.s32.totalorder %s22, 0
    %p85 = por %p83, %p84
    %p86 = scmp.ne.s32.totalorder %s74, %s75
    %p87 = scmp.eq.s32.totalorder %s23, 1
    %p88 = por %p86, %p87
    %p90 = scmp.ne.s32.totalorder %s75, %s89
    %p91 = scmp.eq.s32.totalorder %s23, 0
    %p92 = por %p90, %p91
    %s94 = sadd.s32 %s93, 1
    %p97 = scmp.eq.s32.totalorder %s17, 1
    %p98 = scmp.ne.s32.totalorder %s93, %s95
    %p99 = scmp.eq.s32.totalorder %s17, 0
    %p100 = por %p98, %p99
    %p101 = scmp.ne.s32.totalorder %s93, %s95
    %p102 = scmp.eq.s32.totalorder %s22, 1
    %p103 = por %p101, %p102
    %p104 = scmp.ne.s32.totalorder %s95, %s96
    %p105 = scmp.eq.s32.totalorder %s22, 0
    %p106 = por %p104, %p105
    %p107 = scmp.ne.s32.totalorder %s95, %s96
    %p108 = scmp.eq.s32.totalorder %s23, 1
    %p109 = por %p107, %p108
    %p111 = scmp.ne.s32.totalorder %s96, %s110
    %p112 = scmp.eq.s32.totalorder %s23, 0
    %p113 = por %p111, %p112
    %s115 = sadd.s32 %s114, 1
    %p118 = scmp.eq.s32.totalorder %s17, 1
    %p119 = scmp.ne.s32.totalorder %s114, %s116
    %p120 = scmp.eq.s32.totalorder %s17, 0
    %p121 = por %p119, %p120
    %p122 = scmp.ne.s32.totalorder %s114, %s116
    %p123 = scmp.eq.s32.totalorder %s22, 1
    %p124 = por %p122, %p123
    %p125 = scmp.ne.s32.totalorder %s116, %s117
    %p126 = scmp.eq.s32.totalorder %s22, 0
    %p127 = por %p125, %p126
    %p128 = scmp.ne.s32.totalorder %s116, %s117
    %p129 = scmp.eq.s32.totalorder %s23, 1
    %p130 = por %p128, %p129
    %p132 = scmp.ne.s32.totalorder %s117, %s131
    %p133 = scmp.eq.s32.totalorder %s23, 0
    %p134 = por %p132, %p133
    %s136 = sadd.s32 %s135, 1
    %p139 = scmp.eq.s32.totalorder %s17, 1
    %p140 = scmp.ne.s32.totalorder %s135, %s137
    %p141 = scmp.eq.s32.totalorder %s17, 0
    %p142 = por %p140, %p141
    %p143 = scmp.ne.s32.totalorder %s135, %s137
    %p144 = scmp.eq.s32.totalorder %s22, 1
    %p145 = por %p143, %p144
    %p146 = scmp.ne.s32.totalorder %s137, %s138
    %p147 = scmp.eq.s32.totalorder %s22, 0
    %p148 = por %p146, %p147
    %p149 = scmp.ne.s32.totalorder %s137, %s138
    %p150 = scmp.eq.s32.totalorder %s23, 1
    %p151 = por %p149, %p150
    %p153 = scmp.ne.s32.totalorder %s138, %s152
    %p154 = scmp.eq.s32.totalorder %s23, 0
    %p155 = por %p153, %p154
    %s157 = sadd.s32 %s156, 1
    %p160 = scmp.eq.s32.totalorder %s17, 1
    %p161 = scmp.ne.s32.totalorder %s156, %s158
    %p162 = scmp.eq.s32.totalorder %s17, 0
    %p163 = por %p161, %p162
    %p164 = scmp.ne.s32.totalorder %s156, %s158
    %p165 = scmp.eq.s32.totalorder %s22, 1
    %p166 = por %p164, %p165
    %p167 = scmp.ne.s32.totalorder %s158, %s159
    %p168 = scmp.eq.s32.totalorder %s22, 0
    %p169 = por %p167, %p168
    %p170 = scmp.ne.s32.totalorder %s158, %s159
    %p171 = scmp.eq.s32.totalorder %s23, 1
    %p172 = por %p170, %p171
    %p174 = scmp.ne.s32.totalorder %s159, %s173
    %p175 = scmp.eq.s32.totalorder %s23, 0
    %p176 = por %p174, %p175
    %s178 = sadd.s32 %s177, 1
    %p181 = scmp.eq.s32.totalorder %s17, 1
    %p182 = scmp.ne.s32.totalorder %s177, %s179
    %p183 = scmp.eq.s32.totalorder %s17, 0
    %p184 = por %p182, %p183
    %p185 = scmp.ne.s32.totalorder %s177, %s179
    %p186 = scmp.eq.s32.totalorder %s22, 1
    %p187 = por %p185, %p186
    %p188 = scmp.ne.s32.totalorder %s179, %s180
    %p189 = scmp.eq.s32.totalorder %s22, 0
    %p190 = por %p188, %p189
    %p191 = scmp.ne.s32.totalorder %s179, %s180
    %p192 = scmp.eq.s32.totalorder %s23, 1
    %p193 = por %p191, %p192
    %p195 = scmp.ne.s32.totalorder %s180, %s194
    %p196 = scmp.eq.s32.totalorder %s23, 0
    %p197 = por %p195, %p196
    %s199 = sadd.s32 %s198, 1
    %p202 = scmp.eq.s32.totalorder %s17, 1
    %p203 = scmp.ne.s32.totalorder %s198, %s200
    %p204 = scmp.eq.s32.totalorder %s17, 0
    %p205 = por %p203, %p204
    %p206 = scmp.ne.s32.totalorder %s198, %s200
    %p207 = scmp.eq.s32.totalorder %s22, 1
    %p208 = por %p206, %p207
    %p209 = scmp.ne.s32.totalorder %s200, %s201
    %p210 = scmp.eq.s32.totalorder %s22, 0
    %p211 = por %p209, %p210
    %p212 = scmp.ne.s32.totalorder %s200, %s201
    %p213 = scmp.eq.s32.totalorder %s23, 1
    %p214 = por %p212, %p213
    %p216 = scmp.ne.s32.totalorder %s201, %s215
    %p217 = scmp.eq.s32.totalorder %s23, 0
    %p218 = por %p216, %p217
    %s220 = sadd.s32 %s219, 1
    %p223 = scmp.eq.s32.totalorder %s17, 1
    %p224 = scmp.ne.s32.totalorder %s219, %s221
    %p225 = scmp.eq.s32.totalorder %s17, 0
    %p226 = por %p224, %p225
    %p227 = scmp.ne.s32.totalorder %s219, %s221
    %p228 = scmp.eq.s32.totalorder %s22, 1
    %p229 = por %p227, %p228
    %p230 = scmp.ne.s32.totalorder %s221, %s222
    %p231 = scmp.eq.s32.totalorder %s22, 0
    %p232 = por %p230, %p231
    %p233 = scmp.ne.s32.totalorder %s221, %s222
    %p234 = scmp.eq.s32.totalorder %s23, 1
    %p235 = por %p233, %p234
    %p237 = scmp.ne.s32.totalorder %s222, %s236
    %p238 = scmp.eq.s32.totalorder %s23, 0
    %p239 = por %p237, %p238
    %s241 = sadd.s32 %s240, 1
    %p244 = scmp.eq.s32.totalorder %s17, 1
    %p245 = scmp.ne.s32.totalorder %s240, %s242
    %p246 = scmp.eq.s32.totalorder %s17, 0
    %p247 = por %p245, %p246
    %p248 = scmp.ne.s32.totalorder %s240, %s242
    %p249 = scmp.eq.s32.totalorder %s22, 1
    %p250 = por %p248, %p249
    %p251 = scmp.ne.s32.totalorder %s242, %s243
    %p252 = scmp.eq.s32.totalorder %s22, 0
    %p253 = por %p251, %p252
    %p254 = scmp.ne.s32.totalorder %s242, %s243
    %p255 = scmp.eq.s32.totalorder %s23, 1
    %p256 = por %p254, %p255
    %p258 = scmp.ne.s32.totalorder %s243, %s257
    %p259 = scmp.eq.s32.totalorder %s23, 0
    %p260 = por %p258, %p259
    %s261 = ssub.s32 %s17, %s24
    %p262 = scmp.eq.s32.totalorder %s261, 0
    %s264 = sadd.s32 %s263, 1
    %s265 = scalar_select %p262, %s263, %s264
    %p268 = pneg %p262
    %p269 = scmp.eq.s32.totalorder %s17, 1
    %p270 = por %p268, %p269
    %p271 = scmp.ne.s32.totalorder %s263, %s266
    %p272 = scmp.eq.s32.totalorder %s17, 0
    %p273 = por %p271, %p272
    %p274 = scmp.ne.s32.totalorder %s263, %s266
    %p275 = scmp.eq.s32.totalorder %s22, 1
    %p276 = por %p274, %p275
    %p277 = scmp.ne.s32.totalorder %s266, %s267
    %p278 = scmp.eq.s32.totalorder %s22, 0
    %p279 = por %p277, %p278
    %p280 = scmp.ne.s32.totalorder %s266, %s267
    %p281 = scmp.eq.s32.totalorder %s23, 1
    %p282 = por %p280, %p281
    %p284 = scmp.ne.s32.totalorder %s267, %s283
    %p285 = scmp.eq.s32.totalorder %s23, 0
    %p286 = por %p284, %p285
    %p287 = scmp.le.s32.totalorder 1, %s17
    %p288 = scmp.lt.s32.totalorder %s17, 3
    %p289 = pnand %p287, %p288
    %p290 = pneg %p289
    // Predicated region
    $region9: #{forward.1} parent=5 // pred_check
      _
    $region10: #{forward.1} parent=5 // pred_check_branch
      %292 = sbr.rel (%p289) target = $region12
    $region11: #{forward.1} parent=5 // pred_region
      %s293 = ssub.s32 %s17, 1
      // Predicated region
      $region13: #{forward.1} parent=11 // pred_check
        %p294 = pneg %p64
      $region14: #{forward.1} parent=11 // pred_check_branch
        %296 = sbr.rel (%p294) target = $region16
      $region15: #{forward.1} parent=11 // pred_region
        _
      $region16: #{forward.1} parent=11 // pred_fallthru
        _
      // Predicated region
      $region17: #{forward.1} parent=11 // pred_check
        %p297 = pneg %p85
      $region18: #{forward.1} parent=11 // pred_check_branch
        %299 = sbr.rel (%p297) target = $region20
      $region19: #{forward.1} parent=11 // pred_region
        _
      $region20: #{forward.1} parent=11 // pred_fallthru
        _
      // Predicated region
      $region21: #{forward.1} parent=11 // pred_check
        %p300 = pneg %p106
      $region22: #{forward.1} parent=11 // pred_check_branch
        %302 = sbr.rel (%p300) target = $region24
      $region23: #{forward.1} parent=11 // pred_region
        _
      $region24: #{forward.1} parent=11 // pred_fallthru
        _
      // Predicated region
      $region25: #{forward.1} parent=11 // pred_check
        %p303 = pneg %p127
      $region26: #{forward.1} parent=11 // pred_check_branch
        %305 = sbr.rel (%p303) target = $region28
      $region27: #{forward.1} parent=11 // pred_region
        _
      $region28: #{forward.1} parent=11 // pred_fallthru
        _
      // Predicated region
      $region29: #{forward.1} parent=11 // pred_check
        %p306 = pneg %p148
      $region30: #{forward.1} parent=11 // pred_check_branch
        %308 = sbr.rel (%p306) target = $region32
      $region31: #{forward.1} parent=11 // pred_region
        _
      $region32: #{forward.1} parent=11 // pred_fallthru
        _
      // Predicated region
      $region33: #{forward.1} parent=11 // pred_check
        %p309 = pneg %p169
      $region34: #{forward.1} parent=11 // pred_check_branch
        %311 = sbr.rel (%p309) target = $region36
      $region35: #{forward.1} parent=11 // pred_region
        _
      $region36: #{forward.1} parent=11 // pred_fallthru
        _
      // Predicated region
      $region37: #{forward.1} parent=11 // pred_check
        %p312 = pneg %p190
      $region38: #{forward.1} parent=11 // pred_check_branch
        %314 = sbr.rel (%p312) target = $region40
      $region39: #{forward.1} parent=11 // pred_region
        _
      $region40: #{forward.1} parent=11 // pred_fallthru
        _
      // Predicated region
      $region41: #{forward.1} parent=11 // pred_check
        %p315 = pneg %p211
      $region42: #{forward.1} parent=11 // pred_check_branch
        %317 = sbr.rel (%p315) target = $region44
      $region43: #{forward.1} parent=11 // pred_region
        _
      $region44: #{forward.1} parent=11 // pred_fallthru
        _
      // Predicated region
      $region45: #{forward.1} parent=11 // pred_check
        %p318 = pneg %p232
      $region46: #{forward.1} parent=11 // pred_check_branch
        %320 = sbr.rel (%p318) target = $region48
      $region47: #{forward.1} parent=11 // pred_region
        _
      $region48: #{forward.1} parent=11 // pred_fallthru
        _
      // Predicated region
      $region49: #{forward.1} parent=11 // pred_check
        %p321 = pneg %p253
      $region50: #{forward.1} parent=11 // pred_check_branch
        %323 = sbr.rel (%p321) target = $region52
      $region51: #{forward.1} parent=11 // pred_region
        _
      $region52: #{forward.1} parent=11 // pred_fallthru
        _
    $region12: #{forward.1} parent=5 // pred_fallthru
      _
    %p324 = scmp.lt.s32.totalorder %s17, 2
    // Predicated region
    $region53: #{forward.1} parent=5 // pred_check
      %p325 = pneg %p324
    $region54: #{forward.1} parent=5 // pred_check_branch
      %327 = sbr.rel (%p325) target = $region56
    $region55: #{forward.1} parent=5 // pred_region
      // Predicated region
      $region57: #{forward.1} parent=55 // pred_check
        %p328 = pneg %p37
      $region58: #{forward.1} parent=55 // pred_check_branch
        %330 = sbr.rel (%p328) target = $region60
      $region59: #{forward.1} parent=55 // pred_region
        %p331 = scmp.lt.s32.totalorder %s17, 1
        %s332 = scalar_select %p331, %s17, 1
        %s333 = smul.addr %s332, 3
        %s334 = smul.addr %s333, 8
        %s335 = scalar_lea.vmem %s0, %s334
      $region60: #{forward.1} parent=55 // pred_fallthru
        _
    $region56: #{forward.1} parent=5 // pred_fallthru
      _
    %p336 = scmp.le.s32.totalorder 1, %s17
    %p337 = scmp.lt.s32.totalorder %s17, 3
    %p338 = pnand %p336, %p337
    %p339 = pneg %p338
    // Predicated region
    $region61: #{forward.1} parent=5 // pred_check
      _
    $region62: #{forward.1} parent=5 // pred_check_branch
      %341 = sbr.rel (%p338) target = $region64
    $region63: #{forward.1} parent=5 // pred_region
      %s342 = ssub.s32 %s17, 1
      %p343 = scmp.lt.s32.totalorder %s22, 1
      %s344 = scalar_select %p343, %s22, 1
      %s345 = smul.addr %s344, 3
      %s346 = smul.addr %s345, 8
      %s347 = scalar_lea.vmem %s0, %s346
      %p348 = pneg %p43
      %p349 = pneg %p40
      %p350 = pneg %p64
      %p351 = pneg %p61
      %p352 = pneg %p85
      %p353 = pneg %p82
      %p354 = pneg %p106
      %p355 = pneg %p103
      %p356 = pneg %p127
      %p357 = pneg %p124
      %p358 = pneg %p148
      %p359 = pneg %p145
      %p360 = pneg %p169
      %p361 = pneg %p166
      %p362 = pneg %p190
      %p363 = pneg %p187
      %p364 = pneg %p211
      %p365 = pneg %p208
      %p366 = pneg %p232
      %p367 = pneg %p229
      %p368 = pneg %p253
      %p369 = pneg %p250
      %p370 = pneg %p279
      %p371 = pneg %p276
      %p372 = scmp.lt.s32.totalorder %s22, 1
      %s373 = scalar_select %p372, %s22, 1
      %s374 = scalar_lea.vmem %s11, %s373
      %p375 = scmp.lt.s32.totalorder %s22, 1
      %s376 = scalar_select %p375, %s22, 1
      %s377 = smul.addr %s376, 3
      %s378 = smul.addr %s377, 8
      %s379 = scalar_lea.vmem %s0, %s378
      %p380 = scmp.lt.s32.totalorder %s22, 1
      %s381 = scalar_select %p380, %s22, 1
      %s382 = scalar_lea.vmem %s11, %s381
      %vm383 = vcmask 523264
      %384 = vst.msk [vmem:[#allocation2] sm:$0xff] %vm383, 0.0
      %vm385 = vcmask 519168
      %386 = vst.msk [vmem:[#allocation3] sm:$0xf] %vm385, 0.0
      %v387 = vld [vmem:[%s2] sm:$0x1]
      %v388 = vld [vmem:[%s1] sm:$0xff]
      %v389 = vld [vmem:[%s1 + $0x8] sm:$0xff]
      %v390 = vld [vmem:[%s1 + $0x10] sm:$0xff]
      %v391 = vld [vmem:[%s1 + $0x18] sm:$0xff]
      %v392 = vld [vmem:[%s1 + $0x20] sm:$0xff]
      %v393 = vld [vmem:[%s1 + $0x28] sm:$0xff]
      %v394 = vld [vmem:[%s1 + $0x30] sm:$0xff]
      %v395 = vld [vmem:[%s1 + $0x38] sm:$0xff]
      %v396 = vld [vmem:[%s1 + $0x40] sm:$0xff]
      %v397 = vld [vmem:[%s379] sm:$0x1]
      %vm398 = vcmask 588800
      %v400 = vsel %vm398, %v397, 0
      %402 = vmatprep.subr.mxu0 0.0
      %403 = vmatpush1.msra.mxu0 %v388
      %404 = vmatprep.subr.mxu0 0.0
      %405 = vmatpush1.msra.mxu0 %v389
      %406 = vmatprep.subr.mxu0 0.0
      %407 = vmatpush1.msra.mxu0 %v390
      %408 = vmatprep.subr.mxu0 0.0
      %409 = vmatpush1.msra.mxu0 %v391
      %410 = vmatprep.subr.mxu0 0.0
      %411 = vmatpush1.msra.mxu0 %v392
      %412 = vmatprep.subr.mxu0 0.0
      %413 = vmatpush1.msra.mxu0 %v393
      %414 = vmatprep.subr.mxu0 0.0
      %415 = vmatpush1.msra.mxu0 %v394
      %416 = vmatprep.subr.mxu0 0.0
      %417 = vmatpush1.msra.mxu0 %v395
      %418 = vmatprep.subr.mxu0 0.0
      %419 = vmatpush1.msra.mxu0 %v396
      %420 = vmatprep.subr.mxu0 0.0
      %421 = vmatpush1.msra.mxu0 0.0
      %422 = vmatprep.subr.mxu0 0.0
      %423 = vmatpush1.msra.mxu0 0.0
      %424 = vmatprep.subr.mxu0 0.0
      %425 = vmatpush1.msra.mxu0 0.0
      %426 = vmatprep.subr.mxu0 0.0
      %427 = vmatpush1.msra.mxu0 0.0
      %428 = vmatprep.subr.mxu0 0.0
      %429 = vmatpush1.msra.mxu0 0.0
      %430 = vmatprep.subr.mxu0 0.0
      %431 = vmatpush1.msra.mxu0 0.0
      %432 = vmatprep.subr.mxu0 0.0
      %433 = vmatpush1.msra.mxu0 0.0
      %434 = vmatprep.subr.mxu0 0.0
      %435 = vmatpush1.msra.mxu0 0.0
      %436 = vmatprep.subr.mxu0 0.0
      %437 = vmatpush1.msra.mxu0 0.0
      %438 = vmatprep.subr.mxu0 0.0
      %439 = vmatpush1.msra.mxu0 0.0
      %440 = vmatprep.subr.mxu0 0.0
      %441 = vmatpush1.msra.mxu0 0.0
      %442 = vmatprep.subr.mxu0 0.0
      %443 = vmatpush1.msra.mxu0 0.0
      %444 = vmatprep.subr.mxu0 0.0
      %445 = vmatpush1.msra.mxu0 0.0
      %446 = vmatprep.subr.mxu0 0.0
      %447 = vmatpush1.msra.mxu0 0.0
      %448 = vmatprep.subr.mxu0 0.0
      %449 = vmatpush1.msra.mxu0 0.0
      %450 = vmatprep.subr.mxu0 0.0
      %451 = vmatpush1.msra.mxu0 0.0
      %452 = vmatprep.subr.mxu0 0.0
      %453 = vmatpush1.msra.mxu0 0.0
      %454 = vmatprep.subr.mxu0 0.0
      %455 = vmatpush1.msra.mxu0 0.0
      %456 = vmatprep.subr.mxu0 0.0
      %457 = vmatpush1.msra.mxu0 0.0
      %458 = vmatprep.subr.mxu0 0.0
      %459 = vmatpush1.msra.mxu0 0.0
      %460 = vmatprep.subr.mxu0 0.0
      %461 = vmatpush1.msra.mxu0 0.0
      %462 = vmatprep.subr.mxu0 0.0
      %463 = vmatpush1.msra.mxu0 0.0
      %464 = vmatprep.subr.mxu0 0.0
      %465 = vmatpush1.msra.mxu0 0.0
      %466 = vmatprep.mubr.f32.mxu0 0.0
      %467 = vmatmul.mubr.f32.gmra.mrb[0].mxu0 %v400
      %v468 = vpop.f32.mrb[0].mxu0
      %v469 = vadd.f32 0.0, %v468
      %v470 = vpop.f32.mrb[0].mxu0
      %471 = vdwg.mxu0
      %v472 = vadd.f32 %v387, %v469
      %v473 = vld [vmem:[%s379 + $0x2] sm:$0x1]
      %v475 = vsel %vm398, %v473, 0
      %477 = vmatprep.subr.mxu0 0.0
      %478 = vmatpush1.msra.mxu0 %v388
      %479 = vmatprep.subr.mxu0 0.0
      %480 = vmatpush1.msra.mxu0 %v389
      %481 = vmatprep.subr.mxu0 0.0
      %482 = vmatpush1.msra.mxu0 %v390
      %483 = vmatprep.subr.mxu0 0.0
      %484 = vmatpush1.msra.mxu0 %v391
      %485 = vmatprep.subr.mxu0 0.0
      %486 = vmatpush1.msra.mxu0 %v392
      %487 = vmatprep.subr.mxu0 0.0
      %488 = vmatpush1.msra.mxu0 %v393
      %489 = vmatprep.subr.mxu0 0.0
      %490 = vmatpush1.msra.mxu0 %v394
      %491 = vmatprep.subr.mxu0 0.0
      %492 = vmatpush1.msra.mxu0 %v395
      %493 = vmatprep.subr.mxu0 0.0
      %494 = vmatpush1.msra.mxu0 %v396
      %495 = vmatprep.subr.mxu0 0.0
      %496 = vmatpush1.msra.mxu0 0.0
      %497 = vmatprep.subr.mxu0 0.0
      %498 = vmatpush1.msra.mxu0 0.0
      %499 = vmatprep.subr.mxu0 0.0
      %500 = vmatpush1.msra.mxu0 0.0
      %501 = vmatprep.subr.mxu0 0.0
      %502 = vmatpush1.msra.mxu0 0.0
      %503 = vmatprep.subr.mxu0 0.0
      %504 = vmatpush1.msra.mxu0 0.0
      %505 = vmatprep.subr.mxu0 0.0
      %506 = vmatpush1.msra.mxu0 0.0
      %507 = vmatprep.subr.mxu0 0.0
      %508 = vmatpush1.msra.mxu0 0.0
      %509 = vmatprep.subr.mxu0 0.0
      %510 = vmatpush1.msra.mxu0 0.0
      %511 = vmatprep.subr.mxu0 0.0
      %512 = vmatpush1.msra.mxu0 0.0
      %513 = vmatprep.subr.mxu0 0.0
      %514 = vmatpush1.msra.mxu0 0.0
      %515 = vmatprep.subr.mxu0 0.0
      %516 = vmatpush1.msra.mxu0 0.0
      %517 = vmatprep.subr.mxu0 0.0
      %518 = vmatpush1.msra.mxu0 0.0
      %519 = vmatprep.subr.mxu0 0.0
      %520 = vmatpush1.msra.mxu0 0.0
      %521 = vmatprep.subr.mxu0 0.0
      %522 = vmatpush1.msra.mxu0 0.0
      %523 = vmatprep.subr.mxu0 0.0
      %524 = vmatpush1.msra.mxu0 0.0
      %525 = vmatprep.subr.mxu0 0.0
      %526 = vmatpush1.msra.mxu0 0.0
      %527 = vmatprep.subr.mxu0 0.0
      %528 = vmatpush1.msra.mxu0 0.0
      %529 = vmatprep.subr.mxu0 0.0
      %530 = vmatpush1.msra.mxu0 0.0
      %531 = vmatprep.subr.mxu0 0.0
      %532 = vmatpush1.msra.mxu0 0.0
      %533 = vmatprep.subr.mxu0 0.0
      %534 = vmatpush1.msra.mxu0 0.0
      %535 = vmatprep.subr.mxu0 0.0
      %536 = vmatpush1.msra.mxu0 0.0
      %537 = vmatprep.subr.mxu0 0.0
      %538 = vmatpush1.msra.mxu0 0.0
      %539 = vmatprep.subr.mxu0 0.0
      %540 = vmatpush1.msra.mxu0 0.0
      %541 = vmatprep.mubr.f32.mxu0 0.0
      %542 = vmatmul.mubr.f32.gmra.mrb[0].mxu0 %v475
      %v543 = vpop.f32.mrb[0].mxu0
      %v544 = vadd.f32 0.0, %v543
      %v545 = vpop.f32.mrb[0].mxu0
      %546 = vdwg.mxu0
      %v547 = vadd.f32 %v387, %v544
      %v548 = vld [vmem:[%s379 + $0x4] sm:$0x1]
      %v550 = vsel %vm398, %v548, 0
      %552 = vmatprep.subr.mxu0 0.0
      %553 = vmatpush1.msra.mxu0 %v388
      %554 = vmatprep.subr.mxu0 0.0
      %555 = vmatpush1.msra.mxu0 %v389
      %556 = vmatprep.subr.mxu0 0.0
      %557 = vmatpush1.msra.mxu0 %v390
      %558 = vmatprep.subr.mxu0 0.0
      %559 = vmatpush1.msra.mxu0 %v391
      %560 = vmatprep.subr.mxu0 0.0
      %561 = vmatpush1.msra.mxu0 %v392
      %562 = vmatprep.subr.mxu0 0.0
      %563 = vmatpush1.msra.mxu0 %v393
      %564 = vmatprep.subr.mxu0 0.0
      %565 = vmatpush1.msra.mxu0 %v394
      %566 = vmatprep.subr.mxu0 0.0
      %567 = vmatpush1.msra.mxu0 %v395
      %568 = vmatprep.subr.mxu0 0.0
      %569 = vmatpush1.msra.mxu0 %v396
      %570 = vmatprep.subr.mxu0 0.0
      %571 = vmatpush1.msra.mxu0 0.0
      %572 = vmatprep.subr.mxu0 0.0
      %573 = vmatpush1.msra.mxu0 0.0
      %574 = vmatprep.subr.mxu0 0.0
      %575 = vmatpush1.msra.mxu0 0.0
      %576 = vmatprep.subr.mxu0 0.0
      %577 = vmatpush1.msra.mxu0 0.0
      %578 = vmatprep.subr.mxu0 0.0
      %579 = vmatpush1.msra.mxu0 0.0
      %580 = vmatprep.subr.mxu0 0.0
      %581 = vmatpush1.msra.mxu0 0.0
      %582 = vmatprep.subr.mxu0 0.0
      %583 = vmatpush1.msra.mxu0 0.0
      %584 = vmatprep.subr.mxu0 0.0
      %585 = vmatpush1.msra.mxu0 0.0
      %586 = vmatprep.subr.mxu0 0.0
      %587 = vmatpush1.msra.mxu0 0.0
      %588 = vmatprep.subr.mxu0 0.0
      %589 = vmatpush1.msra.mxu0 0.0
      %590 = vmatprep.subr.mxu0 0.0
      %591 = vmatpush1.msra.mxu0 0.0
      %592 = vmatprep.subr.mxu0 0.0
      %593 = vmatpush1.msra.mxu0 0.0
      %594 = vmatprep.subr.mxu0 0.0
      %595 = vmatpush1.msra.mxu0 0.0
      %596 = vmatprep.subr.mxu0 0.0
      %597 = vmatpush1.msra.mxu0 0.0
      %598 = vmatprep.subr.mxu0 0.0
      %599 = vmatpush1.msra.mxu0 0.0
      %600 = vmatprep.subr.mxu0 0.0
      %601 = vmatpush1.msra.mxu0 0.0
      %602 = vmatprep.subr.mxu0 0.0
      %603 = vmatpush1.msra.mxu0 0.0
      %604 = vmatprep.subr.mxu0 0.0
      %605 = vmatpush1.msra.mxu0 0.0
      %606 = vmatprep.subr.mxu0 0.0
      %607 = vmatpush1.msra.mxu0 0.0
      %608 = vmatprep.subr.mxu0 0.0
      %609 = vmatpush1.msra.mxu0 0.0
      %610 = vmatprep.subr.mxu0 0.0
      %611 = vmatpush1.msra.mxu0 0.0
      %612 = vmatprep.subr.mxu0 0.0
      %613 = vmatpush1.msra.mxu0 0.0
      %614 = vmatprep.subr.mxu0 0.0
      %615 = vmatpush1.msra.mxu0 0.0
      %616 = vmatprep.mubr.f32.mxu0 0.0
      %617 = vmatmul.mubr.f32.gmra.mrb[0].mxu0 %v550
      %v618 = vpop.f32.mrb[0].mxu0
      %v619 = vadd.f32 0.0, %v618
      %v620 = vpop.f32.mrb[0].mxu0
      %621 = vdwg.mxu0
      %v622 = vadd.f32 %v387, %v619
      %v623 = vld [vmem:[%s379 + $0x6] sm:$0x1]
      %v625 = vsel %vm398, %v623, 0
      %627 = vmatprep.subr.mxu0 0.0
      %628 = vmatpush1.msra.mxu0 %v388
      %629 = vmatprep.subr.mxu0 0.0
      %630 = vmatpush1.msra.mxu0 %v389
      %631 = vmatprep.subr.mxu0 0.0
      %632 = vmatpush1.msra.mxu0 %v390
      %633 = vmatprep.subr.mxu0 0.0
      %634 = vmatpush1.msra.mxu0 %v391
      %635 = vmatprep.subr.mxu0 0.0
      %636 = vmatpush1.msra.mxu0 %v392
      %637 = vmatprep.subr.mxu0 0.0
      %638 = vmatpush1.msra.mxu0 %v393
      %639 = vmatprep.subr.mxu0 0.0
      %640 = vmatpush1.msra.mxu0 %v394
      %641 = vmatprep.subr.mxu0 0.0
      %642 = vmatpush1.msra.mxu0 %v395
      %643 = vmatprep.subr.mxu0 0.0
      %644 = vmatpush1.msra.mxu0 %v396
      %645 = vmatprep.subr.mxu0 0.0
      %646 = vmatpush1.msra.mxu0 0.0
      %647 = vmatprep.subr.mxu0 0.0
      %648 = vmatpush1.msra.mxu0 0.0
      %649 = vmatprep.subr.mxu0 0.0
      %650 = vmatpush1.msra.mxu0 0.0
      %651 = vmatprep.subr.mxu0 0.0
      %652 = vmatpush1.msra.mxu0 0.0
      %653 = vmatprep.subr.mxu0 0.0
      %654 = vmatpush1.msra.mxu0 0.0
      %655 = vmatprep.subr.mxu0 0.0
      %656 = vmatpush1.msra.mxu0 0.0
      %657 = vmatprep.subr.mxu0 0.0
      %658 = vmatpush1.msra.mxu0 0.0
      %659 = vmatprep.subr.mxu0 0.0
      %660 = vmatpush1.msra.mxu0 0.0
      %661 = vmatprep.subr.mxu0 0.0
      %662 = vmatpush1.msra.mxu0 0.0
      %663 = vmatprep.subr.mxu0 0.0
      %664 = vmatpush1.msra.mxu0 0.0
      %665 = vmatprep.subr.mxu0 0.0
      %666 = vmatpush1.msra.mxu0 0.0
      %667 = vmatprep.subr.mxu0 0.0
      %668 = vmatpush1.msra.mxu0 0.0
      %669 = vmatprep.subr.mxu0 0.0
      %670 = vmatpush1.msra.mxu0 0.0
      %671 = vmatprep.subr.mxu0 0.0
      %672 = vmatpush1.msra.mxu0 0.0
      %673 = vmatprep.subr.mxu0 0.0
      %674 = vmatpush1.msra.mxu0 0.0
      %675 = vmatprep.subr.mxu0 0.0
      %676 = vmatpush1.msra.mxu0 0.0
      %677 = vmatprep.subr.mxu0 0.0
      %678 = vmatpush1.msra.mxu0 0.0
      %679 = vmatprep.subr.mxu0 0.0
      %680 = vmatpush1.msra.mxu0 0.0
      %681 = vmatprep.subr.mxu0 0.0
      %682 = vmatpush1.msra.mxu0 0.0
      %683 = vmatprep.subr.mxu0 0.0
      %684 = vmatpush1.msra.mxu0 0.0
      %685 = vmatprep.subr.mxu0 0.0
      %686 = vmatpush1.msra.mxu0 0.0
      %687 = vmatprep.subr.mxu0 0.0
      %688 = vmatpush1.msra.mxu0 0.0
      %689 = vmatprep.subr.mxu0 0.0
      %690 = vmatpush1.msra.mxu0 0.0
      %691 = vmatprep.mubr.f32.mxu0 0.0
      %692 = vmatmul.mubr.f32.gmra.mrb[0].mxu0 %v625
      %v693 = vpop.f32.mrb[0].mxu0
      %v694 = vadd.f32 0.0, %v693
      %v695 = vpop.f32.mrb[0].mxu0
      %696 = vdwg.mxu0
      %v697 = vadd.f32 %v387, %v694
      %v698 = vld [vmem:[%s379 + $0x8] sm:$0x1]
      %v700 = vsel %vm398, %v698, 0
      %702 = vmatprep.subr.mxu0 0.0
      %703 = vmatpush1.msra.mxu0 %v388
      %704 = vmatprep.subr.mxu0 0.0
      %705 = vmatpush1.msra.mxu0 %v389
      %706 = vmatprep.subr.mxu0 0.0
      %707 = vmatpush1.msra.mxu0 %v390
      %708 = vmatprep.subr.mxu0 0.0
      %709 = vmatpush1.msra.mxu0 %v391
      %710 = vmatprep.subr.mxu0 0.0
      %711 = vmatpush1.msra.mxu0 %v392
      %712 = vmatprep.subr.mxu0 0.0
      %713 = vmatpush1.msra.mxu0 %v393
      %714 = vmatprep.subr.mxu0 0.0
      %715 = vmatpush1.msra.mxu0 %v394
      %716 = vmatprep.subr.mxu0 0.0
      %717 = vmatpush1.msra.mxu0 %v395
      %718 = vmatprep.subr.mxu0 0.0
      %719 = vmatpush1.msra.mxu0 %v396
      %720 = vmatprep.subr.mxu0 0.0
      %721 = vmatpush1.msra.mxu0 0.0
      %722 = vmatprep.subr.mxu0 0.0
      %723 = vmatpush1.msra.mxu0 0.0
      %724 = vmatprep.subr.mxu0 0.0
      %725 = vmatpush1.msra.mxu0 0.0
      %726 = vmatprep.subr.mxu0 0.0
      %727 = vmatpush1.msra.mxu0 0.0
      %728 = vmatprep.subr.mxu0 0.0
      %729 = vmatpush1.msra.mxu0 0.0
      %730 = vmatprep.subr.mxu0 0.0
      %731 = vmatpush1.msra.mxu0 0.0
      %732 = vmatprep.subr.mxu0 0.0
      %733 = vmatpush1.msra.mxu0 0.0
      %734 = vmatprep.subr.mxu0 0.0
      %735 = vmatpush1.msra.mxu0 0.0
      %736 = vmatprep.subr.mxu0 0.0
      %737 = vmatpush1.msra.mxu0 0.0
      %738 = vmatprep.subr.mxu0 0.0
      %739 = vmatpush1.msra.mxu0 0.0
      %740 = vmatprep.subr.mxu0 0.0
      %741 = vmatpush1.msra.mxu0 0.0
      %742 = vmatprep.subr.mxu0 0.0
      %743 = vmatpush1.msra.mxu0 0.0
      %744 = vmatprep.subr.mxu0 0.0
      %745 = vmatpush1.msra.mxu0 0.0
      %746 = vmatprep.subr.mxu0 0.0
      %747 = vmatpush1.msra.mxu0 0.0
      %748 = vmatprep.subr.mxu0 0.0
      %749 = vmatpush1.msra.mxu0 0.0
      %750 = vmatprep.subr.mxu0 0.0
      %751 = vmatpush1.msra.mxu0 0.0
      %752 = vmatprep.subr.mxu0 0.0
      %753 = vmatpush1.msra.mxu0 0.0
      %754 = vmatprep.subr.mxu0 0.0
      %755 = vmatpush1.msra.mxu0 0.0
      %756 = vmatprep.subr.mxu0 0.0
      %757 = vmatpush1.msra.mxu0 0.0
      %758 = vmatprep.subr.mxu0 0.0
      %759 = vmatpush1.msra.mxu0 0.0
      %760 = vmatprep.subr.mxu0 0.0
      %761 = vmatpush1.msra.mxu0 0.0
      %762 = vmatprep.subr.mxu0 0.0
      %763 = vmatpush1.msra.mxu0 0.0
      %764 = vmatprep.subr.mxu0 0.0
      %765 = vmatpush1.msra.mxu0 0.0
      %766 = vmatprep.mubr.f32.mxu0 0.0
      %767 = vmatmul.mubr.f32.gmra.mrb[0].mxu0 %v700
      %v768 = vpop.f32.mrb[0].mxu0
      %v769 = vadd.f32 0.0, %v768
      %v770 = vpop.f32.mrb[0].mxu0
      %771 = vdwg.mxu0
      %v772 = vadd.f32 %v387, %v769
      %v773 = vld [vmem:[%s379 + $0xa] sm:$0x1]
      %v775 = vsel %vm398, %v773, 0
      %777 = vmatprep.subr.mxu0 0.0
      %778 = vmatpush1.msra.mxu0 %v388
      %779 = vmatprep.subr.mxu0 0.0
      %780 = vmatpush1.msra.mxu0 %v389
      %781 = vmatprep.subr.mxu0 0.0
      %782 = vmatpush1.msra.mxu0 %v390
      %783 = vmatprep.subr.mxu0 0.0
      %784 = vmatpush1.msra.mxu0 %v391
      %785 = vmatprep.subr.mxu0 0.0
      %786 = vmatpush1.msra.mxu0 %v392
      %787 = vmatprep.subr.mxu0 0.0
      %788 = vmatpush1.msra.mxu0 %v393
      %789 = vmatprep.subr.mxu0 0.0
      %790 = vmatpush1.msra.mxu0 %v394
      %791 = vmatprep.subr.mxu0 0.0
      %792 = vmatpush1.msra.mxu0 %v395
      %793 = vmatprep.subr.mxu0 0.0
      %794 = vmatpush1.msra.mxu0 %v396
      %795 = vmatprep.subr.mxu0 0.0
      %796 = vmatpush1.msra.mxu0 0.0
      %797 = vmatprep.subr.mxu0 0.0
      %798 = vmatpush1.msra.mxu0 0.0
      %799 = vmatprep.subr.mxu0 0.0
      %800 = vmatpush1.msra.mxu0 0.0
      %801 = vmatprep.subr.mxu0 0.0
      %802 = vmatpush1.msra.mxu0 0.0
      %803 = vmatprep.subr.mxu0 0.0
      %804 = vmatpush1.msra.mxu0 0.0
      %805 = vmatprep.subr.mxu0 0.0
      %806 = vmatpush1.msra.mxu0 0.0
      %807 = vmatprep.subr.mxu0 0.0
      %808 = vmatpush1.msra.mxu0 0.0
      %809 = vmatprep.subr.mxu0 0.0
      %810 = vmatpush1.msra.mxu0 0.0
      %811 = vmatprep.subr.mxu0 0.0
      %812 = vmatpush1.msra.mxu0 0.0
      %813 = vmatprep.subr.mxu0 0.0
      %814 = vmatpush1.msra.mxu0 0.0
      %815 = vmatprep.subr.mxu0 0.0
      %816 = vmatpush1.msra.mxu0 0.0
      %817 = vmatprep.subr.mxu0 0.0
      %818 = vmatpush1.msra.mxu0 0.0
      %819 = vmatprep.subr.mxu0 0.0
      %820 = vmatpush1.msra.mxu0 0.0
      %821 = vmatprep.subr.mxu0 0.0
      %822 = vmatpush1.msra.mxu0 0.0
      %823 = vmatprep.subr.mxu0 0.0
      %824 = vmatpush1.msra.mxu0 0.0
      %825 = vmatprep.subr.mxu0 0.0
      %826 = vmatpush1.msra.mxu0 0.0
      %827 = vmatprep.subr.mxu0 0.0
      %828 = vmatpush1.msra.mxu0 0.0
      %829 = vmatprep.subr.mxu0 0.0
      %830 = vmatpush1.msra.mxu0 0.0
      %831 = vmatprep.subr.mxu0 0.0
      %832 = vmatpush1.msra.mxu0 0.0
      %833 = vmatprep.subr.mxu0 0.0
      %834 = vmatpush1.msra.mxu0 0.0
      %835 = vmatprep.subr.mxu0 0.0
      %836 = vmatpush1.msra.mxu0 0.0
      %837 = vmatprep.subr.mxu0 0.0
      %838 = vmatpush1.msra.mxu0 0.0
      %839 = vmatprep.subr.mxu0 0.0
      %840 = vmatpush1.msra.mxu0 0.0
      %841 = vmatprep.mubr.f32.mxu0 0.0
      %842 = vmatmul.mubr.f32.gmra.mrb[0].mxu0 %v775
      %v843 = vpop.f32.mrb[0].mxu0
      %v844 = vadd.f32 0.0, %v843
      %v845 = vpop.f32.mrb[0].mxu0
      %846 = vdwg.mxu0
      %v847 = vadd.f32 %v387, %v844
      %s848 = scalar_lea.vmem %s1, 72
      %v849 = vld [vmem:[%s848] sm:$0xff]
      %v850 = vld [vmem:[%s848 + $0x8] sm:$0xff]
      %v851 = vld [vmem:[%s848 + $0x10] sm:$0xff]
      %v852 = vld [vmem:[%s848 + $0x18] sm:$0xff]
      %v853 = vld [vmem:[%s848 + $0x20] sm:$0xff]
      %v854 = vld [vmem:[%s848 + $0x28] sm:$0xff]
      %v855 = vld [vmem:[%s848 + $0x30] sm:$0xff]
      %v856 = vld [vmem:[%s848 + $0x38] sm:$0xff]
      %v857 = vld [vmem:[%s848 + $0x40] sm:$0xff]
      %v858 = vld [vmem:[%s379 + $0x1] sm:$0x1]
      %v860 = vsel %vm398, %v858, 0
      %862 = vmatprep.subr.mxu0 0.0
      %863 = vmatpush1.msra.mxu0 %v849
      %864 = vmatprep.subr.mxu0 0.0
      %865 = vmatpush1.msra.mxu0 %v850
      %866 = vmatprep.subr.mxu0 0.0
      %867 = vmatpush1.msra.mxu0 %v851
      %868 = vmatprep.subr.mxu0 0.0
      %869 = vmatpush1.msra.mxu0 %v852
      %870 = vmatprep.subr.mxu0 0.0
      %871 = vmatpush1.msra.mxu0 %v853
      %872 = vmatprep.subr.mxu0 0.0
      %873 = vmatpush1.msra.mxu0 %v854
      %874 = vmatprep.subr.mxu0 0.0
      %875 = vmatpush1.msra.mxu0 %v855
      %876 = vmatprep.subr.mxu0 0.0
      %877 = vmatpush1.msra.mxu0 %v856
      %878 = vmatprep.subr.mxu0 0.0
      %879 = vmatpush1.msra.mxu0 %v857
      %880 = vmatprep.subr.mxu0 0.0
      %881 = vmatpush1.msra.mxu0 0.0
      %882 = vmatprep.subr.mxu0 0.0
      %883 = vmatpush1.msra.mxu0 0.0
      %884 = vmatprep.subr.mxu0 0.0
      %885 = vmatpush1.msra.mxu0 0.0
      %886 = vmatprep.subr.mxu0 0.0
      %887 = vmatpush1.msra.mxu0 0.0
      %888 = vmatprep.subr.mxu0 0.0
      %889 = vmatpush1.msra.mxu0 0.0
      %890 = vmatprep.subr.mxu0 0.0
      %891 = vmatpush1.msra.mxu0 0.0
      %892 = vmatprep.subr.mxu0 0.0
      %893 = vmatpush1.msra.mxu0 0.0
      %894 = vmatprep.subr.mxu0 0.0
      %895 = vmatpush1.msra.mxu0 0.0
      %896 = vmatprep.subr.mxu0 0.0
      %897 = vmatpush1.msra.mxu0 0.0
      %898 = vmatprep.subr.mxu0 0.0
      %899 = vmatpush1.msra.mxu0 0.0
      %900 = vmatprep.subr.mxu0 0.0
      %901 = vmatpush1.msra.mxu0 0.0
      %902 = vmatprep.subr.mxu0 0.0
      %903 = vmatpush1.msra.mxu0 0.0
      %904 = vmatprep.subr.mxu0 0.0
      %905 = vmatpush1.msra.mxu0 0.0
      %906 = vmatprep.subr.mxu0 0.0
      %907 = vmatpush1.msra.mxu0 0.0
      %908 = vmatprep.subr.mxu0 0.0
      %909 = vmatpush1.msra.mxu0 0.0
      %910 = vmatprep.subr.mxu0 0.0
      %911 = vmatpush1.msra.mxu0 0.0
      %912 = vmatprep.subr.mxu0 0.0
      %913 = vmatpush1.msra.mxu0 0.0
      %914 = vmatprep.subr.mxu0 0.0
      %915 = vmatpush1.msra.mxu0 0.0
      %916 = vmatprep.subr.mxu0 0.0
      %917 = vmatpush1.msra.mxu0 0.0
      %918 = vmatprep.subr.mxu0 0.0
      %919 = vmatpush1.msra.mxu0 0.0
      %920 = vmatprep.subr.mxu0 0.0
      %921 = vmatpush1.msra.mxu0 0.0
      %922 = vmatprep.subr.mxu0 0.0
      %923 = vmatpush1.msra.mxu0 0.0
      %924 = vmatprep.subr.mxu0 0.0
      %925 = vmatpush1.msra.mxu0 0.0
      %926 = vmatprep.mubr.f32.mxu0 0.0
      %927 = vmatmul.mubr.f32.gmra.mrb[0].mxu0 %v860
      %v928 = vpop.f32.mrb[0].mxu0
      %v929 = vadd.f32 0.0, %v928
      %v930 = vpop.f32.mrb[0].mxu0
      %931 = vdwg.mxu0
      %v932 = vadd.f32 %v472, %v929
      %v933 = vld [vmem:[%s379 + $0x3] sm:$0x1]
      %v935 = vsel %vm398, %v933, 0
      %937 = vmatprep.subr.mxu0 0.0
      %938 = vmatpush1.msra.mxu0 %v849
      %939 = vmatprep.subr.mxu0 0.0
      %940 = vmatpush1.msra.mxu0 %v850
      %941 = vmatprep.subr.mxu0 0.0
      %942 = vmatpush1.msra.mxu0 %v851
      %943 = vmatprep.subr.mxu0 0.0
      %944 = vmatpush1.msra.mxu0 %v852
      %945 = vmatprep.subr.mxu0 0.0
      %946 = vmatpush1.msra.mxu0 %v853
      %947 = vmatprep.subr.mxu0 0.0
      %948 = vmatpush1.msra.mxu0 %v854
      %949 = vmatprep.subr.mxu0 0.0
      %950 = vmatpush1.msra.mxu0 %v855
      %951 = vmatprep.subr.mxu0 0.0
      %952 = vmatpush1.msra.mxu0 %v856
      %953 = vmatprep.subr.mxu0 0.0
      %954 = vmatpush1.msra.mxu0 %v857
      %955 = vmatprep.subr.mxu0 0.0
      %956 = vmatpush1.msra.mxu0 0.0
      %957 = vmatprep.subr.mxu0 0.0
      %958 = vmatpush1.msra.mxu0 0.0
      %959 = vmatprep.subr.mxu0 0.0
      %960 = vmatpush1.msra.mxu0 0.0
      %961 = vmatprep.subr.mxu0 0.0
      %962 = vmatpush1.msra.mxu0 0.0
      %963 = vmatprep.subr.mxu0 0.0
      %964 = vmatpush1.msra.mxu0 0.0
      %965 = vmatprep.subr.mxu0 0.0
      %966 = vmatpush1.msra.mxu0 0.0
      %967 = vmatprep.subr.mxu0 0.0
      %968 = vmatpush1.msra.mxu0 0.0
      %969 = vmatprep.subr.mxu0 0.0
      %970 = vmatpush1.msra.mxu0 0.0
      %971 = vmatprep.subr.mxu0 0.0
      %972 = vmatpush1.msra.mxu0 0.0
      %973 = vmatprep.subr.mxu0 0.0
      %974 = vmatpush1.msra.mxu0 0.0
      %975 = vmatprep.subr.mxu0 0.0
      %976 = vmatpush1.msra.mxu0 0.0
      %977 = vmatprep.subr.mxu0 0.0
      %978 = vmatpush1.msra.mxu0 0.0
      %979 = vmatprep.subr.mxu0 0.0
      %980 = vmatpush1.msra.mxu0 0.0
      %981 = vmatprep.subr.mxu0 0.0
      %982 = vmatpush1.msra.mxu0 0.0
      %983 = vmatprep.subr.mxu0 0.0
      %984 = vmatpush1.msra.mxu0 0.0
      %985 = vmatprep.subr.mxu0 0.0
      %986 = vmatpush1.msra.mxu0 0.0
      %987 = vmatprep.subr.mxu0 0.0
      %988 = vmatpush1.msra.mxu0 0.0
      %989 = vmatprep.subr.mxu0 0.0
      %990 = vmatpush1.msra.mxu0 0.0
      %991 = vmatprep.subr.mxu0 0.0
      %992 = vmatpush1.msra.mxu0 0.0
      %993 = vmatprep.subr.mxu0 0.0
      %994 = vmatpush1.msra.mxu0 0.0
      %995 = vmatprep.subr.mxu0 0.0
      %996 = vmatpush1.msra.mxu0 0.0
      %997 = vmatprep.subr.mxu0 0.0
      %998 = vmatpush1.msra.mxu0 0.0
      %999 = vmatprep.subr.mxu0 0.0
      %1000 = vmatpush1.msra.mxu0 0.0
      %1001 = vmatprep.mubr.f32.mxu0 0.0
      %1002 = vmatmul.mubr.f32.gmra.mrb[0].mxu0 %v935
      %v1003 = vpop.f32.mrb[0].mxu0
      %v1004 = vadd.f32 0.0, %v1003
      %v1005 = vpop.f32.mrb[0].mxu0
      %1006 = vdwg.mxu0
      %v1007 = vadd.f32 %v547, %v1004
      %v1008 = vld [vmem:[%s379 + $0x5] sm:$0x1]
      %v1010 = vsel %vm398, %v1008, 0
      %1012 = vmatprep.subr.mxu0 0.0
      %1013 = vmatpush1.msra.mxu0 %v849
      %1014 = vmatprep.subr.mxu0 0.0
      %1015 = vmatpush1.msra.mxu0 %v850
      %1016 = vmatprep.subr.mxu0 0.0
      %1017 = vmatpush1.msra.mxu0 %v851
      %1018 = vmatprep.subr.mxu0 0.0
      %1019 = vmatpush1.msra.mxu0 %v852
      %1020 = vmatprep.subr.mxu0 0.0
      %1021 = vmatpush1.msra.mxu0 %v853
      %1022 = vmatprep.subr.mxu0 0.0
      %1023 = vmatpush1.msra.mxu0 %v854
      %1024 = vmatprep.subr.mxu0 0.0
      %1025 = vmatpush1.msra.mxu0 %v855
      %1026 = vmatprep.subr.mxu0 0.0
      %1027 = vmatpush1.msra.mxu0 %v856
      %1028 = vmatprep.subr.mxu0 0.0
      %1029 = vmatpush1.msra.mxu0 %v857
      %1030 = vmatprep.subr.mxu0 0.0
      %1031 = vmatpush1.msra.mxu0 0.0
      %1032 = vmatprep.subr.mxu0 0.0
      %1033 = vmatpush1.msra.mxu0 0.0
      %1034 = vmatprep.subr.mxu0 0.0
      %1035 = vmatpush1.msra.mxu0 0.0
      %1036 = vmatprep.subr.mxu0 0.0
      %1037 = vmatpush1.msra.mxu0 0.0
      %1038 = vmatprep.subr.mxu0 0.0
      %1039 = vmatpush1.msra.mxu0 0.0
      %1040 = vmatprep.subr.mxu0 0.0
      %1041 = vmatpush1.msra.mxu0 0.0
      %1042 = vmatprep.subr.mxu0 0.0
      %1043 = vmatpush1.msra.mxu0 0.0
      %1044 = vmatprep.subr.mxu0 0.0
      %1045 = vmatpush1.msra.mxu0 0.0
      %1046 = vmatprep.subr.mxu0 0.0
      %1047 = vmatpush1.msra.mxu0 0.0
      %1048 = vmatprep.subr.mxu0 0.0
      %1049 = vmatpush1.msra.mxu0 0.0
      %1050 = vmatprep.subr.mxu0 0.0
      %1051 = vmatpush1.msra.mxu0 0.0
      %1052 = vmatprep.subr.mxu0 0.0
      %1053 = vmatpush1.msra.mxu0 0.0
      %1054 = vmatprep.subr.mxu0 0.0
      %1055 = vmatpush1.msra.mxu0 0.0
      %1056 = vmatprep.subr.mxu0 0.0
      %1057 = vmatpush1.msra.mxu0 0.0
      %1058 = vmatprep.subr.mxu0 0.0
      %1059 = vmatpush1.msra.mxu0 0.0
      %1060 = vmatprep.subr.mxu0 0.0
      %1061 = vmatpush1.msra.mxu0 0.0
      %1062 = vmatprep.subr.mxu0 0.0
      %1063 = vmatpush1.msra.mxu0 0.0
      %1064 = vmatprep.subr.mxu0 0.0
      %1065 = vmatpush1.msra.mxu0 0.0
      %1066 = vmatprep.subr.mxu0 0.0
      %1067 = vmatpush1.msra.mxu0 0.0
      %1068 = vmatprep.subr.mxu0 0.0
      %1069 = vmatpush1.msra.mxu0 0.0
      %1070 = vmatprep.subr.mxu0 0.0
      %1071 = vmatpush1.msra.mxu0 0.0
      %1072 = vmatprep.subr.mxu0 0.0
      %1073 = vmatpush1.msra.mxu0 0.0
      %1074 = vmatprep.subr.mxu0 0.0
      %1075 = vmatpush1.msra.mxu0 0.0
      %1076 = vmatprep.mubr.f32.mxu0 0.0
      %1077 = vmatmul.mubr.f32.gmra.mrb[0].mxu0 %v1010
      %v1078 = vpop.f32.mrb[0].mxu0
      %v1079 = vadd.f32 0.0, %v1078
      %v1080 = vpop.f32.mrb[0].mxu0
      %1081 = vdwg.mxu0
      %v1082 = vadd.f32 %v622, %v1079
      %v1083 = vld [vmem:[%s379 + $0x7] sm:$0x1]
      %v1085 = vsel %vm398, %v1083, 0
      %1087 = vmatprep.subr.mxu0 0.0
      %1088 = vmatpush1.msra.mxu0 %v849
      %1089 = vmatprep.subr.mxu0 0.0
      %1090 = vmatpush1.msra.mxu0 %v850
      %1091 = vmatprep.subr.mxu0 0.0
      %1092 = vmatpush1.msra.mxu0 %v851
      %1093 = vmatprep.subr.mxu0 0.0
      %1094 = vmatpush1.msra.mxu0 %v852
      %1095 = vmatprep.subr.mxu0 0.0
      %1096 = vmatpush1.msra.mxu0 %v853
      %1097 = vmatprep.subr.mxu0 0.0
      %1098 = vmatpush1.msra.mxu0 %v854
      %1099 = vmatprep.subr.mxu0 0.0
      %1100 = vmatpush1.msra.mxu0 %v855
      %1101 = vmatprep.subr.mxu0 0.0
      %1102 = vmatpush1.msra.mxu0 %v856
      %1103 = vmatprep.subr.mxu0 0.0
      %1104 = vmatpush1.msra.mxu0 %v857
      %1105 = vmatprep.subr.mxu0 0.0
      %1106 = vmatpush1.msra.mxu0 0.0
      %1107 = vmatprep.subr.mxu0 0.0
      %1108 = vmatpush1.msra.mxu0 0.0
      %1109 = vmatprep.subr.mxu0 0.0
      %1110 = vmatpush1.msra.mxu0 0.0
      %1111 = vmatprep.subr.mxu0 0.0
      %1112 = vmatpush1.msra.mxu0 0.0
      %1113 = vmatprep.subr.mxu0 0.0
      %1114 = vmatpush1.msra.mxu0 0.0
      %1115 = vmatprep.subr.mxu0 0.0
      %1116 = vmatpush1.msra.mxu0 0.0
      %1117 = vmatprep.subr.mxu0 0.0
      %1118 = vmatpush1.msra.mxu0 0.0
      %1119 = vmatprep.subr.mxu0 0.0
      %1120 = vmatpush1.msra.mxu0 0.0
      %1121 = vmatprep.subr.mxu0 0.0
      %1122 = vmatpush1.msra.mxu0 0.0
      %1123 = vmatprep.subr.mxu0 0.0
      %1124 = vmatpush1.msra.mxu0 0.0
      %1125 = vmatprep.subr.mxu0 0.0
      %1126 = vmatpush1.msra.mxu0 0.0
      %1127 = vmatprep.subr.mxu0 0.0
      %1128 = vmatpush1.msra.mxu0 0.0
      %1129 = vmatprep.subr.mxu0 0.0
      %1130 = vmatpush1.msra.mxu0 0.0
      %1131 = vmatprep.subr.mxu0 0.0
      %1132 = vmatpush1.msra.mxu0 0.0
      %1133 = vmatprep.subr.mxu0 0.0
      %1134 = vmatpush1.msra.mxu0 0.0
      %1135 = vmatprep.subr.mxu0 0.0
      %1136 = vmatpush1.msra.mxu0 0.0
      %1137 = vmatprep.subr.mxu0 0.0
      %1138 = vmatpush1.msra.mxu0 0.0
      %1139 = vmatprep.subr.mxu0 0.0
      %1140 = vmatpush1.msra.mxu0 0.0
      %1141 = vmatprep.subr.mxu0 0.0
      %1142 = vmatpush1.msra.mxu0 0.0
      %1143 = vmatprep.subr.mxu0 0.0
      %1144 = vmatpush1.msra.mxu0 0.0
      %1145 = vmatprep.subr.mxu0 0.0
      %1146 = vmatpush1.msra.mxu0 0.0
      %1147 = vmatprep.subr.mxu0 0.0
      %1148 = vmatpush1.msra.mxu0 0.0
      %1149 = vmatprep.subr.mxu0 0.0
      %1150 = vmatpush1.msra.mxu0 0.0
      %1151 = vmatprep.mubr.f32.mxu0 0.0
      %1152 = vmatmul.mubr.f32.gmra.mrb[0].mxu0 %v1085
      %v1153 = vpop.f32.mrb[0].mxu0
      %v1154 = vadd.f32 0.0, %v1153
      %v1155 = vpop.f32.mrb[0].mxu0
      %1156 = vdwg.mxu0
      %v1157 = vadd.f32 %v697, %v1154
      %v1158 = vld [vmem:[%s379 + $0x9] sm:$0x1]
      %v1160 = vsel %vm398, %v1158, 0
      %1162 = vmatprep.subr.mxu0 0.0
      %1163 = vmatpush1.msra.mxu0 %v849
      %1164 = vmatprep.subr.mxu0 0.0
      %1165 = vmatpush1.msra.mxu0 %v850
      %1166 = vmatprep.subr.mxu0 0.0
      %1167 = vmatpush1.msra.mxu0 %v851
      %1168 = vmatprep.subr.mxu0 0.0
      %1169 = vmatpush1.msra.mxu0 %v852
      %1170 = vmatprep.subr.mxu0 0.0
      %1171 = vmatpush1.msra.mxu0 %v853
      %1172 = vmatprep.subr.mxu0 0.0
      %1173 = vmatpush1.msra.mxu0 %v854
      %1174 = vmatprep.subr.mxu0 0.0
      %1175 = vmatpush1.msra.mxu0 %v855
      %1176 = vmatprep.subr.mxu0 0.0
      %1177 = vmatpush1.msra.mxu0 %v856
      %1178 = vmatprep.subr.mxu0 0.0
      %1179 = vmatpush1.msra.mxu0 %v857
      %1180 = vmatprep.subr.mxu0 0.0
      %1181 = vmatpush1.msra.mxu0 0.0
      %1182 = vmatprep.subr.mxu0 0.0
      %1183 = vmatpush1.msra.mxu0 0.0
      %1184 = vmatprep.subr.mxu0 0.0
      %1185 = vmatpush1.msra.mxu0 0.0
      %1186 = vmatprep.subr.mxu0 0.0
      %1187 = vmatpush1.msra.mxu0 0.0
      %1188 = vmatprep.subr.mxu0 0.0
      %1189 = vmatpush1.msra.mxu0 0.0
      %1190 = vmatprep.subr.mxu0 0.0
      %1191 = vmatpush1.msra.mxu0 0.0
      %1192 = vmatprep.subr.mxu0 0.0
      %1193 = vmatpush1.msra.mxu0 0.0
      %1194 = vmatprep.subr.mxu0 0.0
      %1195 = vmatpush1.msra.mxu0 0.0
      %1196 = vmatprep.subr.mxu0 0.0
      %1197 = vmatpush1.msra.mxu0 0.0
      %1198 = vmatprep.subr.mxu0 0.0
      %1199 = vmatpush1.msra.mxu0 0.0
      %1200 = vmatprep.subr.mxu0 0.0
      %1201 = vmatpush1.msra.mxu0 0.0
      %1202 = vmatprep.subr.mxu0 0.0
      %1203 = vmatpush1.msra.mxu0 0.0
      %1204 = vmatprep.subr.mxu0 0.0
      %1205 = vmatpush1.msra.mxu0 0.0
      %1206 = vmatprep.subr.mxu0 0.0
      %1207 = vmatpush1.msra.mxu0 0.0
      %1208 = vmatprep.subr.mxu0 0.0
      %1209 = vmatpush1.msra.mxu0 0.0
      %1210 = vmatprep.subr.mxu0 0.0
      %1211 = vmatpush1.msra.mxu0 0.0
      %1212 = vmatprep.subr.mxu0 0.0
      %1213 = vmatpush1.msra.mxu0 0.0
      %1214 = vmatprep.subr.mxu0 0.0
      %1215 = vmatpush1.msra.mxu0 0.0
      %1216 = vmatprep.subr.mxu0 0.0
      %1217 = vmatpush1.msra.mxu0 0.0
      %1218 = vmatprep.subr.mxu0 0.0
      %1219 = vmatpush1.msra.mxu0 0.0
      %1220 = vmatprep.subr.mxu0 0.0
      %1221 = vmatpush1.msra.mxu0 0.0
      %1222 = vmatprep.subr.mxu0 0.0
      %1223 = vmatpush1.msra.mxu0 0.0
      %1224 = vmatprep.subr.mxu0 0.0
      %1225 = vmatpush1.msra.mxu0 0.0
      %1226 = vmatprep.mubr.f32.mxu0 0.0
      %1227 = vmatmul.mubr.f32.gmra.mrb[0].mxu0 %v1160
      %v1228 = vpop.f32.mrb[0].mxu0
      %v1229 = vadd.f32 0.0, %v1228
      %v1230 = vpop.f32.mrb[0].mxu0
      %1231 = vdwg.mxu0
      %v1232 = vadd.f32 %v772, %v1229
      %v1233 = vld [vmem:[%s379 + $0xb] sm:$0x1]
      %v1235 = vsel %vm398, %v1233, 0
      %1237 = vmatprep.subr.mxu0 0.0
      %1238 = vmatpush1.msra.mxu0 %v849
      %1239 = vmatprep.subr.mxu0 0.0
      %1240 = vmatpush1.msra.mxu0 %v850
      %1241 = vmatprep.subr.mxu0 0.0
      %1242 = vmatpush1.msra.mxu0 %v851
      %1243 = vmatprep.subr.mxu0 0.0
      %1244 = vmatpush1.msra.mxu0 %v852
      %1245 = vmatprep.subr.mxu0 0.0
      %1246 = vmatpush1.msra.mxu0 %v853
      %1247 = vmatprep.subr.mxu0 0.0
      %1248 = vmatpush1.msra.mxu0 %v854
      %1249 = vmatprep.subr.mxu0 0.0
      %1250 = vmatpush1.msra.mxu0 %v855
      %1251 = vmatprep.subr.mxu0 0.0
      %1252 = vmatpush1.msra.mxu0 %v856
      %1253 = vmatprep.subr.mxu0 0.0
      %1254 = vmatpush1.msra.mxu0 %v857
      %1255 = vmatprep.subr.mxu0 0.0
      %1256 = vmatpush1.msra.mxu0 0.0
      %1257 = vmatprep.subr.mxu0 0.0
      %1258 = vmatpush1.msra.mxu0 0.0
      %1259 = vmatprep.subr.mxu0 0.0
      %1260 = vmatpush1.msra.mxu0 0.0
      %1261 = vmatprep.subr.mxu0 0.0
      %1262 = vmatpush1.msra.mxu0 0.0
      %1263 = vmatprep.subr.mxu0 0.0
      %1264 = vmatpush1.msra.mxu0 0.0
      %1265 = vmatprep.subr.mxu0 0.0
      %1266 = vmatpush1.msra.mxu0 0.0
      %1267 = vmatprep.subr.mxu0 0.0
      %1268 = vmatpush1.msra.mxu0 0.0
      %1269 = vmatprep.subr.mxu0 0.0
      %1270 = vmatpush1.msra.mxu0 0.0
      %1271 = vmatprep.subr.mxu0 0.0
      %1272 = vmatpush1.msra.mxu0 0.0
      %1273 = vmatprep.subr.mxu0 0.0
      %1274 = vmatpush1.msra.mxu0 0.0
      %1275 = vmatprep.subr.mxu0 0.0
      %1276 = vmatpush1.msra.mxu0 0.0
      %1277 = vmatprep.subr.mxu0 0.0
      %1278 = vmatpush1.msra.mxu0 0.0
      %1279 = vmatprep.subr.mxu0 0.0
      %1280 = vmatpush1.msra.mxu0 0.0
      %1281 = vmatprep.subr.mxu0 0.0
      %1282 = vmatpush1.msra.mxu0 0.0
      %1283 = vmatprep.subr.mxu0 0.0
      %1284 = vmatpush1.msra.mxu0 0.0
      %1285 = vmatprep.subr.mxu0 0.0
      %1286 = vmatpush1.msra.mxu0 0.0
      %1287 = vmatprep.subr.mxu0 0.0
      %1288 = vmatpush1.msra.mxu0 0.0
      %1289 = vmatprep.subr.mxu0 0.0
      %1290 = vmatpush1.msra.mxu0 0.0
      %1291 = vmatprep.subr.mxu0 0.0
      %1292 = vmatpush1.msra.mxu0 0.0
      %1293 = vmatprep.subr.mxu0 0.0
      %1294 = vmatpush1.msra.mxu0 0.0
      %1295 = vmatprep.subr.mxu0 0.0
      %1296 = vmatpush1.msra.mxu0 0.0
      %1297 = vmatprep.subr.mxu0 0.0
      %1298 = vmatpush1.msra.mxu0 0.0
      %1299 = vmatprep.subr.mxu0 0.0
      %1300 = vmatpush1.msra.mxu0 0.0
      %1301 = vmatprep.mubr.f32.mxu0 0.0
      %1302 = vmatmul.mubr.f32.gmra.mrb[0].mxu0 %v1235
      %v1303 = vpop.f32.mrb[0].mxu0
      %v1304 = vadd.f32 0.0, %v1303
      %v1305 = vpop.f32.mrb[0].mxu0
      %1306 = vdwg.mxu0
      %v1307 = vadd.f32 %v847, %v1304
      %s1308 = scalar_lea.vmem %s1, 144
      %v1309 = vld [vmem:[%s1308] sm:$0xff]
      %v1310 = vld [vmem:[%s1308 + $0x8] sm:$0xff]
      %v1311 = vld [vmem:[%s1308 + $0x10] sm:$0xff]
      %v1312 = vld [vmem:[%s1308 + $0x18] sm:$0xff]
      %v1313 = vld [vmem:[%s1308 + $0x20] sm:$0xff]
      %v1314 = vld [vmem:[%s1308 + $0x28] sm:$0xff]
      %v1315 = vld [vmem:[%s1308 + $0x30] sm:$0xff]
      %v1316 = vld [vmem:[%s1308 + $0x38] sm:$0xff]
      %v1317 = vld [vmem:[%s1308 + $0x40] sm:$0xff]
      %1318 = vmatprep.subr.mxu0 0.0
      %1319 = vmatpush1.msra.mxu0 %v1309
      %1320 = vmatprep.subr.mxu0 0.0
      %1321 = vmatpush1.msra.mxu0 %v1310
      %1322 = vmatprep.subr.mxu0 0.0
      %1323 = vmatpush1.msra.mxu0 %v1311
      %1324 = vmatprep.subr.mxu0 0.0
      %1325 = vmatpush1.msra.mxu0 %v1312
      %1326 = vmatprep.subr.mxu0 0.0
      %1327 = vmatpush1.msra.mxu0 %v1313
      %1328 = vmatprep.subr.mxu0 0.0
      %1329 = vmatpush1.msra.mxu0 %v1314
      %1330 = vmatprep.subr.mxu0 0.0
      %1331 = vmatpush1.msra.mxu0 %v1315
      %1332 = vmatprep.subr.mxu0 0.0
      %1333 = vmatpush1.msra.mxu0 %v1316
      %1334 = vmatprep.subr.mxu0 0.0
      %1335 = vmatpush1.msra.mxu0 %v1317
      %1336 = vmatprep.subr.mxu0 0.0
      %1337 = vmatpush1.msra.mxu0 0.0
      %1338 = vmatprep.subr.mxu0 0.0
      %1339 = vmatpush1.msra.mxu0 0.0
      %1340 = vmatprep.subr.mxu0 0.0
      %1341 = vmatpush1.msra.mxu0 0.0
      %1342 = vmatprep.subr.mxu0 0.0
      %1343 = vmatpush1.msra.mxu0 0.0
      %1344 = vmatprep.subr.mxu0 0.0
      %1345 = vmatpush1.msra.mxu0 0.0
      %1346 = vmatprep.subr.mxu0 0.0
      %1347 = vmatpush1.msra.mxu0 0.0
      %1348 = vmatprep.subr.mxu0 0.0
      %1349 = vmatpush1.msra.mxu0 0.0
      %1350 = vmatprep.subr.mxu0 0.0
      %1351 = vmatpush1.msra.mxu0 0.0
      %1352 = vmatprep.subr.mxu0 0.0
      %1353 = vmatpush1.msra.mxu0 0.0
      %1354 = vmatprep.subr.mxu0 0.0
      %1355 = vmatpush1.msra.mxu0 0.0
      %1356 = vmatprep.subr.mxu0 0.0
      %1357 = vmatpush1.msra.mxu0 0.0
      %1358 = vmatprep.subr.mxu0 0.0
      %1359 = vmatpush1.msra.mxu0 0.0
      %1360 = vmatprep.subr.mxu0 0.0
      %1361 = vmatpush1.msra.mxu0 0.0
      %1362 = vmatprep.subr.mxu0 0.0
      %1363 = vmatpush1.msra.mxu0 0.0
      %1364 = vmatprep.subr.mxu0 0.0
      %1365 = vmatpush1.msra.mxu0 0.0
      %1366 = vmatprep.subr.mxu0 0.0
      %1367 = vmatpush1.msra.mxu0 0.0
      %1368 = vmatprep.subr.mxu0 0.0
      %1369 = vmatpush1.msra.mxu0 0.0
      %1370 = vmatprep.subr.mxu0 0.0
      %1371 = vmatpush1.msra.mxu0 0.0
      %1372 = vmatprep.subr.mxu0 0.0
      %1373 = vmatpush1.msra.mxu0 0.0
      %1374 = vmatprep.subr.mxu0 0.0
      %1375 = vmatpush1.msra.mxu0 0.0
      %1376 = vmatprep.subr.mxu0 0.0
      %1377 = vmatpush1.msra.mxu0 0.0
      %1378 = vmatprep.subr.mxu0 0.0
      %1379 = vmatpush1.msra.mxu0 0.0
      %1380 = vmatprep.subr.mxu0 0.0
      %1381 = vmatpush1.msra.mxu0 0.0
      %1382 = vmatprep.mubr.f32.mxu0 0.0
      %1383 = vmatmul.mubr.f32.gmra.mrb[0].mxu0 %v475
      %v1384 = vpop.f32.mrb[0].mxu0
      %v1385 = vadd.f32 0.0, %v1384
      %v1386 = vpop.f32.mrb[0].mxu0
      %1387 = vdwg.mxu0
      %v1388 = vadd.f32 %v932, %v1385
      %1389 = vmatprep.subr.mxu0 0.0
      %1390 = vmatpush1.msra.mxu0 %v1309
      %1391 = vmatprep.subr.mxu0 0.0
      %1392 = vmatpush1.msra.mxu0 %v1310
      %1393 = vmatprep.subr.mxu0 0.0
      %1394 = vmatpush1.msra.mxu0 %v1311
      %1395 = vmatprep.subr.mxu0 0.0
      %1396 = vmatpush1.msra.mxu0 %v1312
      %1397 = vmatprep.subr.mxu0 0.0
      %1398 = vmatpush1.msra.mxu0 %v1313
      %1399 = vmatprep.subr.mxu0 0.0
      %1400 = vmatpush1.msra.mxu0 %v1314
      %1401 = vmatprep.subr.mxu0 0.0
      %1402 = vmatpush1.msra.mxu0 %v1315
      %1403 = vmatprep.subr.mxu0 0.0
      %1404 = vmatpush1.msra.mxu0 %v1316
      %1405 = vmatprep.subr.mxu0 0.0
      %1406 = vmatpush1.msra.mxu0 %v1317
      %1407 = vmatprep.subr.mxu0 0.0
      %1408 = vmatpush1.msra.mxu0 0.0
      %1409 = vmatprep.subr.mxu0 0.0
      %1410 = vmatpush1.msra.mxu0 0.0
      %1411 = vmatprep.subr.mxu0 0.0
      %1412 = vmatpush1.msra.mxu0 0.0
      %1413 = vmatprep.subr.mxu0 0.0
      %1414 = vmatpush1.msra.mxu0 0.0
      %1415 = vmatprep.subr.mxu0 0.0
      %1416 = vmatpush1.msra.mxu0 0.0
      %1417 = vmatprep.subr.mxu0 0.0
      %1418 = vmatpush1.msra.mxu0 0.0
      %1419 = vmatprep.subr.mxu0 0.0
      %1420 = vmatpush1.msra.mxu0 0.0
      %1421 = vmatprep.subr.mxu0 0.0
      %1422 = vmatpush1.msra.mxu0 0.0
      %1423 = vmatprep.subr.mxu0 0.0
      %1424 = vmatpush1.msra.mxu0 0.0
      %1425 = vmatprep.subr.mxu0 0.0
      %1426 = vmatpush1.msra.mxu0 0.0
      %1427 = vmatprep.subr.mxu0 0.0
      %1428 = vmatpush1.msra.mxu0 0.0
      %1429 = vmatprep.subr.mxu0 0.0
      %1430 = vmatpush1.msra.mxu0 0.0
      %1431 = vmatprep.subr.mxu0 0.0
      %1432 = vmatpush1.msra.mxu0 0.0
      %1433 = vmatprep.subr.mxu0 0.0
      %1434 = vmatpush1.msra.mxu0 0.0
      %1435 = vmatprep.subr.mxu0 0.0
      %1436 = vmatpush1.msra.mxu0 0.0
      %1437 = vmatprep.subr.mxu0 0.0
      %1438 = vmatpush1.msra.mxu0 0.0
      %1439 = vmatprep.subr.mxu0 0.0
      %1440 = vmatpush1.msra.mxu0 0.0
      %1441 = vmatprep.subr.mxu0 0.0
      %1442 = vmatpush1.msra.mxu0 0.0
      %1443 = vmatprep.subr.mxu0 0.0
      %1444 = vmatpush1.msra.mxu0 0.0
      %1445 = vmatprep.subr.mxu0 0.0
      %1446 = vmatpush1.msra.mxu0 0.0
      %1447 = vmatprep.subr.mxu0 0.0
      %1448 = vmatpush1.msra.mxu0 0.0
      %1449 = vmatprep.subr.mxu0 0.0
      %1450 = vmatpush1.msra.mxu0 0.0
      %1451 = vmatprep.subr.mxu0 0.0
      %1452 = vmatpush1.msra.mxu0 0.0
      %1453 = vmatprep.mubr.f32.mxu0 0.0
      %1454 = vmatmul.mubr.f32.gmra.mrb[0].mxu0 %v550
      %v1455 = vpop.f32.mrb[0].mxu0
      %v1456 = vadd.f32 0.0, %v1455
      %v1457 = vpop.f32.mrb[0].mxu0
      %1458 = vdwg.mxu0
      %v1459 = vadd.f32 %v1007, %v1456
      %1460 = vmatprep.subr.mxu0 0.0
      %1461 = vmatpush1.msra.mxu0 %v1309
      %1462 = vmatprep.subr.mxu0 0.0
      %1463 = vmatpush1.msra.mxu0 %v1310
      %1464 = vmatprep.subr.mxu0 0.0
      %1465 = vmatpush1.msra.mxu0 %v1311
      %1466 = vmatprep.subr.mxu0 0.0
      %1467 = vmatpush1.msra.mxu0 %v1312
      %1468 = vmatprep.subr.mxu0 0.0
      %1469 = vmatpush1.msra.mxu0 %v1313
      %1470 = vmatprep.subr.mxu0 0.0
      %1471 = vmatpush1.msra.mxu0 %v1314
      %1472 = vmatprep.subr.mxu0 0.0
      %1473 = vmatpush1.msra.mxu0 %v1315
      %1474 = vmatprep.subr.mxu0 0.0
      %1475 = vmatpush1.msra.mxu0 %v1316
      %1476 = vmatprep.subr.mxu0 0.0
      %1477 = vmatpush1.msra.mxu0 %v1317
      %1478 = vmatprep.subr.mxu0 0.0
      %1479 = vmatpush1.msra.mxu0 0.0
      %1480 = vmatprep.subr.mxu0 0.0
      %1481 = vmatpush1.msra.mxu0 0.0
      %1482 = vmatprep.subr.mxu0 0.0
      %1483 = vmatpush1.msra.mxu0 0.0
      %1484 = vmatprep.subr.mxu0 0.0
      %1485 = vmatpush1.msra.mxu0 0.0
      %1486 = vmatprep.subr.mxu0 0.0
      %1487 = vmatpush1.msra.mxu0 0.0
      %1488 = vmatprep.subr.mxu0 0.0
      %1489 = vmatpush1.msra.mxu0 0.0
      %1490 = vmatprep.subr.mxu0 0.0
      %1491 = vmatpush1.msra.mxu0 0.0
      %1492 = vmatprep.subr.mxu0 0.0
      %1493 = vmatpush1.msra.mxu0 0.0
      %1494 = vmatprep.subr.mxu0 0.0
      %1495 = vmatpush1.msra.mxu0 0.0
      %1496 = vmatprep.subr.mxu0 0.0
      %1497 = vmatpush1.msra.mxu0 0.0
      %1498 = vmatprep.subr.mxu0 0.0
      %1499 = vmatpush1.msra.mxu0 0.0
      %1500 = vmatprep.subr.mxu0 0.0
      %1501 = vmatpush1.msra.mxu0 0.0
      %1502 = vmatprep.subr.mxu0 0.0
      %1503 = vmatpush1.msra.mxu0 0.0
      %1504 = vmatprep.subr.mxu0 0.0
      %1505 = vmatpush1.msra.mxu0 0.0
      %1506 = vmatprep.subr.mxu0 0.0
      %1507 = vmatpush1.msra.mxu0 0.0
      %1508 = vmatprep.subr.mxu0 0.0
      %1509 = vmatpush1.msra.mxu0 0.0
      %1510 = vmatprep.subr.mxu0 0.0
      %1511 = vmatpush1.msra.mxu0 0.0
      %1512 = vmatprep.subr.mxu0 0.0
      %1513 = vmatpush1.msra.mxu0 0.0
      %1514 = vmatprep.subr.mxu0 0.0
      %1515 = vmatpush1.msra.mxu0 0.0
      %1516 = vmatprep.subr.mxu0 0.0
      %1517 = vmatpush1.msra.mxu0 0.0
      %1518 = vmatprep.subr.mxu0 0.0
      %1519 = vmatpush1.msra.mxu0 0.0
      %1520 = vmatprep.subr.mxu0 0.0
      %1521 = vmatpush1.msra.mxu0 0.0
      %1522 = vmatprep.subr.mxu0 0.0
      %1523 = vmatpush1.msra.mxu0 0.0
      %1524 = vmatprep.mubr.f32.mxu0 0.0
      %1525 = vmatmul.mubr.f32.gmra.mrb[0].mxu0 %v625
      %v1526 = vpop.f32.mrb[0].mxu0
      %v1527 = vadd.f32 0.0, %v1526
      %v1528 = vpop.f32.mrb[0].mxu0
      %1529 = vdwg.mxu0
      %v1530 = vadd.f32 %v1082, %v1527
      %1531 = vmatprep.subr.mxu0 0.0
      %1532 = vmatpush1.msra.mxu0 %v1309
      %1533 = vmatprep.subr.mxu0 0.0
      %1534 = vmatpush1.msra.mxu0 %v1310
      %1535 = vmatprep.subr.mxu0 0.0
      %1536 = vmatpush1.msra.mxu0 %v1311
      %1537 = vmatprep.subr.mxu0 0.0
      %1538 = vmatpush1.msra.mxu0 %v1312
      %1539 = vmatprep.subr.mxu0 0.0
      %1540 = vmatpush1.msra.mxu0 %v1313
      %1541 = vmatprep.subr.mxu0 0.0
      %1542 = vmatpush1.msra.mxu0 %v1314
      %1543 = vmatprep.subr.mxu0 0.0
      %1544 = vmatpush1.msra.mxu0 %v1315
      %1545 = vmatprep.subr.mxu0 0.0
      %1546 = vmatpush1.msra.mxu0 %v1316
      %1547 = vmatprep.subr.mxu0 0.0
      %1548 = vmatpush1.msra.mxu0 %v1317
      %1549 = vmatprep.subr.mxu0 0.0
      %1550 = vmatpush1.msra.mxu0 0.0
      %1551 = vmatprep.subr.mxu0 0.0
      %1552 = vmatpush1.msra.mxu0 0.0
      %1553 = vmatprep.subr.mxu0 0.0
      %1554 = vmatpush1.msra.mxu0 0.0
      %1555 = vmatprep.subr.mxu0 0.0
      %1556 = vmatpush1.msra.mxu0 0.0
      %1557 = vmatprep.subr.mxu0 0.0
      %1558 = vmatpush1.msra.mxu0 0.0
      %1559 = vmatprep.subr.mxu0 0.0
      %1560 = vmatpush1.msra.mxu0 0.0
      %1561 = vmatprep.subr.mxu0 0.0
      %1562 = vmatpush1.msra.mxu0 0.0
      %1563 = vmatprep.subr.mxu0 0.0
      %1564 = vmatpush1.msra.mxu0 0.0
      %1565 = vmatprep.subr.mxu0 0.0
      %1566 = vmatpush1.msra.mxu0 0.0
      %1567 = vmatprep.subr.mxu0 0.0
      %1568 = vmatpush1.msra.mxu0 0.0
      %1569 = vmatprep.subr.mxu0 0.0
      %1570 = vmatpush1.msra.mxu0 0.0
      %1571 = vmatprep.subr.mxu0 0.0
      %1572 = vmatpush1.msra.mxu0 0.0
      %1573 = vmatprep.subr.mxu0 0.0
      %1574 = vmatpush1.msra.mxu0 0.0
      %1575 = vmatprep.subr.mxu0 0.0
      %1576 = vmatpush1.msra.mxu0 0.0
      %1577 = vmatprep.subr.mxu0 0.0
      %1578 = vmatpush1.msra.mxu0 0.0
      %1579 = vmatprep.subr.mxu0 0.0
      %1580 = vmatpush1.msra.mxu0 0.0
      %1581 = vmatprep.subr.mxu0 0.0
      %1582 = vmatpush1.msra.mxu0 0.0
      %1583 = vmatprep.subr.mxu0 0.0
      %1584 = vmatpush1.msra.mxu0 0.0
      %1585 = vmatprep.subr.mxu0 0.0
      %1586 = vmatpush1.msra.mxu0 0.0
      %1587 = vmatprep.subr.mxu0 0.0
      %1588 = vmatpush1.msra.mxu0 0.0
      %1589 = vmatprep.subr.mxu0 0.0
      %1590 = vmatpush1.msra.mxu0 0.0
      %1591 = vmatprep.subr.mxu0 0.0
      %1592 = vmatpush1.msra.mxu0 0.0
      %1593 = vmatprep.subr.mxu0 0.0
      %1594 = vmatpush1.msra.mxu0 0.0
      %1595 = vmatprep.mubr.f32.mxu0 0.0
      %1596 = vmatmul.mubr.f32.gmra.mrb[0].mxu0 %v700
      %v1597 = vpop.f32.mrb[0].mxu0
      %v1598 = vadd.f32 0.0, %v1597
      %v1599 = vpop.f32.mrb[0].mxu0
      %1600 = vdwg.mxu0
      %v1601 = vadd.f32 %v1157, %v1598
      %1602 = vmatprep.subr.mxu0 0.0
      %1603 = vmatpush1.msra.mxu0 %v1309
      %1604 = vmatprep.subr.mxu0 0.0
      %1605 = vmatpush1.msra.mxu0 %v1310
      %1606 = vmatprep.subr.mxu0 0.0
      %1607 = vmatpush1.msra.mxu0 %v1311
      %1608 = vmatprep.subr.mxu0 0.0
      %1609 = vmatpush1.msra.mxu0 %v1312
      %1610 = vmatprep.subr.mxu0 0.0
      %1611 = vmatpush1.msra.mxu0 %v1313
      %1612 = vmatprep.subr.mxu0 0.0
      %1613 = vmatpush1.msra.mxu0 %v1314
      %1614 = vmatprep.subr.mxu0 0.0
      %1615 = vmatpush1.msra.mxu0 %v1315
      %1616 = vmatprep.subr.mxu0 0.0
      %1617 = vmatpush1.msra.mxu0 %v1316
      %1618 = vmatprep.subr.mxu0 0.0
      %1619 = vmatpush1.msra.mxu0 %v1317
      %1620 = vmatprep.subr.mxu0 0.0
      %1621 = vmatpush1.msra.mxu0 0.0
      %1622 = vmatprep.subr.mxu0 0.0
      %1623 = vmatpush1.msra.mxu0 0.0
      %1624 = vmatprep.subr.mxu0 0.0
      %1625 = vmatpush1.msra.mxu0 0.0
      %1626 = vmatprep.subr.mxu0 0.0
      %1627 = vmatpush1.msra.mxu0 0.0
      %1628 = vmatprep.subr.mxu0 0.0
      %1629 = vmatpush1.msra.mxu0 0.0
      %1630 = vmatprep.subr.mxu0 0.0
      %1631 = vmatpush1.msra.mxu0 0.0
      %1632 = vmatprep.subr.mxu0 0.0
      %1633 = vmatpush1.msra.mxu0 0.0
      %1634 = vmatprep.subr.mxu0 0.0
      %1635 = vmatpush1.msra.mxu0 0.0
      %1636 = vmatprep.subr.mxu0 0.0
      %1637 = vmatpush1.msra.mxu0 0.0
      %1638 = vmatprep.subr.mxu0 0.0
      %1639 = vmatpush1.msra.mxu0 0.0
      %1640 = vmatprep.subr.mxu0 0.0
      %1641 = vmatpush1.msra.mxu0 0.0
      %1642 = vmatprep.subr.mxu0 0.0
      %1643 = vmatpush1.msra.mxu0 0.0
      %1644 = vmatprep.subr.mxu0 0.0
      %1645 = vmatpush1.msra.mxu0 0.0
      %1646 = vmatprep.subr.mxu0 0.0
      %1647 = vmatpush1.msra.mxu0 0.0
      %1648 = vmatprep.subr.mxu0 0.0
      %1649 = vmatpush1.msra.mxu0 0.0
      %1650 = vmatprep.subr.mxu0 0.0
      %1651 = vmatpush1.msra.mxu0 0.0
      %1652 = vmatprep.subr.mxu0 0.0
      %1653 = vmatpush1.msra.mxu0 0.0
      %1654 = vmatprep.subr.mxu0 0.0
      %1655 = vmatpush1.msra.mxu0 0.0
      %1656 = vmatprep.subr.mxu0 0.0
      %1657 = vmatpush1.msra.mxu0 0.0
      %1658 = vmatprep.subr.mxu0 0.0
      %1659 = vmatpush1.msra.mxu0 0.0
      %1660 = vmatprep.subr.mxu0 0.0
      %1661 = vmatpush1.msra.mxu0 0.0
      %1662 = vmatprep.subr.mxu0 0.0
      %1663 = vmatpush1.msra.mxu0 0.0
      %1664 = vmatprep.subr.mxu0 0.0
      %1665 = vmatpush1.msra.mxu0 0.0
      %1666 = vmatprep.mubr.f32.mxu0 0.0
      %1667 = vmatmul.mubr.f32.gmra.mrb[0].mxu0 %v775
      %v1668 = vpop.f32.mrb[0].mxu0
      %v1669 = vadd.f32 0.0, %v1668
      %v1670 = vpop.f32.mrb[0].mxu0
      %1671 = vdwg.mxu0
      %v1672 = vadd.f32 %v1232, %v1669
      %v1673 = vld [vmem:[%s379 + $0xc] sm:$0x1]
      %v1675 = vsel %vm398, %v1673, 0
      %1677 = vmatprep.subr.mxu0 0.0
      %1678 = vmatpush1.msra.mxu0 %v1309
      %1679 = vmatprep.subr.mxu0 0.0
      %1680 = vmatpush1.msra.mxu0 %v1310
      %1681 = vmatprep.subr.mxu0 0.0
      %1682 = vmatpush1.msra.mxu0 %v1311
      %1683 = vmatprep.subr.mxu0 0.0
      %1684 = vmatpush1.msra.mxu0 %v1312
      %1685 = vmatprep.subr.mxu0 0.0
      %1686 = vmatpush1.msra.mxu0 %v1313
      %1687 = vmatprep.subr.mxu0 0.0
      %1688 = vmatpush1.msra.mxu0 %v1314
      %1689 = vmatprep.subr.mxu0 0.0
      %1690 = vmatpush1.msra.mxu0 %v1315
      %1691 = vmatprep.subr.mxu0 0.0
      %1692 = vmatpush1.msra.mxu0 %v1316
      %1693 = vmatprep.subr.mxu0 0.0
      %1694 = vmatpush1.msra.mxu0 %v1317
      %1695 = vmatprep.subr.mxu0 0.0
      %1696 = vmatpush1.msra.mxu0 0.0
      %1697 = vmatprep.subr.mxu0 0.0
      %1698 = vmatpush1.msra.mxu0 0.0
      %1699 = vmatprep.subr.mxu0 0.0
      %1700 = vmatpush1.msra.mxu0 0.0
      %1701 = vmatprep.subr.mxu0 0.0
      %1702 = vmatpush1.msra.mxu0 0.0
      %1703 = vmatprep.subr.mxu0 0.0
      %1704 = vmatpush1.msra.mxu0 0.0
      %1705 = vmatprep.subr.mxu0 0.0
      %1706 = vmatpush1.msra.mxu0 0.0
      %1707 = vmatprep.subr.mxu0 0.0
      %1708 = vmatpush1.msra.mxu0 0.0
      %1709 = vmatprep.subr.mxu0 0.0
      %1710 = vmatpush1.msra.mxu0 0.0
      %1711 = vmatprep.subr.mxu0 0.0
      %1712 = vmatpush1.msra.mxu0 0.0
      %1713 = vmatprep.subr.mxu0 0.0
      %1714 = vmatpush1.msra.mxu0 0.0
      %1715 = vmatprep.subr.mxu0 0.0
      %1716 = vmatpush1.msra.mxu0 0.0
      %1717 = vmatprep.subr.mxu0 0.0
      %1718 = vmatpush1.msra.mxu0 0.0
      %1719 = vmatprep.subr.mxu0 0.0
      %1720 = vmatpush1.msra.mxu0 0.0
      %1721 = vmatprep.subr.mxu0 0.0
      %1722 = vmatpush1.msra.mxu0 0.0
      %1723 = vmatprep.subr.mxu0 0.0
      %1724 = vmatpush1.msra.mxu0 0.0
      %1725 = vmatprep.subr.mxu0 0.0
      %1726 = vmatpush1.msra.mxu0 0.0
      %1727 = vmatprep.subr.mxu0 0.0
      %1728 = vmatpush1.msra.mxu0 0.0
      %1729 = vmatprep.subr.mxu0 0.0
      %1730 = vmatpush1.msra.mxu0 0.0
      %1731 = vmatprep.subr.mxu0 0.0
      %1732 = vmatpush1.msra.mxu0 0.0
      %1733 = vmatprep.subr.mxu0 0.0
      %1734 = vmatpush1.msra.mxu0 0.0
      %1735 = vmatprep.subr.mxu0 0.0
      %1736 = vmatpush1.msra.mxu0 0.0
      %1737 = vmatprep.subr.mxu0 0.0
      %1738 = vmatpush1.msra.mxu0 0.0
      %1739 = vmatprep.subr.mxu0 0.0
      %1740 = vmatpush1.msra.mxu0 0.0
      %1741 = vmatprep.mubr.f32.mxu0 0.0
      %1742 = vmatmul.mubr.f32.gmra.mrb[0].mxu0 %v1675
      %v1743 = vpop.f32.mrb[0].mxu0
      %v1744 = vadd.f32 0.0, %v1743
      %v1745 = vpop.f32.mrb[0].mxu0
      %1746 = vdwg.mxu0
      %v1747 = vadd.f32 %v1307, %v1744
      %s1748 = scalar_lea.vmem %s1, 216
      %v1749 = vld [vmem:[%s1748] sm:$0xff]
      %v1750 = vld [vmem:[%s1748 + $0x8] sm:$0xff]
      %v1751 = vld [vmem:[%s1748 + $0x10] sm:$0xff]
      %v1752 = vld [vmem:[%s1748 + $0x18] sm:$0xff]
      %v1753 = vld [vmem:[%s1748 + $0x20] sm:$0xff]
      %v1754 = vld [vmem:[%s1748 + $0x28] sm:$0xff]
      %v1755 = vld [vmem:[%s1748 + $0x30] sm:$0xff]
      %v1756 = vld [vmem:[%s1748 + $0x38] sm:$0xff]
      %v1757 = vld [vmem:[%s1748 + $0x40] sm:$0xff]
      %1758 = vmatprep.subr.mxu0 0.0
      %1759 = vmatpush1.msra.mxu0 %v1749
      %1760 = vmatprep.subr.mxu0 0.0
      %1761 = vmatpush1.msra.mxu0 %v1750
      %1762 = vmatprep.subr.mxu0 0.0
      %1763 = vmatpush1.msra.mxu0 %v1751
      %1764 = vmatprep.subr.mxu0 0.0
      %1765 = vmatpush1.msra.mxu0 %v1752
      %1766 = vmatprep.subr.mxu0 0.0
      %1767 = vmatpush1.msra.mxu0 %v1753
      %1768 = vmatprep.subr.mxu0 0.0
      %1769 = vmatpush1.msra.mxu0 %v1754
      %1770 = vmatprep.subr.mxu0 0.0
      %1771 = vmatpush1.msra.mxu0 %v1755
      %1772 = vmatprep.subr.mxu0 0.0
      %1773 = vmatpush1.msra.mxu0 %v1756
      %1774 = vmatprep.subr.mxu0 0.0
      %1775 = vmatpush1.msra.mxu0 %v1757
      %1776 = vmatprep.subr.mxu0 0.0
      %1777 = vmatpush1.msra.mxu0 0.0
      %1778 = vmatprep.subr.mxu0 0.0
      %1779 = vmatpush1.msra.mxu0 0.0
      %1780 = vmatprep.subr.mxu0 0.0
      %1781 = vmatpush1.msra.mxu0 0.0
      %1782 = vmatprep.subr.mxu0 0.0
      %1783 = vmatpush1.msra.mxu0 0.0
      %1784 = vmatprep.subr.mxu0 0.0
      %1785 = vmatpush1.msra.mxu0 0.0
      %1786 = vmatprep.subr.mxu0 0.0
      %1787 = vmatpush1.msra.mxu0 0.0
      %1788 = vmatprep.subr.mxu0 0.0
      %1789 = vmatpush1.msra.mxu0 0.0
      %1790 = vmatprep.subr.mxu0 0.0
      %1791 = vmatpush1.msra.mxu0 0.0
      %1792 = vmatprep.subr.mxu0 0.0
      %1793 = vmatpush1.msra.mxu0 0.0
      %1794 = vmatprep.subr.mxu0 0.0
      %1795 = vmatpush1.msra.mxu0 0.0
      %1796 = vmatprep.subr.mxu0 0.0
      %1797 = vmatpush1.msra.mxu0 0.0
      %1798 = vmatprep.subr.mxu0 0.0
      %1799 = vmatpush1.msra.mxu0 0.0
      %1800 = vmatprep.subr.mxu0 0.0
      %1801 = vmatpush1.msra.mxu0 0.0
      %1802 = vmatprep.subr.mxu0 0.0
      %1803 = vmatpush1.msra.mxu0 0.0
      %1804 = vmatprep.subr.mxu0 0.0
      %1805 = vmatpush1.msra.mxu0 0.0
      %1806 = vmatprep.subr.mxu0 0.0
      %1807 = vmatpush1.msra.mxu0 0.0
      %1808 = vmatprep.subr.mxu0 0.0
      %1809 = vmatpush1.msra.mxu0 0.0
      %1810 = vmatprep.subr.mxu0 0.0
      %1811 = vmatpush1.msra.mxu0 0.0
      %1812 = vmatprep.subr.mxu0 0.0
      %1813 = vmatpush1.msra.mxu0 0.0
      %1814 = vmatprep.subr.mxu0 0.0
      %1815 = vmatpush1.msra.mxu0 0.0
      %1816 = vmatprep.subr.mxu0 0.0
      %1817 = vmatpush1.msra.mxu0 0.0
      %1818 = vmatprep.subr.mxu0 0.0
      %1819 = vmatpush1.msra.mxu0 0.0
      %1820 = vmatprep.subr.mxu0 0.0
      %1821 = vmatpush1.msra.mxu0 0.0
      %1822 = vmatprep.mubr.f32.mxu0 0.0
      %1823 = vmatmul.mubr.f32.gmra.mrb[0].mxu0 %v935
      %v1824 = vpop.f32.mrb[0].mxu0
      %v1825 = vadd.f32 0.0, %v1824
      %v1826 = vpop.f32.mrb[0].mxu0
      %1827 = vdwg.mxu0
      %v1828 = vadd.f32 %v1388, %v1825
      %1829 = vmatprep.subr.mxu0 0.0
      %1830 = vmatpush1.msra.mxu0 %v1749
      %1831 = vmatprep.subr.mxu0 0.0
      %1832 = vmatpush1.msra.mxu0 %v1750
      %1833 = vmatprep.subr.mxu0 0.0
      %1834 = vmatpush1.msra.mxu0 %v1751
      %1835 = vmatprep.subr.mxu0 0.0
      %1836 = vmatpush1.msra.mxu0 %v1752
      %1837 = vmatprep.subr.mxu0 0.0
      %1838 = vmatpush1.msra.mxu0 %v1753
      %1839 = vmatprep.subr.mxu0 0.0
      %1840 = vmatpush1.msra.mxu0 %v1754
      %1841 = vmatprep.subr.mxu0 0.0
      %1842 = vmatpush1.msra.mxu0 %v1755
      %1843 = vmatprep.subr.mxu0 0.0
      %1844 = vmatpush1.msra.mxu0 %v1756
      %1845 = vmatprep.subr.mxu0 0.0
      %1846 = vmatpush1.msra.mxu0 %v1757
      %1847 = vmatprep.subr.mxu0 0.0
      %1848 = vmatpush1.msra.mxu0 0.0
      %1849 = vmatprep.subr.mxu0 0.0
      %1850 = vmatpush1.msra.mxu0 0.0
      %1851 = vmatprep.subr.mxu0 0.0
      %1852 = vmatpush1.msra.mxu0 0.0
      %1853 = vmatprep.subr.mxu0 0.0
      %1854 = vmatpush1.msra.mxu0 0.0
      %1855 = vmatprep.subr.mxu0 0.0
      %1856 = vmatpush1.msra.mxu0 0.0
      %1857 = vmatprep.subr.mxu0 0.0
      %1858 = vmatpush1.msra.mxu0 0.0
      %1859 = vmatprep.subr.mxu0 0.0
      %1860 = vmatpush1.msra.mxu0 0.0
      %1861 = vmatprep.subr.mxu0 0.0
      %1862 = vmatpush1.msra.mxu0 0.0
      %1863 = vmatprep.subr.mxu0 0.0
      %1864 = vmatpush1.msra.mxu0 0.0
      %1865 = vmatprep.subr.mxu0 0.0
      %1866 = vmatpush1.msra.mxu0 0.0
      %1867 = vmatprep.subr.mxu0 0.0
      %1868 = vmatpush1.msra.mxu0 0.0
      %1869 = vmatprep.subr.mxu0 0.0
      %1870 = vmatpush1.msra.mxu0 0.0
      %1871 = vmatprep.subr.mxu0 0.0
      %1872 = vmatpush1.msra.mxu0 0.0
      %1873 = vmatprep.subr.mxu0 0.0
      %1874 = vmatpush1.msra.mxu0 0.0
      %1875 = vmatprep.subr.mxu0 0.0
      %1876 = vmatpush1.msra.mxu0 0.0
      %1877 = vmatprep.subr.mxu0 0.0
      %1878 = vmatpush1.msra.mxu0 0.0
      %1879 = vmatprep.subr.mxu0 0.0
      %1880 = vmatpush1.msra.mxu0 0.0
      %1881 = vmatprep.subr.mxu0 0.0
      %1882 = vmatpush1.msra.mxu0 0.0
      %1883 = vmatprep.subr.mxu0 0.0
      %1884 = vmatpush1.msra.mxu0 0.0
      %1885 = vmatprep.subr.mxu0 0.0
      %1886 = vmatpush1.msra.mxu0 0.0
      %1887 = vmatprep.subr.mxu0 0.0
      %1888 = vmatpush1.msra.mxu0 0.0
      %1889 = vmatprep.subr.mxu0 0.0
      %1890 = vmatpush1.msra.mxu0 0.0
      %1891 = vmatprep.subr.mxu0 0.0
      %1892 = vmatpush1.msra.mxu0 0.0
      %1893 = vmatprep.mubr.f32.mxu0 0.0
      %1894 = vmatmul.mubr.f32.gmra.mrb[0].mxu0 %v1010
      %v1895 = vpop.f32.mrb[0].mxu0
      %v1896 = vadd.f32 0.0, %v1895
      %v1897 = vpop.f32.mrb[0].mxu0
      %1898 = vdwg.mxu0
      %v1899 = vadd.f32 %v1459, %v1896
      %1900 = vmatprep.subr.mxu0 0.0
      %1901 = vmatpush1.msra.mxu0 %v1749
      %1902 = vmatprep.subr.mxu0 0.0
      %1903 = vmatpush1.msra.mxu0 %v1750
      %1904 = vmatprep.subr.mxu0 0.0
      %1905 = vmatpush1.msra.mxu0 %v1751
      %1906 = vmatprep.subr.mxu0 0.0
      %1907 = vmatpush1.msra.mxu0 %v1752
      %1908 = vmatprep.subr.mxu0 0.0
      %1909 = vmatpush1.msra.mxu0 %v1753
      %1910 = vmatprep.subr.mxu0 0.0
      %1911 = vmatpush1.msra.mxu0 %v1754
      %1912 = vmatprep.subr.mxu0 0.0
      %1913 = vmatpush1.msra.mxu0 %v1755
      %1914 = vmatprep.subr.mxu0 0.0
      %1915 = vmatpush1.msra.mxu0 %v1756
      %1916 = vmatprep.subr.mxu0 0.0
      %1917 = vmatpush1.msra.mxu0 %v1757
      %1918 = vmatprep.subr.mxu0 0.0
      %1919 = vmatpush1.msra.mxu0 0.0
      %1920 = vmatprep.subr.mxu0 0.0
      %1921 = vmatpush1.msra.mxu0 0.0
      %1922 = vmatprep.subr.mxu0 0.0
      %1923 = vmatpush1.msra.mxu0 0.0
      %1924 = vmatprep.subr.mxu0 0.0
      %1925 = vmatpush1.msra.mxu0 0.0
      %1926 = vmatprep.subr.mxu0 0.0
      %1927 = vmatpush1.msra.mxu0 0.0
      %1928 = vmatprep.subr.mxu0 0.0
      %1929 = vmatpush1.msra.mxu0 0.0
      %1930 = vmatprep.subr.mxu0 0.0
      %1931 = vmatpush1.msra.mxu0 0.0
      %1932 = vmatprep.subr.mxu0 0.0
      %1933 = vmatpush1.msra.mxu0 0.0
      %1934 = vmatprep.subr.mxu0 0.0
      %1935 = vmatpush1.msra.mxu0 0.0
      %1936 = vmatprep.subr.mxu0 0.0
      %1937 = vmatpush1.msra.mxu0 0.0
      %1938 = vmatprep.subr.mxu0 0.0
      %1939 = vmatpush1.msra.mxu0 0.0
      %1940 = vmatprep.subr.mxu0 0.0
      %1941 = vmatpush1.msra.mxu0 0.0
      %1942 = vmatprep.subr.mxu0 0.0
      %1943 = vmatpush1.msra.mxu0 0.0
      %1944 = vmatprep.subr.mxu0 0.0
      %1945 = vmatpush1.msra.mxu0 0.0
      %1946 = vmatprep.subr.mxu0 0.0
      %1947 = vmatpush1.msra.mxu0 0.0
      %1948 = vmatprep.subr.mxu0 0.0
      %1949 = vmatpush1.msra.mxu0 0.0
      %1950 = vmatprep.subr.mxu0 0.0
      %1951 = vmatpush1.msra.mxu0 0.0
      %1952 = vmatprep.subr.mxu0 0.0
      %1953 = vmatpush1.msra.mxu0 0.0
      %1954 = vmatprep.subr.mxu0 0.0
      %1955 = vmatpush1.msra.mxu0 0.0
      %1956 = vmatprep.subr.mxu0 0.0
      %1957 = vmatpush1.msra.mxu0 0.0
      %1958 = vmatprep.subr.mxu0 0.0
      %1959 = vmatpush1.msra.mxu0 0.0
      %1960 = vmatprep.subr.mxu0 0.0
      %1961 = vmatpush1.msra.mxu0 0.0
      %1962 = vmatprep.subr.mxu0 0.0
      %1963 = vmatpush1.msra.mxu0 0.0
      %1964 = vmatprep.mubr.f32.mxu0 0.0
      %1965 = vmatmul.mubr.f32.gmra.mrb[0].mxu0 %v1085
      %v1966 = vpop.f32.mrb[0].mxu0
      %v1967 = vadd.f32 0.0, %v1966
      %v1968 = vpop.f32.mrb[0].mxu0
      %1969 = vdwg.mxu0
      %v1970 = vadd.f32 %v1530, %v1967
      %1971 = vmatprep.subr.mxu0 0.0
      %1972 = vmatpush1.msra.mxu0 %v1749
      %1973 = vmatprep.subr.mxu0 0.0
      %1974 = vmatpush1.msra.mxu0 %v1750
      %1975 = vmatprep.subr.mxu0 0.0
      %1976 = vmatpush1.msra.mxu0 %v1751
      %1977 = vmatprep.subr.mxu0 0.0
      %1978 = vmatpush1.msra.mxu0 %v1752
      %1979 = vmatprep.subr.mxu0 0.0
      %1980 = vmatpush1.msra.mxu0 %v1753
      %1981 = vmatprep.subr.mxu0 0.0
      %1982 = vmatpush1.msra.mxu0 %v1754
      %1983 = vmatprep.subr.mxu0 0.0
      %1984 = vmatpush1.msra.mxu0 %v1755
      %1985 = vmatprep.subr.mxu0 0.0
      %1986 = vmatpush1.msra.mxu0 %v1756
      %1987 = vmatprep.subr.mxu0 0.0
      %1988 = vmatpush1.msra.mxu0 %v1757
      %1989 = vmatprep.subr.mxu0 0.0
      %1990 = vmatpush1.msra.mxu0 0.0
      %1991 = vmatprep.subr.mxu0 0.0
      %1992 = vmatpush1.msra.mxu0 0.0
      %1993 = vmatprep.subr.mxu0 0.0
      %1994 = vmatpush1.msra.mxu0 0.0
      %1995 = vmatprep.subr.mxu0 0.0
      %1996 = vmatpush1.msra.mxu0 0.0
      %1997 = vmatprep.subr.mxu0 0.0
      %1998 = vmatpush1.msra.mxu0 0.0
      %1999 = vmatprep.subr.mxu0 0.0
      %2000 = vmatpush1.msra.mxu0 0.0
      %2001 = vmatprep.subr.mxu0 0.0
      %2002 = vmatpush1.msra.mxu0 0.0
      %2003 = vmatprep.subr.mxu0 0.0
      %2004 = vmatpush1.msra.mxu0 0.0
      %2005 = vmatprep.subr.mxu0 0.0
      %2006 = vmatpush1.msra.mxu0 0.0
      %2007 = vmatprep.subr.mxu0 0.0
      %2008 = vmatpush1.msra.mxu0 0.0
      %2009 = vmatprep.subr.mxu0 0.0
      %2010 = vmatpush1.msra.mxu0 0.0
      %2011 = vmatprep.subr.mxu0 0.0
      %2012 = vmatpush1.msra.mxu0 0.0
      %2013 = vmatprep.subr.mxu0 0.0
      %2014 = vmatpush1.msra.mxu0 0.0
      %2015 = vmatprep.subr.mxu0 0.0
      %2016 = vmatpush1.msra.mxu0 0.0
      %2017 = vmatprep.subr.mxu0 0.0
      %2018 = vmatpush1.msra.mxu0 0.0
      %2019 = vmatprep.subr.mxu0 0.0
      %2020 = vmatpush1.msra.mxu0 0.0
      %2021 = vmatprep.subr.mxu0 0.0
      %2022 = vmatpush1.msra.mxu0 0.0
      %2023 = vmatprep.subr.mxu0 0.0
      %2024 = vmatpush1.msra.mxu0 0.0
      %2025 = vmatprep.subr.mxu0 0.0
      %2026 = vmatpush1.msra.mxu0 0.0
      %2027 = vmatprep.subr.mxu0 0.0
      %2028 = vmatpush1.msra.mxu0 0.0
      %2029 = vmatprep.subr.mxu0 0.0
      %2030 = vmatpush1.msra.mxu0 0.0
      %2031 = vmatprep.subr.mxu0 0.0
      %2032 = vmatpush1.msra.mxu0 0.0
      %2033 = vmatprep.subr.mxu0 0.0
      %2034 = vmatpush1.msra.mxu0 0.0
      %2035 = vmatprep.mubr.f32.mxu0 0.0
      %2036 = vmatmul.mubr.f32.gmra.mrb[0].mxu0 %v1160
      %v2037 = vpop.f32.mrb[0].mxu0
      %v2038 = vadd.f32 0.0, %v2037
      %v2039 = vpop.f32.mrb[0].mxu0
      %2040 = vdwg.mxu0
      %v2041 = vadd.f32 %v1601, %v2038
      %2042 = vmatprep.subr.mxu0 0.0
      %2043 = vmatpush1.msra.mxu0 %v1749
      %2044 = vmatprep.subr.mxu0 0.0
      %2045 = vmatpush1.msra.mxu0 %v1750
      %2046 = vmatprep.subr.mxu0 0.0
      %2047 = vmatpush1.msra.mxu0 %v1751
      %2048 = vmatprep.subr.mxu0 0.0
      %2049 = vmatpush1.msra.mxu0 %v1752
      %2050 = vmatprep.subr.mxu0 0.0
      %2051 = vmatpush1.msra.mxu0 %v1753
      %2052 = vmatprep.subr.mxu0 0.0
      %2053 = vmatpush1.msra.mxu0 %v1754
      %2054 = vmatprep.subr.mxu0 0.0
      %2055 = vmatpush1.msra.mxu0 %v1755
      %2056 = vmatprep.subr.mxu0 0.0
      %2057 = vmatpush1.msra.mxu0 %v1756
      %2058 = vmatprep.subr.mxu0 0.0
      %2059 = vmatpush1.msra.mxu0 %v1757
      %2060 = vmatprep.subr.mxu0 0.0
      %2061 = vmatpush1.msra.mxu0 0.0
      %2062 = vmatprep.subr.mxu0 0.0
      %2063 = vmatpush1.msra.mxu0 0.0
      %2064 = vmatprep.subr.mxu0 0.0
      %2065 = vmatpush1.msra.mxu0 0.0
      %2066 = vmatprep.subr.mxu0 0.0
      %2067 = vmatpush1.msra.mxu0 0.0
      %2068 = vmatprep.subr.mxu0 0.0
      %2069 = vmatpush1.msra.mxu0 0.0
      %2070 = vmatprep.subr.mxu0 0.0
      %2071 = vmatpush1.msra.mxu0 0.0
      %2072 = vmatprep.subr.mxu0 0.0
      %2073 = vmatpush1.msra.mxu0 0.0
      %2074 = vmatprep.subr.mxu0 0.0
      %2075 = vmatpush1.msra.mxu0 0.0
      %2076 = vmatprep.subr.mxu0 0.0
      %2077 = vmatpush1.msra.mxu0 0.0
      %2078 = vmatprep.subr.mxu0 0.0
      %2079 = vmatpush1.msra.mxu0 0.0
      %2080 = vmatprep.subr.mxu0 0.0
      %2081 = vmatpush1.msra.mxu0 0.0
      %2082 = vmatprep.subr.mxu0 0.0
      %2083 = vmatpush1.msra.mxu0 0.0
      %2084 = vmatprep.subr.mxu0 0.0
      %2085 = vmatpush1.msra.mxu0 0.0
      %2086 = vmatprep.subr.mxu0 0.0
      %2087 = vmatpush1.msra.mxu0 0.0
      %2088 = vmatprep.subr.mxu0 0.0
      %2089 = vmatpush1.msra.mxu0 0.0
      %2090 = vmatprep.subr.mxu0 0.0
      %2091 = vmatpush1.msra.mxu0 0.0
      %2092 = vmatprep.subr.mxu0 0.0
      %2093 = vmatpush1.msra.mxu0 0.0
      %2094 = vmatprep.subr.mxu0 0.0
      %2095 = vmatpush1.msra.mxu0 0.0
      %2096 = vmatprep.subr.mxu0 0.0
      %2097 = vmatpush1.msra.mxu0 0.0
      %2098 = vmatprep.subr.mxu0 0.0
      %2099 = vmatpush1.msra.mxu0 0.0
      %2100 = vmatprep.subr.mxu0 0.0
      %2101 = vmatpush1.msra.mxu0 0.0
      %2102 = vmatprep.subr.mxu0 0.0
      %2103 = vmatpush1.msra.mxu0 0.0
      %2104 = vmatprep.subr.mxu0 0.0
      %2105 = vmatpush1.msra.mxu0 0.0
      %2106 = vmatprep.mubr.f32.mxu0 0.0
      %2107 = vmatmul.mubr.f32.gmra.mrb[0].mxu0 %v1235
      %v2108 = vpop.f32.mrb[0].mxu0
      %v2109 = vadd.f32 0.0, %v2108
      %v2110 = vpop.f32.mrb[0].mxu0
      %2111 = vdwg.mxu0
      %v2112 = vadd.f32 %v1672, %v2109
      %v2113 = vld [vmem:[%s379 + $0xd] sm:$0x1]
      %v2115 = vsel %vm398, %v2113, 0
      %2117 = vmatprep.subr.mxu0 0.0
      %2118 = vmatpush1.msra.mxu0 %v1749
      %2119 = vmatprep.subr.mxu0 0.0
      %2120 = vmatpush1.msra.mxu0 %v1750
      %2121 = vmatprep.subr.mxu0 0.0
      %2122 = vmatpush1.msra.mxu0 %v1751
      %2123 = vmatprep.subr.mxu0 0.0
      %2124 = vmatpush1.msra.mxu0 %v1752
      %2125 = vmatprep.subr.mxu0 0.0
      %2126 = vmatpush1.msra.mxu0 %v1753
      %2127 = vmatprep.subr.mxu0 0.0
      %2128 = vmatpush1.msra.mxu0 %v1754
      %2129 = vmatprep.subr.mxu0 0.0
      %2130 = vmatpush1.msra.mxu0 %v1755
      %2131 = vmatprep.subr.mxu0 0.0
      %2132 = vmatpush1.msra.mxu0 %v1756
      %2133 = vmatprep.subr.mxu0 0.0
      %2134 = vmatpush1.msra.mxu0 %v1757
      %2135 = vmatprep.subr.mxu0 0.0
      %2136 = vmatpush1.msra.mxu0 0.0
      %2137 = vmatprep.subr.mxu0 0.0
      %2138 = vmatpush1.msra.mxu0 0.0
      %2139 = vmatprep.subr.mxu0 0.0
      %2140 = vmatpush1.msra.mxu0 0.0
      %2141 = vmatprep.subr.mxu0 0.0
      %2142 = vmatpush1.msra.mxu0 0.0
      %2143 = vmatprep.subr.mxu0 0.0
      %2144 = vmatpush1.msra.mxu0 0.0
      %2145 = vmatprep.subr.mxu0 0.0
      %2146 = vmatpush1.msra.mxu0 0.0
      %2147 = vmatprep.subr.mxu0 0.0
      %2148 = vmatpush1.msra.mxu0 0.0
      %2149 = vmatprep.subr.mxu0 0.0
      %2150 = vmatpush1.msra.mxu0 0.0
      %2151 = vmatprep.subr.mxu0 0.0
      %2152 = vmatpush1.msra.mxu0 0.0
      %2153 = vmatprep.subr.mxu0 0.0
      %2154 = vmatpush1.msra.mxu0 0.0
      %2155 = vmatprep.subr.mxu0 0.0
      %2156 = vmatpush1.msra.mxu0 0.0
      %2157 = vmatprep.subr.mxu0 0.0
      %2158 = vmatpush1.msra.mxu0 0.0
      %2159 = vmatprep.subr.mxu0 0.0
      %2160 = vmatpush1.msra.mxu0 0.0
      %2161 = vmatprep.subr.mxu0 0.0
      %2162 = vmatpush1.msra.mxu0 0.0
      %2163 = vmatprep.subr.mxu0 0.0
      %2164 = vmatpush1.msra.mxu0 0.0
      %2165 = vmatprep.subr.mxu0 0.0
      %2166 = vmatpush1.msra.mxu0 0.0
      %2167 = vmatprep.subr.mxu0 0.0
      %2168 = vmatpush1.msra.mxu0 0.0
      %2169 = vmatprep.subr.mxu0 0.0
      %2170 = vmatpush1.msra.mxu0 0.0
      %2171 = vmatprep.subr.mxu0 0.0
      %2172 = vmatpush1.msra.mxu0 0.0
      %2173 = vmatprep.subr.mxu0 0.0
      %2174 = vmatpush1.msra.mxu0 0.0
      %2175 = vmatprep.subr.mxu0 0.0
      %2176 = vmatpush1.msra.mxu0 0.0
      %2177 = vmatprep.subr.mxu0 0.0
      %2178 = vmatpush1.msra.mxu0 0.0
      %2179 = vmatprep.subr.mxu0 0.0
      %2180 = vmatpush1.msra.mxu0 0.0
      %2181 = vmatprep.mubr.f32.mxu0 0.0
      %2182 = vmatmul.mubr.f32.gmra.mrb[0].mxu0 %v2115
      %v2183 = vpop.f32.mrb[0].mxu0
      %v2184 = vadd.f32 0.0, %v2183
      %v2185 = vpop.f32.mrb[0].mxu0
      %2186 = vdwg.mxu0
      %v2187 = vadd.f32 %v1747, %v2184
      %s2188 = scalar_lea.vmem %s1, 288
      %v2189 = vld [vmem:[%s2188] sm:$0xff]
      %v2190 = vld [vmem:[%s2188 + $0x8] sm:$0xff]
      %v2191 = vld [vmem:[%s2188 + $0x10] sm:$0xff]
      %v2192 = vld [vmem:[%s2188 + $0x18] sm:$0xff]
      %v2193 = vld [vmem:[%s2188 + $0x20] sm:$0xff]
      %v2194 = vld [vmem:[%s2188 + $0x28] sm:$0xff]
      %v2195 = vld [vmem:[%s2188 + $0x30] sm:$0xff]
      %v2196 = vld [vmem:[%s2188 + $0x38] sm:$0xff]
      %v2197 = vld [vmem:[%s2188 + $0x40] sm:$0xff]
      %2198 = vmatprep.subr.mxu0 0.0
      %2199 = vmatpush1.msra.mxu0 %v2189
      %2200 = vmatprep.subr.mxu0 0.0
      %2201 = vmatpush1.msra.mxu0 %v2190
      %2202 = vmatprep.subr.mxu0 0.0
      %2203 = vmatpush1.msra.mxu0 %v2191
      %2204 = vmatprep.subr.mxu0 0.0
      %2205 = vmatpush1.msra.mxu0 %v2192
      %2206 = vmatprep.subr.mxu0 0.0
      %2207 = vmatpush1.msra.mxu0 %v2193
      %2208 = vmatprep.subr.mxu0 0.0
      %2209 = vmatpush1.msra.mxu0 %v2194
      %2210 = vmatprep.subr.mxu0 0.0
      %2211 = vmatpush1.msra.mxu0 %v2195
      %2212 = vmatprep.subr.mxu0 0.0
      %2213 = vmatpush1.msra.mxu0 %v2196
      %2214 = vmatprep.subr.mxu0 0.0
      %2215 = vmatpush1.msra.mxu0 %v2197
      %2216 = vmatprep.subr.mxu0 0.0
      %2217 = vmatpush1.msra.mxu0 0.0
      %2218 = vmatprep.subr.mxu0 0.0
      %2219 = vmatpush1.msra.mxu0 0.0
      %2220 = vmatprep.subr.mxu0 0.0
      %2221 = vmatpush1.msra.mxu0 0.0
      %2222 = vmatprep.subr.mxu0 0.0
      %2223 = vmatpush1.msra.mxu0 0.0
      %2224 = vmatprep.subr.mxu0 0.0
      %2225 = vmatpush1.msra.mxu0 0.0
      %2226 = vmatprep.subr.mxu0 0.0
      %2227 = vmatpush1.msra.mxu0 0.0
      %2228 = vmatprep.subr.mxu0 0.0
      %2229 = vmatpush1.msra.mxu0 0.0
      %2230 = vmatprep.subr.mxu0 0.0
      %2231 = vmatpush1.msra.mxu0 0.0
      %2232 = vmatprep.subr.mxu0 0.0
      %2233 = vmatpush1.msra.mxu0 0.0
      %2234 = vmatprep.subr.mxu0 0.0
      %2235 = vmatpush1.msra.mxu0 0.0
      %2236 = vmatprep.subr.mxu0 0.0
      %2237 = vmatpush1.msra.mxu0 0.0
      %2238 = vmatprep.subr.mxu0 0.0
      %2239 = vmatpush1.msra.mxu0 0.0
      %2240 = vmatprep.subr.mxu0 0.0
      %2241 = vmatpush1.msra.mxu0 0.0
      %2242 = vmatprep.subr.mxu0 0.0
      %2243 = vmatpush1.msra.mxu0 0.0
      %2244 = vmatprep.subr.mxu0 0.0
      %2245 = vmatpush1.msra.mxu0 0.0
      %2246 = vmatprep.subr.mxu0 0.0
      %2247 = vmatpush1.msra.mxu0 0.0
      %2248 = vmatprep.subr.mxu0 0.0
      %2249 = vmatpush1.msra.mxu0 0.0
      %2250 = vmatprep.subr.mxu0 0.0
      %2251 = vmatpush1.msra.mxu0 0.0
      %2252 = vmatprep.subr.mxu0 0.0
      %2253 = vmatpush1.msra.mxu0 0.0
      %2254 = vmatprep.subr.mxu0 0.0
      %2255 = vmatpush1.msra.mxu0 0.0
      %2256 = vmatprep.subr.mxu0 0.0
      %2257 = vmatpush1.msra.mxu0 0.0
      %2258 = vmatprep.subr.mxu0 0.0
      %2259 = vmatpush1.msra.mxu0 0.0
      %2260 = vmatprep.subr.mxu0 0.0
      %2261 = vmatpush1.msra.mxu0 0.0
      %2262 = vmatprep.mubr.f32.mxu0 0.0
      %2263 = vmatmul.mubr.f32.gmra.mrb[0].mxu0 %v550
      %v2264 = vpop.f32.mrb[0].mxu0
      %v2265 = vadd.f32 0.0, %v2264
      %v2266 = vpop.f32.mrb[0].mxu0
      %2267 = vdwg.mxu0
      %v2268 = vadd.f32 %v1828, %v2265
      %2269 = vmatprep.subr.mxu0 0.0
      %2270 = vmatpush1.msra.mxu0 %v2189
      %2271 = vmatprep.subr.mxu0 0.0
      %2272 = vmatpush1.msra.mxu0 %v2190
      %2273 = vmatprep.subr.mxu0 0.0
      %2274 = vmatpush1.msra.mxu0 %v2191
      %2275 = vmatprep.subr.mxu0 0.0
      %2276 = vmatpush1.msra.mxu0 %v2192
      %2277 = vmatprep.subr.mxu0 0.0
      %2278 = vmatpush1.msra.mxu0 %v2193
      %2279 = vmatprep.subr.mxu0 0.0
      %2280 = vmatpush1.msra.mxu0 %v2194
      %2281 = vmatprep.subr.mxu0 0.0
      %2282 = vmatpush1.msra.mxu0 %v2195
      %2283 = vmatprep.subr.mxu0 0.0
      %2284 = vmatpush1.msra.mxu0 %v2196
      %2285 = vmatprep.subr.mxu0 0.0
      %2286 = vmatpush1.msra.mxu0 %v2197
      %2287 = vmatprep.subr.mxu0 0.0
      %2288 = vmatpush1.msra.mxu0 0.0
      %2289 = vmatprep.subr.mxu0 0.0
      %2290 = vmatpush1.msra.mxu0 0.0
      %2291 = vmatprep.subr.mxu0 0.0
      %2292 = vmatpush1.msra.mxu0 0.0
      %2293 = vmatprep.subr.mxu0 0.0
      %2294 = vmatpush1.msra.mxu0 0.0
      %2295 = vmatprep.subr.mxu0 0.0
      %2296 = vmatpush1.msra.mxu0 0.0
      %2297 = vmatprep.subr.mxu0 0.0
      %2298 = vmatpush1.msra.mxu0 0.0
      %2299 = vmatprep.subr.mxu0 0.0
      %2300 = vmatpush1.msra.mxu0 0.0
      %2301 = vmatprep.subr.mxu0 0.0
      %2302 = vmatpush1.msra.mxu0 0.0
      %2303 = vmatprep.subr.mxu0 0.0
      %2304 = vmatpush1.msra.mxu0 0.0
      %2305 = vmatprep.subr.mxu0 0.0
      %2306 = vmatpush1.msra.mxu0 0.0
      %2307 = vmatprep.subr.mxu0 0.0
      %2308 = vmatpush1.msra.mxu0 0.0
      %2309 = vmatprep.subr.mxu0 0.0
      %2310 = vmatpush1.msra.mxu0 0.0
      %2311 = vmatprep.subr.mxu0 0.0
      %2312 = vmatpush1.msra.mxu0 0.0
      %2313 = vmatprep.subr.mxu0 0.0
      %2314 = vmatpush1.msra.mxu0 0.0
      %2315 = vmatprep.subr.mxu0 0.0
      %2316 = vmatpush1.msra.mxu0 0.0
      %2317 = vmatprep.subr.mxu0 0.0
      %2318 = vmatpush1.msra.mxu0 0.0
      %2319 = vmatprep.subr.mxu0 0.0
      %2320 = vmatpush1.msra.mxu0 0.0
      %2321 = vmatprep.subr.mxu0 0.0
      %2322 = vmatpush1.msra.mxu0 0.0
      %2323 = vmatprep.subr.mxu0 0.0
      %2324 = vmatpush1.msra.mxu0 0.0
      %2325 = vmatprep.subr.mxu0 0.0
      %2326 = vmatpush1.msra.mxu0 0.0
      %2327 = vmatprep.subr.mxu0 0.0
      %2328 = vmatpush1.msra.mxu0 0.0
      %2329 = vmatprep.subr.mxu0 0.0
      %2330 = vmatpush1.msra.mxu0 0.0
      %2331 = vmatprep.subr.mxu0 0.0
      %2332 = vmatpush1.msra.mxu0 0.0
      %2333 = vmatprep.mubr.f32.mxu0 0.0
      %2334 = vmatmul.mubr.f32.gmra.mrb[0].mxu0 %v625
      %v2335 = vpop.f32.mrb[0].mxu0
      %v2336 = vadd.f32 0.0, %v2335
      %v2337 = vpop.f32.mrb[0].mxu0
      %2338 = vdwg.mxu0
      %v2339 = vadd.f32 %v1899, %v2336
      %2340 = vmatprep.subr.mxu0 0.0
      %2341 = vmatpush1.msra.mxu0 %v2189
      %2342 = vmatprep.subr.mxu0 0.0
      %2343 = vmatpush1.msra.mxu0 %v2190
      %2344 = vmatprep.subr.mxu0 0.0
      %2345 = vmatpush1.msra.mxu0 %v2191
      %2346 = vmatprep.subr.mxu0 0.0
      %2347 = vmatpush1.msra.mxu0 %v2192
      %2348 = vmatprep.subr.mxu0 0.0
      %2349 = vmatpush1.msra.mxu0 %v2193
      %2350 = vmatprep.subr.mxu0 0.0
      %2351 = vmatpush1.msra.mxu0 %v2194
      %2352 = vmatprep.subr.mxu0 0.0
      %2353 = vmatpush1.msra.mxu0 %v2195
      %2354 = vmatprep.subr.mxu0 0.0
      %2355 = vmatpush1.msra.mxu0 %v2196
      %2356 = vmatprep.subr.mxu0 0.0
      %2357 = vmatpush1.msra.mxu0 %v2197
      %2358 = vmatprep.subr.mxu0 0.0
      %2359 = vmatpush1.msra.mxu0 0.0
      %2360 = vmatprep.subr.mxu0 0.0
      %2361 = vmatpush1.msra.mxu0 0.0
      %2362 = vmatprep.subr.mxu0 0.0
      %2363 = vmatpush1.msra.mxu0 0.0
      %2364 = vmatprep.subr.mxu0 0.0
      %2365 = vmatpush1.msra.mxu0 0.0
      %2366 = vmatprep.subr.mxu0 0.0
      %2367 = vmatpush1.msra.mxu0 0.0
      %2368 = vmatprep.subr.mxu0 0.0
      %2369 = vmatpush1.msra.mxu0 0.0
      %2370 = vmatprep.subr.mxu0 0.0
      %2371 = vmatpush1.msra.mxu0 0.0
      %2372 = vmatprep.subr.mxu0 0.0
      %2373 = vmatpush1.msra.mxu0 0.0
      %2374 = vmatprep.subr.mxu0 0.0
      %2375 = vmatpush1.msra.mxu0 0.0
      %2376 = vmatprep.subr.mxu0 0.0
      %2377 = vmatpush1.msra.mxu0 0.0
      %2378 = vmatprep.subr.mxu0 0.0
      %2379 = vmatpush1.msra.mxu0 0.0
      %2380 = vmatprep.subr.mxu0 0.0
      %2381 = vmatpush1.msra.mxu0 0.0
      %2382 = vmatprep.subr.mxu0 0.0
      %2383 = vmatpush1.msra.mxu0 0.0
      %2384 = vmatprep.subr.mxu0 0.0
      %2385 = vmatpush1.msra.mxu0 0.0
      %2386 = vmatprep.subr.mxu0 0.0
      %2387 = vmatpush1.msra.mxu0 0.0
      %2388 = vmatprep.subr.mxu0 0.0
      %2389 = vmatpush1.msra.mxu0 0.0
      %2390 = vmatprep.subr.mxu0 0.0
      %2391 = vmatpush1.msra.mxu0 0.0
      %2392 = vmatprep.subr.mxu0 0.0
      %2393 = vmatpush1.msra.mxu0 0.0
      %2394 = vmatprep.subr.mxu0 0.0
      %2395 = vmatpush1.msra.mxu0 0.0
      %2396 = vmatprep.subr.mxu0 0.0
      %2397 = vmatpush1.msra.mxu0 0.0
      %2398 = vmatprep.subr.mxu0 0.0
      %2399 = vmatpush1.msra.mxu0 0.0
      %2400 = vmatprep.subr.mxu0 0.0
      %2401 = vmatpush1.msra.mxu0 0.0
      %2402 = vmatprep.subr.mxu0 0.0
      %2403 = vmatpush1.msra.mxu0 0.0
      %2404 = vmatprep.mubr.f32.mxu0 0.0
      %2405 = vmatmul.mubr.f32.gmra.mrb[0].mxu0 %v700
      %v2406 = vpop.f32.mrb[0].mxu0
      %v2407 = vadd.f32 0.0, %v2406
      %v2408 = vpop.f32.mrb[0].mxu0
      %2409 = vdwg.mxu0
      %v2410 = vadd.f32 %v1970, %v2407
      %2411 = vmatprep.subr.mxu0 0.0
      %2412 = vmatpush1.msra.mxu0 %v2189
      %2413 = vmatprep.subr.mxu0 0.0
      %2414 = vmatpush1.msra.mxu0 %v2190
      %2415 = vmatprep.subr.mxu0 0.0
      %2416 = vmatpush1.msra.mxu0 %v2191
      %2417 = vmatprep.subr.mxu0 0.0
      %2418 = vmatpush1.msra.mxu0 %v2192
      %2419 = vmatprep.subr.mxu0 0.0
      %2420 = vmatpush1.msra.mxu0 %v2193
      %2421 = vmatprep.subr.mxu0 0.0
      %2422 = vmatpush1.msra.mxu0 %v2194
      %2423 = vmatprep.subr.mxu0 0.0
      %2424 = vmatpush1.msra.mxu0 %v2195
      %2425 = vmatprep.subr.mxu0 0.0
      %2426 = vmatpush1.msra.mxu0 %v2196
      %2427 = vmatprep.subr.mxu0 0.0
      %2428 = vmatpush1.msra.mxu0 %v2197
      %2429 = vmatprep.subr.mxu0 0.0
      %2430 = vmatpush1.msra.mxu0 0.0
      %2431 = vmatprep.subr.mxu0 0.0
      %2432 = vmatpush1.msra.mxu0 0.0
      %2433 = vmatprep.subr.mxu0 0.0
      %2434 = vmatpush1.msra.mxu0 0.0
      %2435 = vmatprep.subr.mxu0 0.0
      %2436 = vmatpush1.msra.mxu0 0.0
      %2437 = vmatprep.subr.mxu0 0.0
      %2438 = vmatpush1.msra.mxu0 0.0
      %2439 = vmatprep.subr.mxu0 0.0
      %2440 = vmatpush1.msra.mxu0 0.0
      %2441 = vmatprep.subr.mxu0 0.0
      %2442 = vmatpush1.msra.mxu0 0.0
      %2443 = vmatprep.subr.mxu0 0.0
      %2444 = vmatpush1.msra.mxu0 0.0
      %2445 = vmatprep.subr.mxu0 0.0
      %2446 = vmatpush1.msra.mxu0 0.0
      %2447 = vmatprep.subr.mxu0 0.0
      %2448 = vmatpush1.msra.mxu0 0.0
      %2449 = vmatprep.subr.mxu0 0.0
      %2450 = vmatpush1.msra.mxu0 0.0
      %2451 = vmatprep.subr.mxu0 0.0
      %2452 = vmatpush1.msra.mxu0 0.0
      %2453 = vmatprep.subr.mxu0 0.0
      %2454 = vmatpush1.msra.mxu0 0.0
      %2455 = vmatprep.subr.mxu0 0.0
      %2456 = vmatpush1.msra.mxu0 0.0
      %2457 = vmatprep.subr.mxu0 0.0
      %2458 = vmatpush1.msra.mxu0 0.0
      %2459 = vmatprep.subr.mxu0 0.0
      %2460 = vmatpush1.msra.mxu0 0.0
      %2461 = vmatprep.subr.mxu0 0.0
      %2462 = vmatpush1.msra.mxu0 0.0
      %2463 = vmatprep.subr.mxu0 0.0
      %2464 = vmatpush1.msra.mxu0 0.0
      %2465 = vmatprep.subr.mxu0 0.0
      %2466 = vmatpush1.msra.mxu0 0.0
      %2467 = vmatprep.subr.mxu0 0.0
      %2468 = vmatpush1.msra.mxu0 0.0
      %2469 = vmatprep.subr.mxu0 0.0
      %2470 = vmatpush1.msra.mxu0 0.0
      %2471 = vmatprep.subr.mxu0 0.0
      %2472 = vmatpush1.msra.mxu0 0.0
      %2473 = vmatprep.subr.mxu0 0.0
      %2474 = vmatpush1.msra.mxu0 0.0
      %2475 = vmatprep.mubr.f32.mxu0 0.0
      %2476 = vmatmul.mubr.f32.gmra.mrb[0].mxu0 %v775
      %v2477 = vpop.f32.mrb[0].mxu0
      %v2478 = vadd.f32 0.0, %v2477
      %v2479 = vpop.f32.mrb[0].mxu0
      %2480 = vdwg.mxu0
      %v2481 = vadd.f32 %v2041, %v2478
      %2482 = vmatprep.subr.mxu0 0.0
      %2483 = vmatpush1.msra.mxu0 %v2189
      %2484 = vmatprep.subr.mxu0 0.0
      %2485 = vmatpush1.msra.mxu0 %v2190
      %2486 = vmatprep.subr.mxu0 0.0
      %2487 = vmatpush1.msra.mxu0 %v2191
      %2488 = vmatprep.subr.mxu0 0.0
      %2489 = vmatpush1.msra.mxu0 %v2192
      %2490 = vmatprep.subr.mxu0 0.0
      %2491 = vmatpush1.msra.mxu0 %v2193
      %2492 = vmatprep.subr.mxu0 0.0
      %2493 = vmatpush1.msra.mxu0 %v2194
      %2494 = vmatprep.subr.mxu0 0.0
      %2495 = vmatpush1.msra.mxu0 %v2195
      %2496 = vmatprep.subr.mxu0 0.0
      %2497 = vmatpush1.msra.mxu0 %v2196
      %2498 = vmatprep.subr.mxu0 0.0
      %2499 = vmatpush1.msra.mxu0 %v2197
      %2500 = vmatprep.subr.mxu0 0.0
      %2501 = vmatpush1.msra.mxu0 0.0
      %2502 = vmatprep.subr.mxu0 0.0
      %2503 = vmatpush1.msra.mxu0 0.0
      %2504 = vmatprep.subr.mxu0 0.0
      %2505 = vmatpush1.msra.mxu0 0.0
      %2506 = vmatprep.subr.mxu0 0.0
      %2507 = vmatpush1.msra.mxu0 0.0
      %2508 = vmatprep.subr.mxu0 0.0
      %2509 = vmatpush1.msra.mxu0 0.0
      %2510 = vmatprep.subr.mxu0 0.0
      %2511 = vmatpush1.msra.mxu0 0.0
      %2512 = vmatprep.subr.mxu0 0.0
      %2513 = vmatpush1.msra.mxu0 0.0
      %2514 = vmatprep.subr.mxu0 0.0
      %2515 = vmatpush1.msra.mxu0 0.0
      %2516 = vmatprep.subr.mxu0 0.0
      %2517 = vmatpush1.msra.mxu0 0.0
      %2518 = vmatprep.subr.mxu0 0.0
      %2519 = vmatpush1.msra.mxu0 0.0
      %2520 = vmatprep.subr.mxu0 0.0
      %2521 = vmatpush1.msra.mxu0 0.0
      %2522 = vmatprep.subr.mxu0 0.0
      %2523 = vmatpush1.msra.mxu0 0.0
      %2524 = vmatprep.subr.mxu0 0.0
      %2525 = vmatpush1.msra.mxu0 0.0
      %2526 = vmatprep.subr.mxu0 0.0
      %2527 = vmatpush1.msra.mxu0 0.0
      %2528 = vmatprep.subr.mxu0 0.0
      %2529 = vmatpush1.msra.mxu0 0.0
      %2530 = vmatprep.subr.mxu0 0.0
      %2531 = vmatpush1.msra.mxu0 0.0
      %2532 = vmatprep.subr.mxu0 0.0
      %2533 = vmatpush1.msra.mxu0 0.0
      %2534 = vmatprep.subr.mxu0 0.0
      %2535 = vmatpush1.msra.mxu0 0.0
      %2536 = vmatprep.subr.mxu0 0.0
      %2537 = vmatpush1.msra.mxu0 0.0
      %2538 = vmatprep.subr.mxu0 0.0
      %2539 = vmatpush1.msra.mxu0 0.0
      %2540 = vmatprep.subr.mxu0 0.0
      %2541 = vmatpush1.msra.mxu0 0.0
      %2542 = vmatprep.subr.mxu0 0.0
      %2543 = vmatpush1.msra.mxu0 0.0
      %2544 = vmatprep.subr.mxu0 0.0
      %2545 = vmatpush1.msra.mxu0 0.0
      %2546 = vmatprep.mubr.f32.mxu0 0.0
      %2547 = vmatmul.mubr.f32.gmra.mrb[0].mxu0 %v1675
      %v2548 = vpop.f32.mrb[0].mxu0
      %v2549 = vadd.f32 0.0, %v2548
      %v2550 = vpop.f32.mrb[0].mxu0
      %2551 = vdwg.mxu0
      %v2552 = vadd.f32 %v2112, %v2549
      %v2553 = vld [vmem:[%s379 + $0xe] sm:$0x1]
      %v2555 = vsel %vm398, %v2553, 0
      %2557 = vmatprep.subr.mxu0 0.0
      %2558 = vmatpush1.msra.mxu0 %v2189
      %2559 = vmatprep.subr.mxu0 0.0
      %2560 = vmatpush1.msra.mxu0 %v2190
      %2561 = vmatprep.subr.mxu0 0.0
      %2562 = vmatpush1.msra.mxu0 %v2191
      %2563 = vmatprep.subr.mxu0 0.0
      %2564 = vmatpush1.msra.mxu0 %v2192
      %2565 = vmatprep.subr.mxu0 0.0
      %2566 = vmatpush1.msra.mxu0 %v2193
      %2567 = vmatprep.subr.mxu0 0.0
      %2568 = vmatpush1.msra.mxu0 %v2194
      %2569 = vmatprep.subr.mxu0 0.0
      %2570 = vmatpush1.msra.mxu0 %v2195
      %2571 = vmatprep.subr.mxu0 0.0
      %2572 = vmatpush1.msra.mxu0 %v2196
      %2573 = vmatprep.subr.mxu0 0.0
      %2574 = vmatpush1.msra.mxu0 %v2197
      %2575 = vmatprep.subr.mxu0 0.0
      %2576 = vmatpush1.msra.mxu0 0.0
      %2577 = vmatprep.subr.mxu0 0.0
      %2578 = vmatpush1.msra.mxu0 0.0
      %2579 = vmatprep.subr.mxu0 0.0
      %2580 = vmatpush1.msra.mxu0 0.0
      %2581 = vmatprep.subr.mxu0 0.0
      %2582 = vmatpush1.msra.mxu0 0.0
      %2583 = vmatprep.subr.mxu0 0.0
      %2584 = vmatpush1.msra.mxu0 0.0
      %2585 = vmatprep.subr.mxu0 0.0
      %2586 = vmatpush1.msra.mxu0 0.0
      %2587 = vmatprep.subr.mxu0 0.0
      %2588 = vmatpush1.msra.mxu0 0.0
      %2589 = vmatprep.subr.mxu0 0.0
      %2590 = vmatpush1.msra.mxu0 0.0
      %2591 = vmatprep.subr.mxu0 0.0
      %2592 = vmatpush1.msra.mxu0 0.0
      %2593 = vmatprep.subr.mxu0 0.0
      %2594 = vmatpush1.msra.mxu0 0.0
      %2595 = vmatprep.subr.mxu0 0.0
      %2596 = vmatpush1.msra.mxu0 0.0
      %2597 = vmatprep.subr.mxu0 0.0
      %2598 = vmatpush1.msra.mxu0 0.0
      %2599 = vmatprep.subr.mxu0 0.0
      %2600 = vmatpush1.msra.mxu0 0.0
      %2601 = vmatprep.subr.mxu0 0.0
      %2602 = vmatpush1.msra.mxu0 0.0
      %2603 = vmatprep.subr.mxu0 0.0
      %2604 = vmatpush1.msra.mxu0 0.0
      %2605 = vmatprep.subr.mxu0 0.0
      %2606 = vmatpush1.msra.mxu0 0.0
      %2607 = vmatprep.subr.mxu0 0.0
      %2608 = vmatpush1.msra.mxu0 0.0
      %2609 = vmatprep.subr.mxu0 0.0
      %2610 = vmatpush1.msra.mxu0 0.0
      %2611 = vmatprep.subr.mxu0 0.0
      %2612 = vmatpush1.msra.mxu0 0.0
      %2613 = vmatprep.subr.mxu0 0.0
      %2614 = vmatpush1.msra.mxu0 0.0
      %2615 = vmatprep.subr.mxu0 0.0
      %2616 = vmatpush1.msra.mxu0 0.0
      %2617 = vmatprep.subr.mxu0 0.0
      %2618 = vmatpush1.msra.mxu0 0.0
      %2619 = vmatprep.subr.mxu0 0.0
      %2620 = vmatpush1.msra.mxu0 0.0
      %2621 = vmatprep.mubr.f32.mxu0 0.0
      %2622 = vmatmul.mubr.f32.gmra.mrb[0].mxu0 %v2555
      %v2623 = vpop.f32.mrb[0].mxu0
      %v2624 = vadd.f32 0.0, %v2623
      %v2625 = vpop.f32.mrb[0].mxu0
      %2626 = vdwg.mxu0
      %v2627 = vadd.f32 %v2187, %v2624
      %s2628 = scalar_lea.vmem %s1, 360
      %v2629 = vld [vmem:[%s2628] sm:$0xff]
      %v2630 = vld [vmem:[%s2628 + $0x8] sm:$0xff]
      %v2631 = vld [vmem:[%s2628 + $0x10] sm:$0xff]
      %v2632 = vld [vmem:[%s2628 + $0x18] sm:$0xff]
      %v2633 = vld [vmem:[%s2628 + $0x20] sm:$0xff]
      %v2634 = vld [vmem:[%s2628 + $0x28] sm:$0xff]
      %v2635 = vld [vmem:[%s2628 + $0x30] sm:$0xff]
      %v2636 = vld [vmem:[%s2628 + $0x38] sm:$0xff]
      %v2637 = vld [vmem:[%s2628 + $0x40] sm:$0xff]
      %2638 = vmatprep.subr.mxu0 0.0
      %2639 = vmatpush1.msra.mxu0 %v2629
      %2640 = vmatprep.subr.mxu0 0.0
      %2641 = vmatpush1.msra.mxu0 %v2630
      %2642 = vmatprep.subr.mxu0 0.0
      %2643 = vmatpush1.msra.mxu0 %v2631
      %2644 = vmatprep.subr.mxu0 0.0
      %2645 = vmatpush1.msra.mxu0 %v2632
      %2646 = vmatprep.subr.mxu0 0.0
      %2647 = vmatpush1.msra.mxu0 %v2633
      %2648 = vmatprep.subr.mxu0 0.0
      %2649 = vmatpush1.msra.mxu0 %v2634
      %2650 = vmatprep.subr.mxu0 0.0
      %2651 = vmatpush1.msra.mxu0 %v2635
      %2652 = vmatprep.subr.mxu0 0.0
      %2653 = vmatpush1.msra.mxu0 %v2636
      %2654 = vmatprep.subr.mxu0 0.0
      %2655 = vmatpush1.msra.mxu0 %v2637
      %2656 = vmatprep.subr.mxu0 0.0
      %2657 = vmatpush1.msra.mxu0 0.0
      %2658 = vmatprep.subr.mxu0 0.0
      %2659 = vmatpush1.msra.mxu0 0.0
      %2660 = vmatprep.subr.mxu0 0.0
      %2661 = vmatpush1.msra.mxu0 0.0
      %2662 = vmatprep.subr.mxu0 0.0
      %2663 = vmatpush1.msra.mxu0 0.0
      %2664 = vmatprep.subr.mxu0 0.0
      %2665 = vmatpush1.msra.mxu0 0.0
      %2666 = vmatprep.subr.mxu0 0.0
      %2667 = vmatpush1.msra.mxu0 0.0
      %2668 = vmatprep.subr.mxu0 0.0
      %2669 = vmatpush1.msra.mxu0 0.0
      %2670 = vmatprep.subr.mxu0 0.0
      %2671 = vmatpush1.msra.mxu0 0.0
      %2672 = vmatprep.subr.mxu0 0.0
      %2673 = vmatpush1.msra.mxu0 0.0
      %2674 = vmatprep.subr.mxu0 0.0
      %2675 = vmatpush1.msra.mxu0 0.0
      %2676 = vmatprep.subr.mxu0 0.0
      %2677 = vmatpush1.msra.mxu0 0.0
      %2678 = vmatprep.subr.mxu0 0.0
      %2679 = vmatpush1.msra.mxu0 0.0
      %2680 = vmatprep.subr.mxu0 0.0
      %2681 = vmatpush1.msra.mxu0 0.0
      %2682 = vmatprep.subr.mxu0 0.0
      %2683 = vmatpush1.msra.mxu0 0.0
      %2684 = vmatprep.subr.mxu0 0.0
      %2685 = vmatpush1.msra.mxu0 0.0
      %2686 = vmatprep.subr.mxu0 0.0
      %2687 = vmatpush1.msra.mxu0 0.0
      %2688 = vmatprep.subr.mxu0 0.0
      %2689 = vmatpush1.msra.mxu0 0.0
      %2690 = vmatprep.subr.mxu0 0.0
      %2691 = vmatpush1.msra.mxu0 0.0
      %2692 = vmatprep.subr.mxu0 0.0
      %2693 = vmatpush1.msra.mxu0 0.0
      %2694 = vmatprep.subr.mxu0 0.0
      %2695 = vmatpush1.msra.mxu0 0.0
      %2696 = vmatprep.subr.mxu0 0.0
      %2697 = vmatpush1.msra.mxu0 0.0
      %2698 = vmatprep.subr.mxu0 0.0
      %2699 = vmatpush1.msra.mxu0 0.0
      %2700 = vmatprep.subr.mxu0 0.0
      %2701 = vmatpush1.msra.mxu0 0.0
      %2702 = vmatprep.mubr.f32.mxu0 0.0
      %2703 = vmatmul.mubr.f32.gmra.mrb[0].mxu0 %v1010
      %v2704 = vpop.f32.mrb[0].mxu0
      %v2705 = vadd.f32 0.0, %v2704
      %v2706 = vpop.f32.mrb[0].mxu0
      %2707 = vdwg.mxu0
      %v2708 = vadd.f32 %v2268, %v2705
      %2709 = vmatprep.subr.mxu0 0.0
      %2710 = vmatpush1.msra.mxu0 %v2629
      %2711 = vmatprep.subr.mxu0 0.0
      %2712 = vmatpush1.msra.mxu0 %v2630
      %2713 = vmatprep.subr.mxu0 0.0
      %2714 = vmatpush1.msra.mxu0 %v2631
      %2715 = vmatprep.subr.mxu0 0.0
      %2716 = vmatpush1.msra.mxu0 %v2632
      %2717 = vmatprep.subr.mxu0 0.0
      %2718 = vmatpush1.msra.mxu0 %v2633
      %2719 = vmatprep.subr.mxu0 0.0
      %2720 = vmatpush1.msra.mxu0 %v2634
      %2721 = vmatprep.subr.mxu0 0.0
      %2722 = vmatpush1.msra.mxu0 %v2635
      %2723 = vmatprep.subr.mxu0 0.0
      %2724 = vmatpush1.msra.mxu0 %v2636
      %2725 = vmatprep.subr.mxu0 0.0
      %2726 = vmatpush1.msra.mxu0 %v2637
      %2727 = vmatprep.subr.mxu0 0.0
      %2728 = vmatpush1.msra.mxu0 0.0
      %2729 = vmatprep.subr.mxu0 0.0
      %2730 = vmatpush1.msra.mxu0 0.0
      %2731 = vmatprep.subr.mxu0 0.0
      %2732 = vmatpush1.msra.mxu0 0.0
      %2733 = vmatprep.subr.mxu0 0.0
      %2734 = vmatpush1.msra.mxu0 0.0
      %2735 = vmatprep.subr.mxu0 0.0
      %2736 = vmatpush1.msra.mxu0 0.0
      %2737 = vmatprep.subr.mxu0 0.0
      %2738 = vmatpush1.msra.mxu0 0.0
      %2739 = vmatprep.subr.mxu0 0.0
      %2740 = vmatpush1.msra.mxu0 0.0
      %2741 = vmatprep.subr.mxu0 0.0
      %2742 = vmatpush1.msra.mxu0 0.0
      %2743 = vmatprep.subr.mxu0 0.0
      %2744 = vmatpush1.msra.mxu0 0.0
      %2745 = vmatprep.subr.mxu0 0.0
      %2746 = vmatpush1.msra.mxu0 0.0
      %2747 = vmatprep.subr.mxu0 0.0
      %2748 = vmatpush1.msra.mxu0 0.0
      %2749 = vmatprep.subr.mxu0 0.0
      %2750 = vmatpush1.msra.mxu0 0.0
      %2751 = vmatprep.subr.mxu0 0.0
      %2752 = vmatpush1.msra.mxu0 0.0
      %2753 = vmatprep.subr.mxu0 0.0
      %2754 = vmatpush1.msra.mxu0 0.0
      %2755 = vmatprep.subr.mxu0 0.0
      %2756 = vmatpush1.msra.mxu0 0.0
      %2757 = vmatprep.subr.mxu0 0.0
      %2758 = vmatpush1.msra.mxu0 0.0
      %2759 = vmatprep.subr.mxu0 0.0
      %2760 = vmatpush1.msra.mxu0 0.0
      %2761 = vmatprep.subr.mxu0 0.0
      %2762 = vmatpush1.msra.mxu0 0.0
      %2763 = vmatprep.subr.mxu0 0.0
      %2764 = vmatpush1.msra.mxu0 0.0
      %2765 = vmatprep.subr.mxu0 0.0
      %2766 = vmatpush1.msra.mxu0 0.0
      %2767 = vmatprep.subr.mxu0 0.0
      %2768 = vmatpush1.msra.mxu0 0.0
      %2769 = vmatprep.subr.mxu0 0.0
      %2770 = vmatpush1.msra.mxu0 0.0
      %2771 = vmatprep.subr.mxu0 0.0
      %2772 = vmatpush1.msra.mxu0 0.0
      %2773 = vmatprep.mubr.f32.mxu0 0.0
      %2774 = vmatmul.mubr.f32.gmra.mrb[0].mxu0 %v1085
      %v2775 = vpop.f32.mrb[0].mxu0
      %v2776 = vadd.f32 0.0, %v2775
      %v2777 = vpop.f32.mrb[0].mxu0
      %2778 = vdwg.mxu0
      %v2779 = vadd.f32 %v2339, %v2776
      %2780 = vmatprep.subr.mxu0 0.0
      %2781 = vmatpush1.msra.mxu0 %v2629
      %2782 = vmatprep.subr.mxu0 0.0
      %2783 = vmatpush1.msra.mxu0 %v2630
      %2784 = vmatprep.subr.mxu0 0.0
      %2785 = vmatpush1.msra.mxu0 %v2631
      %2786 = vmatprep.subr.mxu0 0.0
      %2787 = vmatpush1.msra.mxu0 %v2632
      %2788 = vmatprep.subr.mxu0 0.0
      %2789 = vmatpush1.msra.mxu0 %v2633
      %2790 = vmatprep.subr.mxu0 0.0
      %2791 = vmatpush1.msra.mxu0 %v2634
      %2792 = vmatprep.subr.mxu0 0.0
      %2793 = vmatpush1.msra.mxu0 %v2635
      %2794 = vmatprep.subr.mxu0 0.0
      %2795 = vmatpush1.msra.mxu0 %v2636
      %2796 = vmatprep.subr.mxu0 0.0
      %2797 = vmatpush1.msra.mxu0 %v2637
      %2798 = vmatprep.subr.mxu0 0.0
      %2799 = vmatpush1.msra.mxu0 0.0
      %2800 = vmatprep.subr.mxu0 0.0
      %2801 = vmatpush1.msra.mxu0 0.0
      %2802 = vmatprep.subr.mxu0 0.0
      %2803 = vmatpush1.msra.mxu0 0.0
      %2804 = vmatprep.subr.mxu0 0.0
      %2805 = vmatpush1.msra.mxu0 0.0
      %2806 = vmatprep.subr.mxu0 0.0
      %2807 = vmatpush1.msra.mxu0 0.0
      %2808 = vmatprep.subr.mxu0 0.0
      %2809 = vmatpush1.msra.mxu0 0.0
      %2810 = vmatprep.subr.mxu0 0.0
      %2811 = vmatpush1.msra.mxu0 0.0
      %2812 = vmatprep.subr.mxu0 0.0
      %2813 = vmatpush1.msra.mxu0 0.0
      %2814 = vmatprep.subr.mxu0 0.0
      %2815 = vmatpush1.msra.mxu0 0.0
      %2816 = vmatprep.subr.mxu0 0.0
      %2817 = vmatpush1.msra.mxu0 0.0
      %2818 = vmatprep.subr.mxu0 0.0
      %2819 = vmatpush1.msra.mxu0 0.0
      %2820 = vmatprep.subr.mxu0 0.0
      %2821 = vmatpush1.msra.mxu0 0.0
      %2822 = vmatprep.subr.mxu0 0.0
      %2823 = vmatpush1.msra.mxu0 0.0
      %2824 = vmatprep.subr.mxu0 0.0
      %2825 = vmatpush1.msra.mxu0 0.0
      %2826 = vmatprep.subr.mxu0 0.0
      %2827 = vmatpush1.msra.mxu0 0.0
      %2828 = vmatprep.subr.mxu0 0.0
      %2829 = vmatpush1.msra.mxu0 0.0
      %2830 = vmatprep.subr.mxu0 0.0
      %2831 = vmatpush1.msra.mxu0 0.0
      %2832 = vmatprep.subr.mxu0 0.0
      %2833 = vmatpush1.msra.mxu0 0.0
      %2834 = vmatprep.subr.mxu0 0.0
      %2835 = vmatpush1.msra.mxu0 0.0
      %2836 = vmatprep.subr.mxu0 0.0
      %2837 = vmatpush1.msra.mxu0 0.0
      %2838 = vmatprep.subr.mxu0 0.0
      %2839 = vmatpush1.msra.mxu0 0.0
      %2840 = vmatprep.subr.mxu0 0.0
      %2841 = vmatpush1.msra.mxu0 0.0
      %2842 = vmatprep.subr.mxu0 0.0
      %2843 = vmatpush1.msra.mxu0 0.0
      %2844 = vmatprep.mubr.f32.mxu0 0.0
      %2845 = vmatmul.mubr.f32.gmra.mrb[0].mxu0 %v1160
      %v2846 = vpop.f32.mrb[0].mxu0
      %v2847 = vadd.f32 0.0, %v2846
      %v2848 = vpop.f32.mrb[0].mxu0
      %2849 = vdwg.mxu0
      %v2850 = vadd.f32 %v2410, %v2847
      %2851 = vmatprep.subr.mxu0 0.0
      %2852 = vmatpush1.msra.mxu0 %v2629
      %2853 = vmatprep.subr.mxu0 0.0
      %2854 = vmatpush1.msra.mxu0 %v2630
      %2855 = vmatprep.subr.mxu0 0.0
      %2856 = vmatpush1.msra.mxu0 %v2631
      %2857 = vmatprep.subr.mxu0 0.0
      %2858 = vmatpush1.msra.mxu0 %v2632
      %2859 = vmatprep.subr.mxu0 0.0
      %2860 = vmatpush1.msra.mxu0 %v2633
      %2861 = vmatprep.subr.mxu0 0.0
      %2862 = vmatpush1.msra.mxu0 %v2634
      %2863 = vmatprep.subr.mxu0 0.0
      %2864 = vmatpush1.msra.mxu0 %v2635
      %2865 = vmatprep.subr.mxu0 0.0
      %2866 = vmatpush1.msra.mxu0 %v2636
      %2867 = vmatprep.subr.mxu0 0.0
      %2868 = vmatpush1.msra.mxu0 %v2637
      %2869 = vmatprep.subr.mxu0 0.0
      %2870 = vmatpush1.msra.mxu0 0.0
      %2871 = vmatprep.subr.mxu0 0.0
      %2872 = vmatpush1.msra.mxu0 0.0
      %2873 = vmatprep.subr.mxu0 0.0
      %2874 = vmatpush1.msra.mxu0 0.0
      %2875 = vmatprep.subr.mxu0 0.0
      %2876 = vmatpush1.msra.mxu0 0.0
      %2877 = vmatprep.subr.mxu0 0.0
      %2878 = vmatpush1.msra.mxu0 0.0
      %2879 = vmatprep.subr.mxu0 0.0
      %2880 = vmatpush1.msra.mxu0 0.0
      %2881 = vmatprep.subr.mxu0 0.0
      %2882 = vmatpush1.msra.mxu0 0.0
      %2883 = vmatprep.subr.mxu0 0.0
      %2884 = vmatpush1.msra.mxu0 0.0
      %2885 = vmatprep.subr.mxu0 0.0
      %2886 = vmatpush1.msra.mxu0 0.0
      %2887 = vmatprep.subr.mxu0 0.0
      %2888 = vmatpush1.msra.mxu0 0.0
      %2889 = vmatprep.subr.mxu0 0.0
      %2890 = vmatpush1.msra.mxu0 0.0
      %2891 = vmatprep.subr.mxu0 0.0
      %2892 = vmatpush1.msra.mxu0 0.0
      %2893 = vmatprep.subr.mxu0 0.0
      %2894 = vmatpush1.msra.mxu0 0.0
      %2895 = vmatprep.subr.mxu0 0.0
      %2896 = vmatpush1.msra.mxu0 0.0
      %2897 = vmatprep.subr.mxu0 0.0
      %2898 = vmatpush1.msra.mxu0 0.0
      %2899 = vmatprep.subr.mxu0 0.0
      %2900 = vmatpush1.msra.mxu0 0.0
      %2901 = vmatprep.subr.mxu0 0.0
      %2902 = vmatpush1.msra.mxu0 0.0
      %2903 = vmatprep.subr.mxu0 0.0
      %2904 = vmatpush1.msra.mxu0 0.0
      %2905 = vmatprep.subr.mxu0 0.0
      %2906 = vmatpush1.msra.mxu0 0.0
      %2907 = vmatprep.subr.mxu0 0.0
      %2908 = vmatpush1.msra.mxu0 0.0
      %2909 = vmatprep.subr.mxu0 0.0
      %2910 = vmatpush1.msra.mxu0 0.0
      %2911 = vmatprep.subr.mxu0 0.0
      %2912 = vmatpush1.msra.mxu0 0.0
      %2913 = vmatprep.subr.mxu0 0.0
      %2914 = vmatpush1.msra.mxu0 0.0
      %2915 = vmatprep.mubr.f32.mxu0 0.0
      %2916 = vmatmul.mubr.f32.gmra.mrb[0].mxu0 %v1235
      %v2917 = vpop.f32.mrb[0].mxu0
      %v2918 = vadd.f32 0.0, %v2917
      %v2919 = vpop.f32.mrb[0].mxu0
      %2920 = vdwg.mxu0
      %v2921 = vadd.f32 %v2481, %v2918
      %2922 = vmatprep.subr.mxu0 0.0
      %2923 = vmatpush1.msra.mxu0 %v2629
      %2924 = vmatprep.subr.mxu0 0.0
      %2925 = vmatpush1.msra.mxu0 %v2630
      %2926 = vmatprep.subr.mxu0 0.0
      %2927 = vmatpush1.msra.mxu0 %v2631
      %2928 = vmatprep.subr.mxu0 0.0
      %2929 = vmatpush1.msra.mxu0 %v2632
      %2930 = vmatprep.subr.mxu0 0.0
      %2931 = vmatpush1.msra.mxu0 %v2633
      %2932 = vmatprep.subr.mxu0 0.0
      %2933 = vmatpush1.msra.mxu0 %v2634
      %2934 = vmatprep.subr.mxu0 0.0
      %2935 = vmatpush1.msra.mxu0 %v2635
      %2936 = vmatprep.subr.mxu0 0.0
      %2937 = vmatpush1.msra.mxu0 %v2636
      %2938 = vmatprep.subr.mxu0 0.0
      %2939 = vmatpush1.msra.mxu0 %v2637
      %2940 = vmatprep.subr.mxu0 0.0
      %2941 = vmatpush1.msra.mxu0 0.0
      %2942 = vmatprep.subr.mxu0 0.0
      %2943 = vmatpush1.msra.mxu0 0.0
      %2944 = vmatprep.subr.mxu0 0.0
      %2945 = vmatpush1.msra.mxu0 0.0
      %2946 = vmatprep.subr.mxu0 0.0
      %2947 = vmatpush1.msra.mxu0 0.0
      %2948 = vmatprep.subr.mxu0 0.0
      %2949 = vmatpush1.msra.mxu0 0.0
      %2950 = vmatprep.subr.mxu0 0.0
      %2951 = vmatpush1.msra.mxu0 0.0
      %2952 = vmatprep.subr.mxu0 0.0
      %2953 = vmatpush1.msra.mxu0 0.0
      %2954 = vmatprep.subr.mxu0 0.0
      %2955 = vmatpush1.msra.mxu0 0.0
      %2956 = vmatprep.subr.mxu0 0.0
      %2957 = vmatpush1.msra.mxu0 0.0
      %2958 = vmatprep.subr.mxu0 0.0
      %2959 = vmatpush1.msra.mxu0 0.0
      %2960 = vmatprep.subr.mxu0 0.0
      %2961 = vmatpush1.msra.mxu0 0.0
      %2962 = vmatprep.subr.mxu0 0.0
      %2963 = vmatpush1.msra.mxu0 0.0
      %2964 = vmatprep.subr.mxu0 0.0
      %2965 = vmatpush1.msra.mxu0 0.0
      %2966 = vmatprep.subr.mxu0 0.0
      %2967 = vmatpush1.msra.mxu0 0.0
      %2968 = vmatprep.subr.mxu0 0.0
      %2969 = vmatpush1.msra.mxu0 0.0
      %2970 = vmatprep.subr.mxu0 0.0
      %2971 = vmatpush1.msra.mxu0 0.0
      %2972 = vmatprep.subr.mxu0 0.0
      %2973 = vmatpush1.msra.mxu0 0.0
      %2974 = vmatprep.subr.mxu0 0.0
      %2975 = vmatpush1.msra.mxu0 0.0
      %2976 = vmatprep.subr.mxu0 0.0
      %2977 = vmatpush1.msra.mxu0 0.0
      %2978 = vmatprep.subr.mxu0 0.0
      %2979 = vmatpush1.msra.mxu0 0.0
      %2980 = vmatprep.subr.mxu0 0.0
      %2981 = vmatpush1.msra.mxu0 0.0
      %2982 = vmatprep.subr.mxu0 0.0
      %2983 = vmatpush1.msra.mxu0 0.0
      %2984 = vmatprep.subr.mxu0 0.0
      %2985 = vmatpush1.msra.mxu0 0.0
      %2986 = vmatprep.mubr.f32.mxu0 0.0
      %2987 = vmatmul.mubr.f32.gmra.mrb[0].mxu0 %v2115
      %v2988 = vpop.f32.mrb[0].mxu0
      %v2989 = vadd.f32 0.0, %v2988
      %v2990 = vpop.f32.mrb[0].mxu0
      %2991 = vdwg.mxu0
      %v2992 = vadd.f32 %v2552, %v2989
      %v2993 = vld [vmem:[%s379 + $0xf] sm:$0x1]
      %v2995 = vsel %vm398, %v2993, 0
      %2997 = vmatprep.subr.mxu0 0.0
      %2998 = vmatpush1.msra.mxu0 %v2629
      %2999 = vmatprep.subr.mxu0 0.0
      %3000 = vmatpush1.msra.mxu0 %v2630
      %3001 = vmatprep.subr.mxu0 0.0
      %3002 = vmatpush1.msra.mxu0 %v2631
      %3003 = vmatprep.subr.mxu0 0.0
      %3004 = vmatpush1.msra.mxu0 %v2632
      %3005 = vmatprep.subr.mxu0 0.0
      %3006 = vmatpush1.msra.mxu0 %v2633
      %3007 = vmatprep.subr.mxu0 0.0
      %3008 = vmatpush1.msra.mxu0 %v2634
      %3009 = vmatprep.subr.mxu0 0.0
      %3010 = vmatpush1.msra.mxu0 %v2635
      %3011 = vmatprep.subr.mxu0 0.0
      %3012 = vmatpush1.msra.mxu0 %v2636
      %3013 = vmatprep.subr.mxu0 0.0
      %3014 = vmatpush1.msra.mxu0 %v2637
      %3015 = vmatprep.subr.mxu0 0.0
      %3016 = vmatpush1.msra.mxu0 0.0
      %3017 = vmatprep.subr.mxu0 0.0
      %3018 = vmatpush1.msra.mxu0 0.0
      %3019 = vmatprep.subr.mxu0 0.0
      %3020 = vmatpush1.msra.mxu0 0.0
      %3021 = vmatprep.subr.mxu0 0.0
      %3022 = vmatpush1.msra.mxu0 0.0
      %3023 = vmatprep.subr.mxu0 0.0
      %3024 = vmatpush1.msra.mxu0 0.0
      %3025 = vmatprep.subr.mxu0 0.0
      %3026 = vmatpush1.msra.mxu0 0.0
      %3027 = vmatprep.subr.mxu0 0.0
      %3028 = vmatpush1.msra.mxu0 0.0
      %3029 = vmatprep.subr.mxu0 0.0
      %3030 = vmatpush1.msra.mxu0 0.0
      %3031 = vmatprep.subr.mxu0 0.0
      %3032 = vmatpush1.msra.mxu0 0.0
      %3033 = vmatprep.subr.mxu0 0.0
      %3034 = vmatpush1.msra.mxu0 0.0
      %3035 = vmatprep.subr.mxu0 0.0
      %3036 = vmatpush1.msra.mxu0 0.0
      %3037 = vmatprep.subr.mxu0 0.0
      %3038 = vmatpush1.msra.mxu0 0.0
      %3039 = vmatprep.subr.mxu0 0.0
      %3040 = vmatpush1.msra.mxu0 0.0
      %3041 = vmatprep.subr.mxu0 0.0
      %3042 = vmatpush1.msra.mxu0 0.0
      %3043 = vmatprep.subr.mxu0 0.0
      %3044 = vmatpush1.msra.mxu0 0.0
      %3045 = vmatprep.subr.mxu0 0.0
      %3046 = vmatpush1.msra.mxu0 0.0
      %3047 = vmatprep.subr.mxu0 0.0
      %3048 = vmatpush1.msra.mxu0 0.0
      %3049 = vmatprep.subr.mxu0 0.0
      %3050 = vmatpush1.msra.mxu0 0.0
      %3051 = vmatprep.subr.mxu0 0.0
      %3052 = vmatpush1.msra.mxu0 0.0
      %3053 = vmatprep.subr.mxu0 0.0
      %3054 = vmatpush1.msra.mxu0 0.0
      %3055 = vmatprep.subr.mxu0 0.0
      %3056 = vmatpush1.msra.mxu0 0.0
      %3057 = vmatprep.subr.mxu0 0.0
      %3058 = vmatpush1.msra.mxu0 0.0
      %3059 = vmatprep.subr.mxu0 0.0
      %3060 = vmatpush1.msra.mxu0 0.0
      %3061 = vmatprep.mubr.f32.mxu0 0.0
      %3062 = vmatmul.mubr.f32.gmra.mrb[0].mxu0 %v2995
      %v3063 = vpop.f32.mrb[0].mxu0
      %v3064 = vadd.f32 0.0, %v3063
      %v3065 = vpop.f32.mrb[0].mxu0
      %3066 = vdwg.mxu0
      %v3067 = vadd.f32 %v2627, %v3064
      %s3068 = scalar_lea.vmem %s1, 432
      %v3069 = vld [vmem:[%s3068] sm:$0xff]
      %v3070 = vld [vmem:[%s3068 + $0x8] sm:$0xff]
      %v3071 = vld [vmem:[%s3068 + $0x10] sm:$0xff]
      %v3072 = vld [vmem:[%s3068 + $0x18] sm:$0xff]
      %v3073 = vld [vmem:[%s3068 + $0x20] sm:$0xff]
      %v3074 = vld [vmem:[%s3068 + $0x28] sm:$0xff]
      %v3075 = vld [vmem:[%s3068 + $0x30] sm:$0xff]
      %v3076 = vld [vmem:[%s3068 + $0x38] sm:$0xff]
      %v3077 = vld [vmem:[%s3068 + $0x40] sm:$0xff]
      %3078 = vmatprep.subr.mxu0 0.0
      %3079 = vmatpush1.msra.mxu0 %v3069
      %3080 = vmatprep.subr.mxu0 0.0
      %3081 = vmatpush1.msra.mxu0 %v3070
      %3082 = vmatprep.subr.mxu0 0.0
      %3083 = vmatpush1.msra.mxu0 %v3071
      %3084 = vmatprep.subr.mxu0 0.0
      %3085 = vmatpush1.msra.mxu0 %v3072
      %3086 = vmatprep.subr.mxu0 0.0
      %3087 = vmatpush1.msra.mxu0 %v3073
      %3088 = vmatprep.subr.mxu0 0.0
      %3089 = vmatpush1.msra.mxu0 %v3074
      %3090 = vmatprep.subr.mxu0 0.0
      %3091 = vmatpush1.msra.mxu0 %v3075
      %3092 = vmatprep.subr.mxu0 0.0
      %3093 = vmatpush1.msra.mxu0 %v3076
      %3094 = vmatprep.subr.mxu0 0.0
      %3095 = vmatpush1.msra.mxu0 %v3077
      %3096 = vmatprep.subr.mxu0 0.0
      %3097 = vmatpush1.msra.mxu0 0.0
      %3098 = vmatprep.subr.mxu0 0.0
      %3099 = vmatpush1.msra.mxu0 0.0
      %3100 = vmatprep.subr.mxu0 0.0
      %3101 = vmatpush1.msra.mxu0 0.0
      %3102 = vmatprep.subr.mxu0 0.0
      %3103 = vmatpush1.msra.mxu0 0.0
      %3104 = vmatprep.subr.mxu0 0.0
      %3105 = vmatpush1.msra.mxu0 0.0
      %3106 = vmatprep.subr.mxu0 0.0
      %3107 = vmatpush1.msra.mxu0 0.0
      %3108 = vmatprep.subr.mxu0 0.0
      %3109 = vmatpush1.msra.mxu0 0.0
      %3110 = vmatprep.subr.mxu0 0.0
      %3111 = vmatpush1.msra.mxu0 0.0
      %3112 = vmatprep.subr.mxu0 0.0
      %3113 = vmatpush1.msra.mxu0 0.0
      %3114 = vmatprep.subr.mxu0 0.0
      %3115 = vmatpush1.msra.mxu0 0.0
      %3116 = vmatprep.subr.mxu0 0.0
      %3117 = vmatpush1.msra.mxu0 0.0
      %3118 = vmatprep.subr.mxu0 0.0
      %3119 = vmatpush1.msra.mxu0 0.0
      %3120 = vmatprep.subr.mxu0 0.0
      %3121 = vmatpush1.msra.mxu0 0.0
      %3122 = vmatprep.subr.mxu0 0.0
      %3123 = vmatpush1.msra.mxu0 0.0
      %3124 = vmatprep.subr.mxu0 0.0
      %3125 = vmatpush1.msra.mxu0 0.0
      %3126 = vmatprep.subr.mxu0 0.0
      %3127 = vmatpush1.msra.mxu0 0.0
      %3128 = vmatprep.subr.mxu0 0.0
      %3129 = vmatpush1.msra.mxu0 0.0
      %3130 = vmatprep.subr.mxu0 0.0
      %3131 = vmatpush1.msra.mxu0 0.0
      %3132 = vmatprep.subr.mxu0 0.0
      %3133 = vmatpush1.msra.mxu0 0.0
      %3134 = vmatprep.subr.mxu0 0.0
      %3135 = vmatpush1.msra.mxu0 0.0
      %3136 = vmatprep.subr.mxu0 0.0
      %3137 = vmatpush1.msra.mxu0 0.0
      %3138 = vmatprep.subr.mxu0 0.0
      %3139 = vmatpush1.msra.mxu0 0.0
      %3140 = vmatprep.subr.mxu0 0.0
      %3141 = vmatpush1.msra.mxu0 0.0
      %3142 = vmatprep.mubr.f32.mxu0 0.0
      %3143 = vmatmul.mubr.f32.gmra.mrb[0].mxu0 %v625
      %v3144 = vpop.f32.mrb[0].mxu0
      %v3145 = vadd.f32 0.0, %v3144
      %v3146 = vpop.f32.mrb[0].mxu0
      %3147 = vdwg.mxu0
      %v3148 = vadd.f32 %v2708, %v3145
      %3149 = vmatprep.subr.mxu0 0.0
      %3150 = vmatpush1.msra.mxu0 %v3069
      %3151 = vmatprep.subr.mxu0 0.0
      %3152 = vmatpush1.msra.mxu0 %v3070
      %3153 = vmatprep.subr.mxu0 0.0
      %3154 = vmatpush1.msra.mxu0 %v3071
      %3155 = vmatprep.subr.mxu0 0.0
      %3156 = vmatpush1.msra.mxu0 %v3072
      %3157 = vmatprep.subr.mxu0 0.0
      %3158 = vmatpush1.msra.mxu0 %v3073
      %3159 = vmatprep.subr.mxu0 0.0
      %3160 = vmatpush1.msra.mxu0 %v3074
      %3161 = vmatprep.subr.mxu0 0.0
      %3162 = vmatpush1.msra.mxu0 %v3075
      %3163 = vmatprep.subr.mxu0 0.0
      %3164 = vmatpush1.msra.mxu0 %v3076
      %3165 = vmatprep.subr.mxu0 0.0
      %3166 = vmatpush1.msra.mxu0 %v3077
      %3167 = vmatprep.subr.mxu0 0.0
      %3168 = vmatpush1.msra.mxu0 0.0
      %3169 = vmatprep.subr.mxu0 0.0
      %3170 = vmatpush1.msra.mxu0 0.0
      %3171 = vmatprep.subr.mxu0 0.0
      %3172 = vmatpush1.msra.mxu0 0.0
      %3173 = vmatprep.subr.mxu0 0.0
      %3174 = vmatpush1.msra.mxu0 0.0
      %3175 = vmatprep.subr.mxu0 0.0
      %3176 = vmatpush1.msra.mxu0 0.0
      %3177 = vmatprep.subr.mxu0 0.0
      %3178 = vmatpush1.msra.mxu0 0.0
      %3179 = vmatprep.subr.mxu0 0.0
      %3180 = vmatpush1.msra.mxu0 0.0
      %3181 = vmatprep.subr.mxu0 0.0
      %3182 = vmatpush1.msra.mxu0 0.0
      %3183 = vmatprep.subr.mxu0 0.0
      %3184 = vmatpush1.msra.mxu0 0.0
      %3185 = vmatprep.subr.mxu0 0.0
      %3186 = vmatpush1.msra.mxu0 0.0
      %3187 = vmatprep.subr.mxu0 0.0
      %3188 = vmatpush1.msra.mxu0 0.0
      %3189 = vmatprep.subr.mxu0 0.0
      %3190 = vmatpush1.msra.mxu0 0.0
      %3191 = vmatprep.subr.mxu0 0.0
      %3192 = vmatpush1.msra.mxu0 0.0
      %3193 = vmatprep.subr.mxu0 0.0
      %3194 = vmatpush1.msra.mxu0 0.0
      %3195 = vmatprep.subr.mxu0 0.0
      %3196 = vmatpush1.msra.mxu0 0.0
      %3197 = vmatprep.subr.mxu0 0.0
      %3198 = vmatpush1.msra.mxu0 0.0
      %3199 = vmatprep.subr.mxu0 0.0
      %3200 = vmatpush1.msra.mxu0 0.0
      %3201 = vmatprep.subr.mxu0 0.0
      %3202 = vmatpush1.msra.mxu0 0.0
      %3203 = vmatprep.subr.mxu0 0.0
      %3204 = vmatpush1.msra.mxu0 0.0
      %3205 = vmatprep.subr.mxu0 0.0
      %3206 = vmatpush1.msra.mxu0 0.0
      %3207 = vmatprep.subr.mxu0 0.0
      %3208 = vmatpush1.msra.mxu0 0.0
      %3209 = vmatprep.subr.mxu0 0.0
      %3210 = vmatpush1.msra.mxu0 0.0
      %3211 = vmatprep.subr.mxu0 0.0
      %3212 = vmatpush1.msra.mxu0 0.0
      %3213 = vmatprep.mubr.f32.mxu0 0.0
      %3214 = vmatmul.mubr.f32.gmra.mrb[0].mxu0 %v700
      %v3215 = vpop.f32.mrb[0].mxu0
      %v3216 = vadd.f32 0.0, %v3215
      %v3217 = vpop.f32.mrb[0].mxu0
      %3218 = vdwg.mxu0
      %v3219 = vadd.f32 %v2779, %v3216
      %3220 = vmatprep.subr.mxu0 0.0
      %3221 = vmatpush1.msra.mxu0 %v3069
      %3222 = vmatprep.subr.mxu0 0.0
      %3223 = vmatpush1.msra.mxu0 %v3070
      %3224 = vmatprep.subr.mxu0 0.0
      %3225 = vmatpush1.msra.mxu0 %v3071
      %3226 = vmatprep.subr.mxu0 0.0
      %3227 = vmatpush1.msra.mxu0 %v3072
      %3228 = vmatprep.subr.mxu0 0.0
      %3229 = vmatpush1.msra.mxu0 %v3073
      %3230 = vmatprep.subr.mxu0 0.0
      %3231 = vmatpush1.msra.mxu0 %v3074
      %3232 = vmatprep.subr.mxu0 0.0
      %3233 = vmatpush1.msra.mxu0 %v3075
      %3234 = vmatprep.subr.mxu0 0.0
      %3235 = vmatpush1.msra.mxu0 %v3076
      %3236 = vmatprep.subr.mxu0 0.0
      %3237 = vmatpush1.msra.mxu0 %v3077
      %3238 = vmatprep.subr.mxu0 0.0
      %3239 = vmatpush1.msra.mxu0 0.0
      %3240 = vmatprep.subr.mxu0 0.0
      %3241 = vmatpush1.msra.mxu0 0.0
      %3242 = vmatprep.subr.mxu0 0.0
      %3243 = vmatpush1.msra.mxu0 0.0
      %3244 = vmatprep.subr.mxu0 0.0
      %3245 = vmatpush1.msra.mxu0 0.0
      %3246 = vmatprep.subr.mxu0 0.0
      %3247 = vmatpush1.msra.mxu0 0.0
      %3248 = vmatprep.subr.mxu0 0.0
      %3249 = vmatpush1.msra.mxu0 0.0
      %3250 = vmatprep.subr.mxu0 0.0
      %3251 = vmatpush1.msra.mxu0 0.0
      %3252 = vmatprep.subr.mxu0 0.0
      %3253 = vmatpush1.msra.mxu0 0.0
      %3254 = vmatprep.subr.mxu0 0.0
      %3255 = vmatpush1.msra.mxu0 0.0
      %3256 = vmatprep.subr.mxu0 0.0
      %3257 = vmatpush1.msra.mxu0 0.0
      %3258 = vmatprep.subr.mxu0 0.0
      %3259 = vmatpush1.msra.mxu0 0.0
      %3260 = vmatprep.subr.mxu0 0.0
      %3261 = vmatpush1.msra.mxu0 0.0
      %3262 = vmatprep.subr.mxu0 0.0
      %3263 = vmatpush1.msra.mxu0 0.0
      %3264 = vmatprep.subr.mxu0 0.0
      %3265 = vmatpush1.msra.mxu0 0.0
      %3266 = vmatprep.subr.mxu0 0.0
      %3267 = vmatpush1.msra.mxu0 0.0
      %3268 = vmatprep.subr.mxu0 0.0
      %3269 = vmatpush1.msra.mxu0 0.0
      %3270 = vmatprep.subr.mxu0 0.0
      %3271 = vmatpush1.msra.mxu0 0.0
      %3272 = vmatprep.subr.mxu0 0.0
      %3273 = vmatpush1.msra.mxu0 0.0
      %3274 = vmatprep.subr.mxu0 0.0
      %3275 = vmatpush1.msra.mxu0 0.0
      %3276 = vmatprep.subr.mxu0 0.0
      %3277 = vmatpush1.msra.mxu0 0.0
      %3278 = vmatprep.subr.mxu0 0.0
      %3279 = vmatpush1.msra.mxu0 0.0
      %3280 = vmatprep.subr.mxu0 0.0
      %3281 = vmatpush1.msra.mxu0 0.0
      %3282 = vmatprep.subr.mxu0 0.0
      %3283 = vmatpush1.msra.mxu0 0.0
      %3284 = vmatprep.mubr.f32.mxu0 0.0
      %3285 = vmatmul.mubr.f32.gmra.mrb[0].mxu0 %v775
      %v3286 = vpop.f32.mrb[0].mxu0
      %v3287 = vadd.f32 0.0, %v3286
      %v3288 = vpop.f32.mrb[0].mxu0
      %3289 = vdwg.mxu0
      %v3290 = vadd.f32 %v2850, %v3287
      %3291 = vmatprep.subr.mxu0 0.0
      %3292 = vmatpush1.msra.mxu0 %v3069
      %3293 = vmatprep.subr.mxu0 0.0
      %3294 = vmatpush1.msra.mxu0 %v3070
      %3295 = vmatprep.subr.mxu0 0.0
      %3296 = vmatpush1.msra.mxu0 %v3071
      %3297 = vmatprep.subr.mxu0 0.0
      %3298 = vmatpush1.msra.mxu0 %v3072
      %3299 = vmatprep.subr.mxu0 0.0
      %3300 = vmatpush1.msra.mxu0 %v3073
      %3301 = vmatprep.subr.mxu0 0.0
      %3302 = vmatpush1.msra.mxu0 %v3074
      %3303 = vmatprep.subr.mxu0 0.0
      %3304 = vmatpush1.msra.mxu0 %v3075
      %3305 = vmatprep.subr.mxu0 0.0
      %3306 = vmatpush1.msra.mxu0 %v3076
      %3307 = vmatprep.subr.mxu0 0.0
      %3308 = vmatpush1.msra.mxu0 %v3077
      %3309 = vmatprep.subr.mxu0 0.0
      %3310 = vmatpush1.msra.mxu0 0.0
      %3311 = vmatprep.subr.mxu0 0.0
      %3312 = vmatpush1.msra.mxu0 0.0
      %3313 = vmatprep.subr.mxu0 0.0
      %3314 = vmatpush1.msra.mxu0 0.0
      %3315 = vmatprep.subr.mxu0 0.0
      %3316 = vmatpush1.msra.mxu0 0.0
      %3317 = vmatprep.subr.mxu0 0.0
      %3318 = vmatpush1.msra.mxu0 0.0
      %3319 = vmatprep.subr.mxu0 0.0
      %3320 = vmatpush1.msra.mxu0 0.0
      %3321 = vmatprep.subr.mxu0 0.0
      %3322 = vmatpush1.msra.mxu0 0.0
      %3323 = vmatprep.subr.mxu0 0.0
      %3324 = vmatpush1.msra.mxu0 0.0
      %3325 = vmatprep.subr.mxu0 0.0
      %3326 = vmatpush1.msra.mxu0 0.0
      %3327 = vmatprep.subr.mxu0 0.0
      %3328 = vmatpush1.msra.mxu0 0.0
      %3329 = vmatprep.subr.mxu0 0.0
      %3330 = vmatpush1.msra.mxu0 0.0
      %3331 = vmatprep.subr.mxu0 0.0
      %3332 = vmatpush1.msra.mxu0 0.0
      %3333 = vmatprep.subr.mxu0 0.0
      %3334 = vmatpush1.msra.mxu0 0.0
      %3335 = vmatprep.subr.mxu0 0.0
      %3336 = vmatpush1.msra.mxu0 0.0
      %3337 = vmatprep.subr.mxu0 0.0
      %3338 = vmatpush1.msra.mxu0 0.0
      %3339 = vmatprep.subr.mxu0 0.0
      %3340 = vmatpush1.msra.mxu0 0.0
      %3341 = vmatprep.subr.mxu0 0.0
      %3342 = vmatpush1.msra.mxu0 0.0
      %3343 = vmatprep.subr.mxu0 0.0
      %3344 = vmatpush1.msra.mxu0 0.0
      %3345 = vmatprep.subr.mxu0 0.0
      %3346 = vmatpush1.msra.mxu0 0.0
      %3347 = vmatprep.subr.mxu0 0.0
      %3348 = vmatpush1.msra.mxu0 0.0
      %3349 = vmatprep.subr.mxu0 0.0
      %3350 = vmatpush1.msra.mxu0 0.0
      %3351 = vmatprep.subr.mxu0 0.0
      %3352 = vmatpush1.msra.mxu0 0.0
      %3353 = vmatprep.subr.mxu0 0.0
      %3354 = vmatpush1.msra.mxu0 0.0
      %3355 = vmatprep.mubr.f32.mxu0 0.0
      %3356 = vmatmul.mubr.f32.gmra.mrb[0].mxu0 %v1675
      %v3357 = vpop.f32.mrb[0].mxu0
      %v3358 = vadd.f32 0.0, %v3357
      %v3359 = vpop.f32.mrb[0].mxu0
      %3360 = vdwg.mxu0
      %v3361 = vadd.f32 %v2921, %v3358
      %3362 = vmatprep.subr.mxu0 0.0
      %3363 = vmatpush1.msra.mxu0 %v3069
      %3364 = vmatprep.subr.mxu0 0.0
      %3365 = vmatpush1.msra.mxu0 %v3070
      %3366 = vmatprep.subr.mxu0 0.0
      %3367 = vmatpush1.msra.mxu0 %v3071
      %3368 = vmatprep.subr.mxu0 0.0
      %3369 = vmatpush1.msra.mxu0 %v3072
      %3370 = vmatprep.subr.mxu0 0.0
      %3371 = vmatpush1.msra.mxu0 %v3073
      %3372 = vmatprep.subr.mxu0 0.0
      %3373 = vmatpush1.msra.mxu0 %v3074
      %3374 = vmatprep.subr.mxu0 0.0
      %3375 = vmatpush1.msra.mxu0 %v3075
      %3376 = vmatprep.subr.mxu0 0.0
      %3377 = vmatpush1.msra.mxu0 %v3076
      %3378 = vmatprep.subr.mxu0 0.0
      %3379 = vmatpush1.msra.mxu0 %v3077
      %3380 = vmatprep.subr.mxu0 0.0
      %3381 = vmatpush1.msra.mxu0 0.0
      %3382 = vmatprep.subr.mxu0 0.0
      %3383 = vmatpush1.msra.mxu0 0.0
      %3384 = vmatprep.subr.mxu0 0.0
      %3385 = vmatpush1.msra.mxu0 0.0
      %3386 = vmatprep.subr.mxu0 0.0
      %3387 = vmatpush1.msra.mxu0 0.0
      %3388 = vmatprep.subr.mxu0 0.0
      %3389 = vmatpush1.msra.mxu0 0.0
      %3390 = vmatprep.subr.mxu0 0.0
      %3391 = vmatpush1.msra.mxu0 0.0
      %3392 = vmatprep.subr.mxu0 0.0
      %3393 = vmatpush1.msra.mxu0 0.0
      %3394 = vmatprep.subr.mxu0 0.0
      %3395 = vmatpush1.msra.mxu0 0.0
      %3396 = vmatprep.subr.mxu0 0.0
      %3397 = vmatpush1.msra.mxu0 0.0
      %3398 = vmatprep.subr.mxu0 0.0
      %3399 = vmatpush1.msra.mxu0 0.0
      %3400 = vmatprep.subr.mxu0 0.0
      %3401 = vmatpush1.msra.mxu0 0.0
      %3402 = vmatprep.subr.mxu0 0.0
      %3403 = vmatpush1.msra.mxu0 0.0
      %3404 = vmatprep.subr.mxu0 0.0
      %3405 = vmatpush1.msra.mxu0 0.0
      %3406 = vmatprep.subr.mxu0 0.0
      %3407 = vmatpush1.msra.mxu0 0.0
      %3408 = vmatprep.subr.mxu0 0.0
      %3409 = vmatpush1.msra.mxu0 0.0
      %3410 = vmatprep.subr.mxu0 0.0
      %3411 = vmatpush1.msra.mxu0 0.0
      %3412 = vmatprep.subr.mxu0 0.0
      %3413 = vmatpush1.msra.mxu0 0.0
      %3414 = vmatprep.subr.mxu0 0.0
      %3415 = vmatpush1.msra.mxu0 0.0
      %3416 = vmatprep.subr.mxu0 0.0
      %3417 = vmatpush1.msra.mxu0 0.0
      %3418 = vmatprep.subr.mxu0 0.0
      %3419 = vmatpush1.msra.mxu0 0.0
      %3420 = vmatprep.subr.mxu0 0.0
      %3421 = vmatpush1.msra.mxu0 0.0
      %3422 = vmatprep.subr.mxu0 0.0
      %3423 = vmatpush1.msra.mxu0 0.0
      %3424 = vmatprep.subr.mxu0 0.0
      %3425 = vmatpush1.msra.mxu0 0.0
      %3426 = vmatprep.mubr.f32.mxu0 0.0
      %3427 = vmatmul.mubr.f32.gmra.mrb[0].mxu0 %v2555
      %v3428 = vpop.f32.mrb[0].mxu0
      %v3429 = vadd.f32 0.0, %v3428
      %v3430 = vpop.f32.mrb[0].mxu0
      %3431 = vdwg.mxu0
      %v3432 = vadd.f32 %v2992, %v3429
      %v3433 = vld [vmem:[%s379 + $0x10] sm:$0x1]
      %v3435 = vsel %vm398, %v3433, 0
      %3437 = vmatprep.subr.mxu0 0.0
      %3438 = vmatpush1.msra.mxu0 %v3069
      %3439 = vmatprep.subr.mxu0 0.0
      %3440 = vmatpush1.msra.mxu0 %v3070
      %3441 = vmatprep.subr.mxu0 0.0
      %3442 = vmatpush1.msra.mxu0 %v3071
      %3443 = vmatprep.subr.mxu0 0.0
      %3444 = vmatpush1.msra.mxu0 %v3072
      %3445 = vmatprep.subr.mxu0 0.0
      %3446 = vmatpush1.msra.mxu0 %v3073
      %3447 = vmatprep.subr.mxu0 0.0
      %3448 = vmatpush1.msra.mxu0 %v3074
      %3449 = vmatprep.subr.mxu0 0.0
      %3450 = vmatpush1.msra.mxu0 %v3075
      %3451 = vmatprep.subr.mxu0 0.0
      %3452 = vmatpush1.msra.mxu0 %v3076
      %3453 = vmatprep.subr.mxu0 0.0
      %3454 = vmatpush1.msra.mxu0 %v3077
      %3455 = vmatprep.subr.mxu0 0.0
      %3456 = vmatpush1.msra.mxu0 0.0
      %3457 = vmatprep.subr.mxu0 0.0
      %3458 = vmatpush1.msra.mxu0 0.0
      %3459 = vmatprep.subr.mxu0 0.0
      %3460 = vmatpush1.msra.mxu0 0.0
      %3461 = vmatprep.subr.mxu0 0.0
      %3462 = vmatpush1.msra.mxu0 0.0
      %3463 = vmatprep.subr.mxu0 0.0
      %3464 = vmatpush1.msra.mxu0 0.0
      %3465 = vmatprep.subr.mxu0 0.0
      %3466 = vmatpush1.msra.mxu0 0.0
      %3467 = vmatprep.subr.mxu0 0.0
      %3468 = vmatpush1.msra.mxu0 0.0
      %3469 = vmatprep.subr.mxu0 0.0
      %3470 = vmatpush1.msra.mxu0 0.0
      %3471 = vmatprep.subr.mxu0 0.0
      %3472 = vmatpush1.msra.mxu0 0.0
      %3473 = vmatprep.subr.mxu0 0.0
      %3474 = vmatpush1.msra.mxu0 0.0
      %3475 = vmatprep.subr.mxu0 0.0
      %3476 = vmatpush1.msra.mxu0 0.0
      %3477 = vmatprep.subr.mxu0 0.0
      %3478 = vmatpush1.msra.mxu0 0.0
      %3479 = vmatprep.subr.mxu0 0.0
      %3480 = vmatpush1.msra.mxu0 0.0
      %3481 = vmatprep.subr.mxu0 0.0
      %3482 = vmatpush1.msra.mxu0 0.0
      %3483 = vmatprep.subr.mxu0 0.0
      %3484 = vmatpush1.msra.mxu0 0.0
      %3485 = vmatprep.subr.mxu0 0.0
      %3486 = vmatpush1.msra.mxu0 0.0
      %3487 = vmatprep.subr.mxu0 0.0
      %3488 = vmatpush1.msra.mxu0 0.0
      %3489 = vmatprep.subr.mxu0 0.0
      %3490 = vmatpush1.msra.mxu0 0.0
      %3491 = vmatprep.subr.mxu0 0.0
      %3492 = vmatpush1.msra.mxu0 0.0
      %3493 = vmatprep.subr.mxu0 0.0
      %3494 = vmatpush1.msra.mxu0 0.0
      %3495 = vmatprep.subr.mxu0 0.0
      %3496 = vmatpush1.msra.mxu0 0.0
      %3497 = vmatprep.subr.mxu0 0.0
      %3498 = vmatpush1.msra.mxu0 0.0
      %3499 = vmatprep.subr.mxu0 0.0
      %3500 = vmatpush1.msra.mxu0 0.0
      %3501 = vmatprep.mubr.f32.mxu0 0.0
      %3502 = vmatmul.mubr.f32.gmra.mrb[0].mxu0 %v3435
      %v3503 = vpop.f32.mrb[0].mxu0
      %v3504 = vadd.f32 0.0, %v3503
      %v3505 = vpop.f32.mrb[0].mxu0
      %3506 = vdwg.mxu0
      %v3507 = vadd.f32 %v3067, %v3504
      %v3508 = vmax.f32 %v3148, 0.0
      %vm3509 = vcmask 516096
      %3510 = vst.msk [vmem:[#allocation2 + $0x1] sm:$0x1] %vm3509, %v3508
      %v3511 = vmax.f32 %v3219, 0.0
      %3512 = vst.msk [vmem:[#allocation2 + $0x2] sm:$0x1] %vm3509, %v3511
      %v3513 = vmax.f32 %v3290, 0.0
      %3514 = vst.msk [vmem:[#allocation2 + $0x3] sm:$0x1] %vm3509, %v3513
      %v3515 = vmax.f32 %v3361, 0.0
      %3516 = vst.msk [vmem:[#allocation2 + $0x4] sm:$0x1] %vm3509, %v3515
      %v3517 = vmax.f32 %v3432, 0.0
      %3518 = vst.msk [vmem:[#allocation2 + $0x5] sm:$0x1] %vm3509, %v3517
      %v3519 = vmax.f32 %v3507, 0.0
      %3520 = vst.msk [vmem:[#allocation2 + $0x6] sm:$0x1] %vm3509, %v3519
      %v3521 = vld [vmem:[%s4] sm:$0x1]
      %v3522 = vld [vmem:[%s3] sm:$0xff]
      %v3523 = vld [vmem:[%s3 + $0x8] sm:$0xff]
      %v3524 = vld [vmem:[%s3 + $0x10] sm:$0xff]
      %v3525 = vld [vmem:[%s3 + $0x18] sm:$0xff]
      %v3526 = vld [vmem:[%s3 + $0x20] sm:$0xff]
      %v3527 = vld [vmem:[%s3 + $0x28] sm:$0xff]
      %v3528 = vld [vmem:[%s3 + $0x30] sm:$0xff]
      %v3529 = vld [vmem:[%s3 + $0x38] sm:$0xff]
      %v3530 = vld [vmem:[#allocation2] sm:$0x1]
      %v3532 = vsel %vm383, %v3530, 0
      %3534 = vmatprep.subr.mxu0 0.0
      %3535 = vmatpush1.msra.mxu0 %v3522
      %3536 = vmatprep.subr.mxu0 0.0
      %3537 = vmatpush1.msra.mxu0 %v3523
      %3538 = vmatprep.subr.mxu0 0.0
      %3539 = vmatpush1.msra.mxu0 %v3524
      %3540 = vmatprep.subr.mxu0 0.0
      %3541 = vmatpush1.msra.mxu0 %v3525
      %3542 = vmatprep.subr.mxu0 0.0
      %3543 = vmatpush1.msra.mxu0 %v3526
      %3544 = vmatprep.subr.mxu0 0.0
      %3545 = vmatpush1.msra.mxu0 %v3527
      %3546 = vmatprep.subr.mxu0 0.0
      %3547 = vmatpush1.msra.mxu0 %v3528
      %3548 = vmatprep.subr.mxu0 0.0
      %3549 = vmatpush1.msra.mxu0 %v3529
      %3550 = vmatprep.subr.mxu0 0.0
      %3551 = vmatpush1.msra.mxu0 0.0
      %3552 = vmatprep.subr.mxu0 0.0
      %3553 = vmatpush1.msra.mxu0 0.0
      %3554 = vmatprep.subr.mxu0 0.0
      %3555 = vmatpush1.msra.mxu0 0.0
      %3556 = vmatprep.subr.mxu0 0.0
      %3557 = vmatpush1.msra.mxu0 0.0
      %3558 = vmatprep.subr.mxu0 0.0
      %3559 = vmatpush1.msra.mxu0 0.0
      %3560 = vmatprep.subr.mxu0 0.0
      %3561 = vmatpush1.msra.mxu0 0.0
      %3562 = vmatprep.subr.mxu0 0.0
      %3563 = vmatpush1.msra.mxu0 0.0
      %3564 = vmatprep.subr.mxu0 0.0
      %3565 = vmatpush1.msra.mxu0 0.0
      %3566 = vmatprep.subr.mxu0 0.0
      %3567 = vmatpush1.msra.mxu0 0.0
      %3568 = vmatprep.subr.mxu0 0.0
      %3569 = vmatpush1.msra.mxu0 0.0
      %3570 = vmatprep.subr.mxu0 0.0
      %3571 = vmatpush1.msra.mxu0 0.0
      %3572 = vmatprep.subr.mxu0 0.0
      %3573 = vmatpush1.msra.mxu0 0.0
      %3574 = vmatprep.subr.mxu0 0.0
      %3575 = vmatpush1.msra.mxu0 0.0
      %3576 = vmatprep.subr.mxu0 0.0
      %3577 = vmatpush1.msra.mxu0 0.0
      %3578 = vmatprep.subr.mxu0 0.0
      %3579 = vmatpush1.msra.mxu0 0.0
      %3580 = vmatprep.subr.mxu0 0.0
      %3581 = vmatpush1.msra.mxu0 0.0
      %3582 = vmatprep.subr.mxu0 0.0
      %3583 = vmatpush1.msra.mxu0 0.0
      %3584 = vmatprep.subr.mxu0 0.0
      %3585 = vmatpush1.msra.mxu0 0.0
      %3586 = vmatprep.subr.mxu0 0.0
      %3587 = vmatpush1.msra.mxu0 0.0
      %3588 = vmatprep.subr.mxu0 0.0
      %3589 = vmatpush1.msra.mxu0 0.0
      %3590 = vmatprep.subr.mxu0 0.0
      %3591 = vmatpush1.msra.mxu0 0.0
      %3592 = vmatprep.subr.mxu0 0.0
      %3593 = vmatpush1.msra.mxu0 0.0
      %3594 = vmatprep.subr.mxu0 0.0
      %3595 = vmatpush1.msra.mxu0 0.0
      %3596 = vmatprep.subr.mxu0 0.0
      %3597 = vmatpush1.msra.mxu0 0.0
      %3598 = vmatprep.mubr.f32.mxu0 0.0
      %3599 = vmatmul.mubr.f32.gmra.mrb[0].mxu0 %v3532
      %v3600 = vpop.f32.mrb[0].mxu0
      %v3601 = vadd.f32 0.0, %v3600
      %v3602 = vpop.f32.mrb[0].mxu0
      %3603 = vdwg.mxu0
      %v3604 = vadd.f32 %v3521, %v3601
      %v3605 = vld [vmem:[#allocation2 + $0x2] sm:$0x1]
      %v3607 = vsel %vm383, %v3605, 0
      %3609 = vmatprep.subr.mxu0 0.0
      %3610 = vmatpush1.msra.mxu0 %v3522
      %3611 = vmatprep.subr.mxu0 0.0
      %3612 = vmatpush1.msra.mxu0 %v3523
      %3613 = vmatprep.subr.mxu0 0.0
      %3614 = vmatpush1.msra.mxu0 %v3524
      %3615 = vmatprep.subr.mxu0 0.0
      %3616 = vmatpush1.msra.mxu0 %v3525
      %3617 = vmatprep.subr.mxu0 0.0
      %3618 = vmatpush1.msra.mxu0 %v3526
      %3619 = vmatprep.subr.mxu0 0.0
      %3620 = vmatpush1.msra.mxu0 %v3527
      %3621 = vmatprep.subr.mxu0 0.0
      %3622 = vmatpush1.msra.mxu0 %v3528
      %3623 = vmatprep.subr.mxu0 0.0
      %3624 = vmatpush1.msra.mxu0 %v3529
      %3625 = vmatprep.subr.mxu0 0.0
      %3626 = vmatpush1.msra.mxu0 0.0
      %3627 = vmatprep.subr.mxu0 0.0
      %3628 = vmatpush1.msra.mxu0 0.0
      %3629 = vmatprep.subr.mxu0 0.0
      %3630 = vmatpush1.msra.mxu0 0.0
      %3631 = vmatprep.subr.mxu0 0.0
      %3632 = vmatpush1.msra.mxu0 0.0
      %3633 = vmatprep.subr.mxu0 0.0
      %3634 = vmatpush1.msra.mxu0 0.0
      %3635 = vmatprep.subr.mxu0 0.0
      %3636 = vmatpush1.msra.mxu0 0.0
      %3637 = vmatprep.subr.mxu0 0.0
      %3638 = vmatpush1.msra.mxu0 0.0
      %3639 = vmatprep.subr.mxu0 0.0
      %3640 = vmatpush1.msra.mxu0 0.0
      %3641 = vmatprep.subr.mxu0 0.0
      %3642 = vmatpush1.msra.mxu0 0.0
      %3643 = vmatprep.subr.mxu0 0.0
      %3644 = vmatpush1.msra.mxu0 0.0
      %3645 = vmatprep.subr.mxu0 0.0
      %3646 = vmatpush1.msra.mxu0 0.0
      %3647 = vmatprep.subr.mxu0 0.0
      %3648 = vmatpush1.msra.mxu0 0.0
      %3649 = vmatprep.subr.mxu0 0.0
      %3650 = vmatpush1.msra.mxu0 0.0
      %3651 = vmatprep.subr.mxu0 0.0
      %3652 = vmatpush1.msra.mxu0 0.0
      %3653 = vmatprep.subr.mxu0 0.0
      %3654 = vmatpush1.msra.mxu0 0.0
      %3655 = vmatprep.subr.mxu0 0.0
      %3656 = vmatpush1.msra.mxu0 0.0
      %3657 = vmatprep.subr.mxu0 0.0
      %3658 = vmatpush1.msra.mxu0 0.0
      %3659 = vmatprep.subr.mxu0 0.0
      %3660 = vmatpush1.msra.mxu0 0.0
      %3661 = vmatprep.subr.mxu0 0.0
      %3662 = vmatpush1.msra.mxu0 0.0
      %3663 = vmatprep.subr.mxu0 0.0
      %3664 = vmatpush1.msra.mxu0 0.0
      %3665 = vmatprep.subr.mxu0 0.0
      %3666 = vmatpush1.msra.mxu0 0.0
      %3667 = vmatprep.subr.mxu0 0.0
      %3668 = vmatpush1.msra.mxu0 0.0
      %3669 = vmatprep.subr.mxu0 0.0
      %3670 = vmatpush1.msra.mxu0 0.0
      %3671 = vmatprep.subr.mxu0 0.0
      %3672 = vmatpush1.msra.mxu0 0.0
      %3673 = vmatprep.mubr.f32.mxu0 0.0
      %3674 = vmatmul.mubr.f32.gmra.mrb[0].mxu0 %v3607
      %v3675 = vpop.f32.mrb[0].mxu0
      %v3676 = vadd.f32 0.0, %v3675
      %v3677 = vpop.f32.mrb[0].mxu0
      %3678 = vdwg.mxu0
      %v3679 = vadd.f32 %v3521, %v3676
      %s3680 = scalar_lea.vmem %s3, 64
      %v3681 = vld [vmem:[%s3680] sm:$0xff]
      %v3682 = vld [vmem:[%s3680 + $0x8] sm:$0xff]
      %v3683 = vld [vmem:[%s3680 + $0x10] sm:$0xff]
      %v3684 = vld [vmem:[%s3680 + $0x18] sm:$0xff]
      %v3685 = vld [vmem:[%s3680 + $0x20] sm:$0xff]
      %v3686 = vld [vmem:[%s3680 + $0x28] sm:$0xff]
      %v3687 = vld [vmem:[%s3680 + $0x30] sm:$0xff]
      %v3688 = vld [vmem:[%s3680 + $0x38] sm:$0xff]
      %v3689 = vld [vmem:[#allocation2 + $0x1] sm:$0x1]
      %v3691 = vsel %vm383, %v3689, 0
      %3693 = vmatprep.subr.mxu0 0.0
      %3694 = vmatpush1.msra.mxu0 %v3681
      %3695 = vmatprep.subr.mxu0 0.0
      %3696 = vmatpush1.msra.mxu0 %v3682
      %3697 = vmatprep.subr.mxu0 0.0
      %3698 = vmatpush1.msra.mxu0 %v3683
      %3699 = vmatprep.subr.mxu0 0.0
      %3700 = vmatpush1.msra.mxu0 %v3684
      %3701 = vmatprep.subr.mxu0 0.0
      %3702 = vmatpush1.msra.mxu0 %v3685
      %3703 = vmatprep.subr.mxu0 0.0
      %3704 = vmatpush1.msra.mxu0 %v3686
      %3705 = vmatprep.subr.mxu0 0.0
      %3706 = vmatpush1.msra.mxu0 %v3687
      %3707 = vmatprep.subr.mxu0 0.0
      %3708 = vmatpush1.msra.mxu0 %v3688
      %3709 = vmatprep.subr.mxu0 0.0
      %3710 = vmatpush1.msra.mxu0 0.0
      %3711 = vmatprep.subr.mxu0 0.0
      %3712 = vmatpush1.msra.mxu0 0.0
      %3713 = vmatprep.subr.mxu0 0.0
      %3714 = vmatpush1.msra.mxu0 0.0
      %3715 = vmatprep.subr.mxu0 0.0
      %3716 = vmatpush1.msra.mxu0 0.0
      %3717 = vmatprep.subr.mxu0 0.0
      %3718 = vmatpush1.msra.mxu0 0.0
      %3719 = vmatprep.subr.mxu0 0.0
      %3720 = vmatpush1.msra.mxu0 0.0
      %3721 = vmatprep.subr.mxu0 0.0
      %3722 = vmatpush1.msra.mxu0 0.0
      %3723 = vmatprep.subr.mxu0 0.0
      %3724 = vmatpush1.msra.mxu0 0.0
      %3725 = vmatprep.subr.mxu0 0.0
      %3726 = vmatpush1.msra.mxu0 0.0
      %3727 = vmatprep.subr.mxu0 0.0
      %3728 = vmatpush1.msra.mxu0 0.0
      %3729 = vmatprep.subr.mxu0 0.0
      %3730 = vmatpush1.msra.mxu0 0.0
      %3731 = vmatprep.subr.mxu0 0.0
      %3732 = vmatpush1.msra.mxu0 0.0
      %3733 = vmatprep.subr.mxu0 0.0
      %3734 = vmatpush1.msra.mxu0 0.0
      %3735 = vmatprep.subr.mxu0 0.0
      %3736 = vmatpush1.msra.mxu0 0.0
      %3737 = vmatprep.subr.mxu0 0.0
      %3738 = vmatpush1.msra.mxu0 0.0
      %3739 = vmatprep.subr.mxu0 0.0
      %3740 = vmatpush1.msra.mxu0 0.0
      %3741 = vmatprep.subr.mxu0 0.0
      %3742 = vmatpush1.msra.mxu0 0.0
      %3743 = vmatprep.subr.mxu0 0.0
      %3744 = vmatpush1.msra.mxu0 0.0
      %3745 = vmatprep.subr.mxu0 0.0
      %3746 = vmatpush1.msra.mxu0 0.0
      %3747 = vmatprep.subr.mxu0 0.0
      %3748 = vmatpush1.msra.mxu0 0.0
      %3749 = vmatprep.subr.mxu0 0.0
      %3750 = vmatpush1.msra.mxu0 0.0
      %3751 = vmatprep.subr.mxu0 0.0
      %3752 = vmatpush1.msra.mxu0 0.0
      %3753 = vmatprep.subr.mxu0 0.0
      %3754 = vmatpush1.msra.mxu0 0.0
      %3755 = vmatprep.subr.mxu0 0.0
      %3756 = vmatpush1.msra.mxu0 0.0
      %3757 = vmatprep.mubr.f32.mxu0 0.0
      %3758 = vmatmul.mubr.f32.gmra.mrb[0].mxu0 %v3691
      %v3759 = vpop.f32.mrb[0].mxu0
      %v3760 = vadd.f32 0.0, %v3759
      %v3761 = vpop.f32.mrb[0].mxu0
      %3762 = vdwg.mxu0
      %v3763 = vadd.f32 %v3604, %v3760
      %v3764 = vld [vmem:[#allocation2 + $0x3] sm:$0x1]
      %v3766 = vsel %vm383, %v3764, 0
      %3768 = vmatprep.subr.mxu0 0.0
      %3769 = vmatpush1.msra.mxu0 %v3681
      %3770 = vmatprep.subr.mxu0 0.0
      %3771 = vmatpush1.msra.mxu0 %v3682
      %3772 = vmatprep.subr.mxu0 0.0
      %3773 = vmatpush1.msra.mxu0 %v3683
      %3774 = vmatprep.subr.mxu0 0.0
      %3775 = vmatpush1.msra.mxu0 %v3684
      %3776 = vmatprep.subr.mxu0 0.0
      %3777 = vmatpush1.msra.mxu0 %v3685
      %3778 = vmatprep.subr.mxu0 0.0
      %3779 = vmatpush1.msra.mxu0 %v3686
      %3780 = vmatprep.subr.mxu0 0.0
      %3781 = vmatpush1.msra.mxu0 %v3687
      %3782 = vmatprep.subr.mxu0 0.0
      %3783 = vmatpush1.msra.mxu0 %v3688
      %3784 = vmatprep.subr.mxu0 0.0
      %3785 = vmatpush1.msra.mxu0 0.0
      %3786 = vmatprep.subr.mxu0 0.0
      %3787 = vmatpush1.msra.mxu0 0.0
      %3788 = vmatprep.subr.mxu0 0.0
      %3789 = vmatpush1.msra.mxu0 0.0
      %3790 = vmatprep.subr.mxu0 0.0
      %3791 = vmatpush1.msra.mxu0 0.0
      %3792 = vmatprep.subr.mxu0 0.0
      %3793 = vmatpush1.msra.mxu0 0.0
      %3794 = vmatprep.subr.mxu0 0.0
      %3795 = vmatpush1.msra.mxu0 0.0
      %3796 = vmatprep.subr.mxu0 0.0
      %3797 = vmatpush1.msra.mxu0 0.0
      %3798 = vmatprep.subr.mxu0 0.0
      %3799 = vmatpush1.msra.mxu0 0.0
      %3800 = vmatprep.subr.mxu0 0.0
      %3801 = vmatpush1.msra.mxu0 0.0
      %3802 = vmatprep.subr.mxu0 0.0
      %3803 = vmatpush1.msra.mxu0 0.0
      %3804 = vmatprep.subr.mxu0 0.0
      %3805 = vmatpush1.msra.mxu0 0.0
      %3806 = vmatprep.subr.mxu0 0.0
      %3807 = vmatpush1.msra.mxu0 0.0
      %3808 = vmatprep.subr.mxu0 0.0
      %3809 = vmatpush1.msra.mxu0 0.0
      %3810 = vmatprep.subr.mxu0 0.0
      %3811 = vmatpush1.msra.mxu0 0.0
      %3812 = vmatprep.subr.mxu0 0.0
      %3813 = vmatpush1.msra.mxu0 0.0
      %3814 = vmatprep.subr.mxu0 0.0
      %3815 = vmatpush1.msra.mxu0 0.0
      %3816 = vmatprep.subr.mxu0 0.0
      %3817 = vmatpush1.msra.mxu0 0.0
      %3818 = vmatprep.subr.mxu0 0.0
      %3819 = vmatpush1.msra.mxu0 0.0
      %3820 = vmatprep.subr.mxu0 0.0
      %3821 = vmatpush1.msra.mxu0 0.0
      %3822 = vmatprep.subr.mxu0 0.0
      %3823 = vmatpush1.msra.mxu0 0.0
      %3824 = vmatprep.subr.mxu0 0.0
      %3825 = vmatpush1.msra.mxu0 0.0
      %3826 = vmatprep.subr.mxu0 0.0
      %3827 = vmatpush1.msra.mxu0 0.0
      %3828 = vmatprep.subr.mxu0 0.0
      %3829 = vmatpush1.msra.mxu0 0.0
      %3830 = vmatprep.subr.mxu0 0.0
      %3831 = vmatpush1.msra.mxu0 0.0
      %3832 = vmatprep.mubr.f32.mxu0 0.0
      %3833 = vmatmul.mubr.f32.gmra.mrb[0].mxu0 %v3766
      %v3834 = vpop.f32.mrb[0].mxu0
      %v3835 = vadd.f32 0.0, %v3834
      %v3836 = vpop.f32.mrb[0].mxu0
      %3837 = vdwg.mxu0
      %v3838 = vadd.f32 %v3679, %v3835
      %s3839 = scalar_lea.vmem %s3, 128
      %v3840 = vld [vmem:[%s3839] sm:$0xff]
      %v3841 = vld [vmem:[%s3839 + $0x8] sm:$0xff]
      %v3842 = vld [vmem:[%s3839 + $0x10] sm:$0xff]
      %v3843 = vld [vmem:[%s3839 + $0x18] sm:$0xff]
      %v3844 = vld [vmem:[%s3839 + $0x20] sm:$0xff]
      %v3845 = vld [vmem:[%s3839 + $0x28] sm:$0xff]
      %v3846 = vld [vmem:[%s3839 + $0x30] sm:$0xff]
      %v3847 = vld [vmem:[%s3839 + $0x38] sm:$0xff]
      %3848 = vmatprep.subr.mxu0 0.0
      %3849 = vmatpush1.msra.mxu0 %v3840
      %3850 = vmatprep.subr.mxu0 0.0
      %3851 = vmatpush1.msra.mxu0 %v3841
      %3852 = vmatprep.subr.mxu0 0.0
      %3853 = vmatpush1.msra.mxu0 %v3842
      %3854 = vmatprep.subr.mxu0 0.0
      %3855 = vmatpush1.msra.mxu0 %v3843
      %3856 = vmatprep.subr.mxu0 0.0
      %3857 = vmatpush1.msra.mxu0 %v3844
      %3858 = vmatprep.subr.mxu0 0.0
      %3859 = vmatpush1.msra.mxu0 %v3845
      %3860 = vmatprep.subr.mxu0 0.0
      %3861 = vmatpush1.msra.mxu0 %v3846
      %3862 = vmatprep.subr.mxu0 0.0
      %3863 = vmatpush1.msra.mxu0 %v3847
      %3864 = vmatprep.subr.mxu0 0.0
      %3865 = vmatpush1.msra.mxu0 0.0
      %3866 = vmatprep.subr.mxu0 0.0
      %3867 = vmatpush1.msra.mxu0 0.0
      %3868 = vmatprep.subr.mxu0 0.0
      %3869 = vmatpush1.msra.mxu0 0.0
      %3870 = vmatprep.subr.mxu0 0.0
      %3871 = vmatpush1.msra.mxu0 0.0
      %3872 = vmatprep.subr.mxu0 0.0
      %3873 = vmatpush1.msra.mxu0 0.0
      %3874 = vmatprep.subr.mxu0 0.0
      %3875 = vmatpush1.msra.mxu0 0.0
      %3876 = vmatprep.subr.mxu0 0.0
      %3877 = vmatpush1.msra.mxu0 0.0
      %3878 = vmatprep.subr.mxu0 0.0
      %3879 = vmatpush1.msra.mxu0 0.0
      %3880 = vmatprep.subr.mxu0 0.0
      %3881 = vmatpush1.msra.mxu0 0.0
      %3882 = vmatprep.subr.mxu0 0.0
      %3883 = vmatpush1.msra.mxu0 0.0
      %3884 = vmatprep.subr.mxu0 0.0
      %3885 = vmatpush1.msra.mxu0 0.0
      %3886 = vmatprep.subr.mxu0 0.0
      %3887 = vmatpush1.msra.mxu0 0.0
      %3888 = vmatprep.subr.mxu0 0.0
      %3889 = vmatpush1.msra.mxu0 0.0
      %3890 = vmatprep.subr.mxu0 0.0
      %3891 = vmatpush1.msra.mxu0 0.0
      %3892 = vmatprep.subr.mxu0 0.0
      %3893 = vmatpush1.msra.mxu0 0.0
      %3894 = vmatprep.subr.mxu0 0.0
      %3895 = vmatpush1.msra.mxu0 0.0
      %3896 = vmatprep.subr.mxu0 0.0
      %3897 = vmatpush1.msra.mxu0 0.0
      %3898 = vmatprep.subr.mxu0 0.0
      %3899 = vmatpush1.msra.mxu0 0.0
      %3900 = vmatprep.subr.mxu0 0.0
      %3901 = vmatpush1.msra.mxu0 0.0
      %3902 = vmatprep.subr.mxu0 0.0
      %3903 = vmatpush1.msra.mxu0 0.0
      %3904 = vmatprep.subr.mxu0 0.0
      %3905 = vmatpush1.msra.mxu0 0.0
      %3906 = vmatprep.subr.mxu0 0.0
      %3907 = vmatpush1.msra.mxu0 0.0
      %3908 = vmatprep.subr.mxu0 0.0
      %3909 = vmatpush1.msra.mxu0 0.0
      %3910 = vmatprep.subr.mxu0 0.0
      %3911 = vmatpush1.msra.mxu0 0.0
      %3912 = vmatprep.mubr.f32.mxu0 0.0
      %3913 = vmatmul.mubr.f32.gmra.mrb[0].mxu0 %v3607
      %v3914 = vpop.f32.mrb[0].mxu0
      %v3915 = vadd.f32 0.0, %v3914
      %v3916 = vpop.f32.mrb[0].mxu0
      %3917 = vdwg.mxu0
      %v3918 = vadd.f32 %v3763, %v3915
      %v3919 = vld [vmem:[#allocation2 + $0x4] sm:$0x1]
      %v3921 = vsel %vm383, %v3919, 0
      %3923 = vmatprep.subr.mxu0 0.0
      %3924 = vmatpush1.msra.mxu0 %v3840
      %3925 = vmatprep.subr.mxu0 0.0
      %3926 = vmatpush1.msra.mxu0 %v3841
      %3927 = vmatprep.subr.mxu0 0.0
      %3928 = vmatpush1.msra.mxu0 %v3842
      %3929 = vmatprep.subr.mxu0 0.0
      %3930 = vmatpush1.msra.mxu0 %v3843
      %3931 = vmatprep.subr.mxu0 0.0
      %3932 = vmatpush1.msra.mxu0 %v3844
      %3933 = vmatprep.subr.mxu0 0.0
      %3934 = vmatpush1.msra.mxu0 %v3845
      %3935 = vmatprep.subr.mxu0 0.0
      %3936 = vmatpush1.msra.mxu0 %v3846
      %3937 = vmatprep.subr.mxu0 0.0
      %3938 = vmatpush1.msra.mxu0 %v3847
      %3939 = vmatprep.subr.mxu0 0.0
      %3940 = vmatpush1.msra.mxu0 0.0
      %3941 = vmatprep.subr.mxu0 0.0
      %3942 = vmatpush1.msra.mxu0 0.0
      %3943 = vmatprep.subr.mxu0 0.0
      %3944 = vmatpush1.msra.mxu0 0.0
      %3945 = vmatprep.subr.mxu0 0.0
      %3946 = vmatpush1.msra.mxu0 0.0
      %3947 = vmatprep.subr.mxu0 0.0
      %3948 = vmatpush1.msra.mxu0 0.0
      %3949 = vmatprep.subr.mxu0 0.0
      %3950 = vmatpush1.msra.mxu0 0.0
      %3951 = vmatprep.subr.mxu0 0.0
      %3952 = vmatpush1.msra.mxu0 0.0
      %3953 = vmatprep.subr.mxu0 0.0
      %3954 = vmatpush1.msra.mxu0 0.0
      %3955 = vmatprep.subr.mxu0 0.0
      %3956 = vmatpush1.msra.mxu0 0.0
      %3957 = vmatprep.subr.mxu0 0.0
      %3958 = vmatpush1.msra.mxu0 0.0
      %3959 = vmatprep.subr.mxu0 0.0
      %3960 = vmatpush1.msra.mxu0 0.0
      %3961 = vmatprep.subr.mxu0 0.0
      %3962 = vmatpush1.msra.mxu0 0.0
      %3963 = vmatprep.subr.mxu0 0.0
      %3964 = vmatpush1.msra.mxu0 0.0
      %3965 = vmatprep.subr.mxu0 0.0
      %3966 = vmatpush1.msra.mxu0 0.0
      %3967 = vmatprep.subr.mxu0 0.0
      %3968 = vmatpush1.msra.mxu0 0.0
      %3969 = vmatprep.subr.mxu0 0.0
      %3970 = vmatpush1.msra.mxu0 0.0
      %3971 = vmatprep.subr.mxu0 0.0
      %3972 = vmatpush1.msra.mxu0 0.0
      %3973 = vmatprep.subr.mxu0 0.0
      %3974 = vmatpush1.msra.mxu0 0.0
      %3975 = vmatprep.subr.mxu0 0.0
      %3976 = vmatpush1.msra.mxu0 0.0
      %3977 = vmatprep.subr.mxu0 0.0
      %3978 = vmatpush1.msra.mxu0 0.0
      %3979 = vmatprep.subr.mxu0 0.0
      %3980 = vmatpush1.msra.mxu0 0.0
      %3981 = vmatprep.subr.mxu0 0.0
      %3982 = vmatpush1.msra.mxu0 0.0
      %3983 = vmatprep.subr.mxu0 0.0
      %3984 = vmatpush1.msra.mxu0 0.0
      %3985 = vmatprep.subr.mxu0 0.0
      %3986 = vmatpush1.msra.mxu0 0.0
      %3987 = vmatprep.mubr.f32.mxu0 0.0
      %3988 = vmatmul.mubr.f32.gmra.mrb[0].mxu0 %v3921
      %v3989 = vpop.f32.mrb[0].mxu0
      %v3990 = vadd.f32 0.0, %v3989
      %v3991 = vpop.f32.mrb[0].mxu0
      %3992 = vdwg.mxu0
      %v3993 = vadd.f32 %v3838, %v3990
      %s3994 = scalar_lea.vmem %s3, 192
      %v3995 = vld [vmem:[%s3994] sm:$0xff]
      %v3996 = vld [vmem:[%s3994 + $0x8] sm:$0xff]
      %v3997 = vld [vmem:[%s3994 + $0x10] sm:$0xff]
      %v3998 = vld [vmem:[%s3994 + $0x18] sm:$0xff]
      %v3999 = vld [vmem:[%s3994 + $0x20] sm:$0xff]
      %v4000 = vld [vmem:[%s3994 + $0x28] sm:$0xff]
      %v4001 = vld [vmem:[%s3994 + $0x30] sm:$0xff]
      %v4002 = vld [vmem:[%s3994 + $0x38] sm:$0xff]
      %4003 = vmatprep.subr.mxu0 0.0
      %4004 = vmatpush1.msra.mxu0 %v3995
      %4005 = vmatprep.subr.mxu0 0.0
      %4006 = vmatpush1.msra.mxu0 %v3996
      %4007 = vmatprep.subr.mxu0 0.0
      %4008 = vmatpush1.msra.mxu0 %v3997
      %4009 = vmatprep.subr.mxu0 0.0
      %4010 = vmatpush1.msra.mxu0 %v3998
      %4011 = vmatprep.subr.mxu0 0.0
      %4012 = vmatpush1.msra.mxu0 %v3999
      %4013 = vmatprep.subr.mxu0 0.0
      %4014 = vmatpush1.msra.mxu0 %v4000
      %4015 = vmatprep.subr.mxu0 0.0
      %4016 = vmatpush1.msra.mxu0 %v4001
      %4017 = vmatprep.subr.mxu0 0.0
      %4018 = vmatpush1.msra.mxu0 %v4002
      %4019 = vmatprep.subr.mxu0 0.0
      %4020 = vmatpush1.msra.mxu0 0.0
      %4021 = vmatprep.subr.mxu0 0.0
      %4022 = vmatpush1.msra.mxu0 0.0
      %4023 = vmatprep.subr.mxu0 0.0
      %4024 = vmatpush1.msra.mxu0 0.0
      %4025 = vmatprep.subr.mxu0 0.0
      %4026 = vmatpush1.msra.mxu0 0.0
      %4027 = vmatprep.subr.mxu0 0.0
      %4028 = vmatpush1.msra.mxu0 0.0
      %4029 = vmatprep.subr.mxu0 0.0
      %4030 = vmatpush1.msra.mxu0 0.0
      %4031 = vmatprep.subr.mxu0 0.0
      %4032 = vmatpush1.msra.mxu0 0.0
      %4033 = vmatprep.subr.mxu0 0.0
      %4034 = vmatpush1.msra.mxu0 0.0
      %4035 = vmatprep.subr.mxu0 0.0
      %4036 = vmatpush1.msra.mxu0 0.0
      %4037 = vmatprep.subr.mxu0 0.0
      %4038 = vmatpush1.msra.mxu0 0.0
      %4039 = vmatprep.subr.mxu0 0.0
      %4040 = vmatpush1.msra.mxu0 0.0
      %4041 = vmatprep.subr.mxu0 0.0
      %4042 = vmatpush1.msra.mxu0 0.0
      %4043 = vmatprep.subr.mxu0 0.0
      %4044 = vmatpush1.msra.mxu0 0.0
      %4045 = vmatprep.subr.mxu0 0.0
      %4046 = vmatpush1.msra.mxu0 0.0
      %4047 = vmatprep.subr.mxu0 0.0
      %4048 = vmatpush1.msra.mxu0 0.0
      %4049 = vmatprep.subr.mxu0 0.0
      %4050 = vmatpush1.msra.mxu0 0.0
      %4051 = vmatprep.subr.mxu0 0.0
      %4052 = vmatpush1.msra.mxu0 0.0
      %4053 = vmatprep.subr.mxu0 0.0
      %4054 = vmatpush1.msra.mxu0 0.0
      %4055 = vmatprep.subr.mxu0 0.0
      %4056 = vmatpush1.msra.mxu0 0.0
      %4057 = vmatprep.subr.mxu0 0.0
      %4058 = vmatpush1.msra.mxu0 0.0
      %4059 = vmatprep.subr.mxu0 0.0
      %4060 = vmatpush1.msra.mxu0 0.0
      %4061 = vmatprep.subr.mxu0 0.0
      %4062 = vmatpush1.msra.mxu0 0.0
      %4063 = vmatprep.subr.mxu0 0.0
      %4064 = vmatpush1.msra.mxu0 0.0
      %4065 = vmatprep.subr.mxu0 0.0
      %4066 = vmatpush1.msra.mxu0 0.0
      %4067 = vmatprep.mubr.f32.mxu0 0.0
      %4068 = vmatmul.mubr.f32.gmra.mrb[0].mxu0 %v3766
      %v4069 = vpop.f32.mrb[0].mxu0
      %v4070 = vadd.f32 0.0, %v4069
      %v4071 = vpop.f32.mrb[0].mxu0
      %4072 = vdwg.mxu0
      %v4073 = vadd.f32 %v3918, %v4070
      %v4074 = vld [vmem:[#allocation2 + $0x5] sm:$0x1]
      %v4076 = vsel %vm383, %v4074, 0
      %4078 = vmatprep.subr.mxu0 0.0
      %4079 = vmatpush1.msra.mxu0 %v3995
      %4080 = vmatprep.subr.mxu0 0.0
      %4081 = vmatpush1.msra.mxu0 %v3996
      %4082 = vmatprep.subr.mxu0 0.0
      %4083 = vmatpush1.msra.mxu0 %v3997
      %4084 = vmatprep.subr.mxu0 0.0
      %4085 = vmatpush1.msra.mxu0 %v3998
      %4086 = vmatprep.subr.mxu0 0.0
      %4087 = vmatpush1.msra.mxu0 %v3999
      %4088 = vmatprep.subr.mxu0 0.0
      %4089 = vmatpush1.msra.mxu0 %v4000
      %4090 = vmatprep.subr.mxu0 0.0
      %4091 = vmatpush1.msra.mxu0 %v4001
      %4092 = vmatprep.subr.mxu0 0.0
      %4093 = vmatpush1.msra.mxu0 %v4002
      %4094 = vmatprep.subr.mxu0 0.0
      %4095 = vmatpush1.msra.mxu0 0.0
      %4096 = vmatprep.subr.mxu0 0.0
      %4097 = vmatpush1.msra.mxu0 0.0
      %4098 = vmatprep.subr.mxu0 0.0
      %4099 = vmatpush1.msra.mxu0 0.0
      %4100 = vmatprep.subr.mxu0 0.0
      %4101 = vmatpush1.msra.mxu0 0.0
      %4102 = vmatprep.subr.mxu0 0.0
      %4103 = vmatpush1.msra.mxu0 0.0
      %4104 = vmatprep.subr.mxu0 0.0
      %4105 = vmatpush1.msra.mxu0 0.0
      %4106 = vmatprep.subr.mxu0 0.0
      %4107 = vmatpush1.msra.mxu0 0.0
      %4108 = vmatprep.subr.mxu0 0.0
      %4109 = vmatpush1.msra.mxu0 0.0
      %4110 = vmatprep.subr.mxu0 0.0
      %4111 = vmatpush1.msra.mxu0 0.0
      %4112 = vmatprep.subr.mxu0 0.0
      %4113 = vmatpush1.msra.mxu0 0.0
      %4114 = vmatprep.subr.mxu0 0.0
      %4115 = vmatpush1.msra.mxu0 0.0
      %4116 = vmatprep.subr.mxu0 0.0
      %4117 = vmatpush1.msra.mxu0 0.0
      %4118 = vmatprep.subr.mxu0 0.0
      %4119 = vmatpush1.msra.mxu0 0.0
      %4120 = vmatprep.subr.mxu0 0.0
      %4121 = vmatpush1.msra.mxu0 0.0
      %4122 = vmatprep.subr.mxu0 0.0
      %4123 = vmatpush1.msra.mxu0 0.0
      %4124 = vmatprep.subr.mxu0 0.0
      %4125 = vmatpush1.msra.mxu0 0.0
      %4126 = vmatprep.subr.mxu0 0.0
      %4127 = vmatpush1.msra.mxu0 0.0
      %4128 = vmatprep.subr.mxu0 0.0
      %4129 = vmatpush1.msra.mxu0 0.0
      %4130 = vmatprep.subr.mxu0 0.0
      %4131 = vmatpush1.msra.mxu0 0.0
      %4132 = vmatprep.subr.mxu0 0.0
      %4133 = vmatpush1.msra.mxu0 0.0
      %4134 = vmatprep.subr.mxu0 0.0
      %4135 = vmatpush1.msra.mxu0 0.0
      %4136 = vmatprep.subr.mxu0 0.0
      %4137 = vmatpush1.msra.mxu0 0.0
      %4138 = vmatprep.subr.mxu0 0.0
      %4139 = vmatpush1.msra.mxu0 0.0
      %4140 = vmatprep.subr.mxu0 0.0
      %4141 = vmatpush1.msra.mxu0 0.0
      %4142 = vmatprep.mubr.f32.mxu0 0.0
      %4143 = vmatmul.mubr.f32.gmra.mrb[0].mxu0 %v4076
      %v4144 = vpop.f32.mrb[0].mxu0
      %v4145 = vadd.f32 0.0, %v4144
      %v4146 = vpop.f32.mrb[0].mxu0
      %4147 = vdwg.mxu0
      %v4148 = vadd.f32 %v3993, %v4145
      %s4149 = scalar_lea.vmem %s3, 256
      %v4150 = vld [vmem:[%s4149] sm:$0xff]
      %v4151 = vld [vmem:[%s4149 + $0x8] sm:$0xff]
      %v4152 = vld [vmem:[%s4149 + $0x10] sm:$0xff]
      %v4153 = vld [vmem:[%s4149 + $0x18] sm:$0xff]
      %v4154 = vld [vmem:[%s4149 + $0x20] sm:$0xff]
      %v4155 = vld [vmem:[%s4149 + $0x28] sm:$0xff]
      %v4156 = vld [vmem:[%s4149 + $0x30] sm:$0xff]
      %v4157 = vld [vmem:[%s4149 + $0x38] sm:$0xff]
      %4158 = vmatprep.subr.mxu0 0.0
      %4159 = vmatpush1.msra.mxu0 %v4150
      %4160 = vmatprep.subr.mxu0 0.0
      %4161 = vmatpush1.msra.mxu0 %v4151
      %4162 = vmatprep.subr.mxu0 0.0
      %4163 = vmatpush1.msra.mxu0 %v4152
      %4164 = vmatprep.subr.mxu0 0.0
      %4165 = vmatpush1.msra.mxu0 %v4153
      %4166 = vmatprep.subr.mxu0 0.0
      %4167 = vmatpush1.msra.mxu0 %v4154
      %4168 = vmatprep.subr.mxu0 0.0
      %4169 = vmatpush1.msra.mxu0 %v4155
      %4170 = vmatprep.subr.mxu0 0.0
      %4171 = vmatpush1.msra.mxu0 %v4156
      %4172 = vmatprep.subr.mxu0 0.0
      %4173 = vmatpush1.msra.mxu0 %v4157
      %4174 = vmatprep.subr.mxu0 0.0
      %4175 = vmatpush1.msra.mxu0 0.0
      %4176 = vmatprep.subr.mxu0 0.0
      %4177 = vmatpush1.msra.mxu0 0.0
      %4178 = vmatprep.subr.mxu0 0.0
      %4179 = vmatpush1.msra.mxu0 0.0
      %4180 = vmatprep.subr.mxu0 0.0
      %4181 = vmatpush1.msra.mxu0 0.0
      %4182 = vmatprep.subr.mxu0 0.0
      %4183 = vmatpush1.msra.mxu0 0.0
      %4184 = vmatprep.subr.mxu0 0.0
      %4185 = vmatpush1.msra.mxu0 0.0
      %4186 = vmatprep.subr.mxu0 0.0
      %4187 = vmatpush1.msra.mxu0 0.0
      %4188 = vmatprep.subr.mxu0 0.0
      %4189 = vmatpush1.msra.mxu0 0.0
      %4190 = vmatprep.subr.mxu0 0.0
      %4191 = vmatpush1.msra.mxu0 0.0
      %4192 = vmatprep.subr.mxu0 0.0
      %4193 = vmatpush1.msra.mxu0 0.0
      %4194 = vmatprep.subr.mxu0 0.0
      %4195 = vmatpush1.msra.mxu0 0.0
      %4196 = vmatprep.subr.mxu0 0.0
      %4197 = vmatpush1.msra.mxu0 0.0
      %4198 = vmatprep.subr.mxu0 0.0
      %4199 = vmatpush1.msra.mxu0 0.0
      %4200 = vmatprep.subr.mxu0 0.0
      %4201 = vmatpush1.msra.mxu0 0.0
      %4202 = vmatprep.subr.mxu0 0.0
      %4203 = vmatpush1.msra.mxu0 0.0
      %4204 = vmatprep.subr.mxu0 0.0
      %4205 = vmatpush1.msra.mxu0 0.0
      %4206 = vmatprep.subr.mxu0 0.0
      %4207 = vmatpush1.msra.mxu0 0.0
      %4208 = vmatprep.subr.mxu0 0.0
      %4209 = vmatpush1.msra.mxu0 0.0
      %4210 = vmatprep.subr.mxu0 0.0
      %4211 = vmatpush1.msra.mxu0 0.0
      %4212 = vmatprep.subr.mxu0 0.0
      %4213 = vmatpush1.msra.mxu0 0.0
      %4214 = vmatprep.subr.mxu0 0.0
      %4215 = vmatpush1.msra.mxu0 0.0
      %4216 = vmatprep.subr.mxu0 0.0
      %4217 = vmatpush1.msra.mxu0 0.0
      %4218 = vmatprep.subr.mxu0 0.0
      %4219 = vmatpush1.msra.mxu0 0.0
      %4220 = vmatprep.subr.mxu0 0.0
      %4221 = vmatpush1.msra.mxu0 0.0
      %4222 = vmatprep.mubr.f32.mxu0 0.0
      %4223 = vmatmul.mubr.f32.gmra.mrb[0].mxu0 %v3921
      %v4224 = vpop.f32.mrb[0].mxu0
      %v4225 = vadd.f32 0.0, %v4224
      %v4226 = vpop.f32.mrb[0].mxu0
      %4227 = vdwg.mxu0
      %v4228 = vadd.f32 %v4073, %v4225
      %v4229 = vld [vmem:[#allocation2 + $0x6] sm:$0x1]
      %v4231 = vsel %vm383, %v4229, 0
      %4233 = vmatprep.subr.mxu0 0.0
      %4234 = vmatpush1.msra.mxu0 %v4150
      %4235 = vmatprep.subr.mxu0 0.0
      %4236 = vmatpush1.msra.mxu0 %v4151
      %4237 = vmatprep.subr.mxu0 0.0
      %4238 = vmatpush1.msra.mxu0 %v4152
      %4239 = vmatprep.subr.mxu0 0.0
      %4240 = vmatpush1.msra.mxu0 %v4153
      %4241 = vmatprep.subr.mxu0 0.0
      %4242 = vmatpush1.msra.mxu0 %v4154
      %4243 = vmatprep.subr.mxu0 0.0
      %4244 = vmatpush1.msra.mxu0 %v4155
      %4245 = vmatprep.subr.mxu0 0.0
      %4246 = vmatpush1.msra.mxu0 %v4156
      %4247 = vmatprep.subr.mxu0 0.0
      %4248 = vmatpush1.msra.mxu0 %v4157
      %4249 = vmatprep.subr.mxu0 0.0
      %4250 = vmatpush1.msra.mxu0 0.0
      %4251 = vmatprep.subr.mxu0 0.0
      %4252 = vmatpush1.msra.mxu0 0.0
      %4253 = vmatprep.subr.mxu0 0.0
      %4254 = vmatpush1.msra.mxu0 0.0
      %4255 = vmatprep.subr.mxu0 0.0
      %4256 = vmatpush1.msra.mxu0 0.0
      %4257 = vmatprep.subr.mxu0 0.0
      %4258 = vmatpush1.msra.mxu0 0.0
      %4259 = vmatprep.subr.mxu0 0.0
      %4260 = vmatpush1.msra.mxu0 0.0
      %4261 = vmatprep.subr.mxu0 0.0
      %4262 = vmatpush1.msra.mxu0 0.0
      %4263 = vmatprep.subr.mxu0 0.0
      %4264 = vmatpush1.msra.mxu0 0.0
      %4265 = vmatprep.subr.mxu0 0.0
      %4266 = vmatpush1.msra.mxu0 0.0
      %4267 = vmatprep.subr.mxu0 0.0
      %4268 = vmatpush1.msra.mxu0 0.0
      %4269 = vmatprep.subr.mxu0 0.0
      %4270 = vmatpush1.msra.mxu0 0.0
      %4271 = vmatprep.subr.mxu0 0.0
      %4272 = vmatpush1.msra.mxu0 0.0
      %4273 = vmatprep.subr.mxu0 0.0
      %4274 = vmatpush1.msra.mxu0 0.0
      %4275 = vmatprep.subr.mxu0 0.0
      %4276 = vmatpush1.msra.mxu0 0.0
      %4277 = vmatprep.subr.mxu0 0.0
      %4278 = vmatpush1.msra.mxu0 0.0
      %4279 = vmatprep.subr.mxu0 0.0
      %4280 = vmatpush1.msra.mxu0 0.0
      %4281 = vmatprep.subr.mxu0 0.0
      %4282 = vmatpush1.msra.mxu0 0.0
      %4283 = vmatprep.subr.mxu0 0.0
      %4284 = vmatpush1.msra.mxu0 0.0
      %4285 = vmatprep.subr.mxu0 0.0
      %4286 = vmatpush1.msra.mxu0 0.0
      %4287 = vmatprep.subr.mxu0 0.0
      %4288 = vmatpush1.msra.mxu0 0.0
      %4289 = vmatprep.subr.mxu0 0.0
      %4290 = vmatpush1.msra.mxu0 0.0
      %4291 = vmatprep.subr.mxu0 0.0
      %4292 = vmatpush1.msra.mxu0 0.0
      %4293 = vmatprep.subr.mxu0 0.0
      %4294 = vmatpush1.msra.mxu0 0.0
      %4295 = vmatprep.subr.mxu0 0.0
      %4296 = vmatpush1.msra.mxu0 0.0
      %4297 = vmatprep.mubr.f32.mxu0 0.0
      %4298 = vmatmul.mubr.f32.gmra.mrb[0].mxu0 %v4231
      %v4299 = vpop.f32.mrb[0].mxu0
      %v4300 = vadd.f32 0.0, %v4299
      %v4301 = vpop.f32.mrb[0].mxu0
      %4302 = vdwg.mxu0
      %v4303 = vadd.f32 %v4148, %v4300
      %v4304 = vmax.f32 %v4228, 0.0
      %4305 = vst.msk [vmem:[#allocation3 + $0x1] sm:$0x1] %vm3509, %v4304
      %v4306 = vmax.f32 %v4303, 0.0
      %4307 = vst.msk [vmem:[#allocation3 + $0x2] sm:$0x1] %vm3509, %v4306
      %v4308 = vld [vmem:[%s6] sm:$0x1]
      %v4309 = vld [vmem:[%s5] sm:$0xff]
      %v4310 = vld [vmem:[%s5 + $0x8] sm:$0xff]
      %v4311 = vld [vmem:[%s5 + $0x10] sm:$0xff]
      %v4312 = vld [vmem:[%s5 + $0x18] sm:$0xff]
      %v4313 = vld [vmem:[%s5 + $0x20] sm:$0xff]
      %v4314 = vld [vmem:[%s5 + $0x28] sm:$0xff]
      %v4315 = vld [vmem:[%s5 + $0x30] sm:$0xff]
      %v4316 = vld [vmem:[%s5 + $0x38] sm:$0xff]
      %v4317 = vld [vmem:[#allocation3] sm:$0x1]
      %v4319 = vsel %vm383, %v4317, 0
      %4321 = vmatprep.subr.mxu0 0.0
      %4322 = vmatpush1.msra.mxu0 %v4309
      %4323 = vmatprep.subr.mxu0 0.0
      %4324 = vmatpush1.msra.mxu0 %v4310
      %4325 = vmatprep.subr.mxu0 0.0
      %4326 = vmatpush1.msra.mxu0 %v4311
      %4327 = vmatprep.subr.mxu0 0.0
      %4328 = vmatpush1.msra.mxu0 %v4312
      %4329 = vmatprep.subr.mxu0 0.0
      %4330 = vmatpush1.msra.mxu0 %v4313
      %4331 = vmatprep.subr.mxu0 0.0
      %4332 = vmatpush1.msra.mxu0 %v4314
      %4333 = vmatprep.subr.mxu0 0.0
      %4334 = vmatpush1.msra.mxu0 %v4315
      %4335 = vmatprep.subr.mxu0 0.0
      %4336 = vmatpush1.msra.mxu0 %v4316
      %4337 = vmatprep.subr.mxu0 0.0
      %4338 = vmatpush1.msra.mxu0 0.0
      %4339 = vmatprep.subr.mxu0 0.0
      %4340 = vmatpush1.msra.mxu0 0.0
      %4341 = vmatprep.subr.mxu0 0.0
      %4342 = vmatpush1.msra.mxu0 0.0
      %4343 = vmatprep.subr.mxu0 0.0
      %4344 = vmatpush1.msra.mxu0 0.0
      %4345 = vmatprep.subr.mxu0 0.0
      %4346 = vmatpush1.msra.mxu0 0.0
      %4347 = vmatprep.subr.mxu0 0.0
      %4348 = vmatpush1.msra.mxu0 0.0
      %4349 = vmatprep.subr.mxu0 0.0
      %4350 = vmatpush1.msra.mxu0 0.0
      %4351 = vmatprep.subr.mxu0 0.0
      %4352 = vmatpush1.msra.mxu0 0.0
      %4353 = vmatprep.subr.mxu0 0.0
      %4354 = vmatpush1.msra.mxu0 0.0
      %4355 = vmatprep.subr.mxu0 0.0
      %4356 = vmatpush1.msra.mxu0 0.0
      %4357 = vmatprep.subr.mxu0 0.0
      %4358 = vmatpush1.msra.mxu0 0.0
      %4359 = vmatprep.subr.mxu0 0.0
      %4360 = vmatpush1.msra.mxu0 0.0
      %4361 = vmatprep.subr.mxu0 0.0
      %4362 = vmatpush1.msra.mxu0 0.0
      %4363 = vmatprep.subr.mxu0 0.0
      %4364 = vmatpush1.msra.mxu0 0.0
      %4365 = vmatprep.subr.mxu0 0.0
      %4366 = vmatpush1.msra.mxu0 0.0
      %4367 = vmatprep.subr.mxu0 0.0
      %4368 = vmatpush1.msra.mxu0 0.0
      %4369 = vmatprep.subr.mxu0 0.0
      %4370 = vmatpush1.msra.mxu0 0.0
      %4371 = vmatprep.subr.mxu0 0.0
      %4372 = vmatpush1.msra.mxu0 0.0
      %4373 = vmatprep.subr.mxu0 0.0
      %4374 = vmatpush1.msra.mxu0 0.0
      %4375 = vmatprep.subr.mxu0 0.0
      %4376 = vmatpush1.msra.mxu0 0.0
      %4377 = vmatprep.subr.mxu0 0.0
      %4378 = vmatpush1.msra.mxu0 0.0
      %4379 = vmatprep.subr.mxu0 0.0
      %4380 = vmatpush1.msra.mxu0 0.0
      %4381 = vmatprep.subr.mxu0 0.0
      %4382 = vmatpush1.msra.mxu0 0.0
      %4383 = vmatprep.subr.mxu0 0.0
      %4384 = vmatpush1.msra.mxu0 0.0
      %4385 = vmatprep.mubr.f32.mxu0 0.0
      %4386 = vmatmul.mubr.f32.gmra.mrb[0].mxu0 %v4319
      %v4387 = vpop.f32.mrb[0].mxu0
      %v4388 = vadd.f32 0.0, %v4387
      %v4389 = vpop.f32.mrb[0].mxu0
      %4390 = vdwg.mxu0
      %v4391 = vadd.f32 %v4308, %v4388
      %s4392 = scalar_lea.vmem %s5, 64
      %v4393 = vld [vmem:[%s4392] sm:$0xff]
      %v4394 = vld [vmem:[%s4392 + $0x8] sm:$0xff]
      %v4395 = vld [vmem:[%s4392 + $0x10] sm:$0xff]
      %v4396 = vld [vmem:[%s4392 + $0x18] sm:$0xff]
      %v4397 = vld [vmem:[%s4392 + $0x20] sm:$0xff]
      %v4398 = vld [vmem:[%s4392 + $0x28] sm:$0xff]
      %v4399 = vld [vmem:[%s4392 + $0x30] sm:$0xff]
      %v4400 = vld [vmem:[%s4392 + $0x38] sm:$0xff]
      %v4401 = vld [vmem:[#allocation3 + $0x1] sm:$0x1]
      %v4403 = vsel %vm383, %v4401, 0
      %4405 = vmatprep.subr.mxu0 0.0
      %4406 = vmatpush1.msra.mxu0 %v4393
      %4407 = vmatprep.subr.mxu0 0.0
      %4408 = vmatpush1.msra.mxu0 %v4394
      %4409 = vmatprep.subr.mxu0 0.0
      %4410 = vmatpush1.msra.mxu0 %v4395
      %4411 = vmatprep.subr.mxu0 0.0
      %4412 = vmatpush1.msra.mxu0 %v4396
      %4413 = vmatprep.subr.mxu0 0.0
      %4414 = vmatpush1.msra.mxu0 %v4397
      %4415 = vmatprep.subr.mxu0 0.0
      %4416 = vmatpush1.msra.mxu0 %v4398
      %4417 = vmatprep.subr.mxu0 0.0
      %4418 = vmatpush1.msra.mxu0 %v4399
      %4419 = vmatprep.subr.mxu0 0.0
      %4420 = vmatpush1.msra.mxu0 %v4400
      %4421 = vmatprep.subr.mxu0 0.0
      %4422 = vmatpush1.msra.mxu0 0.0
      %4423 = vmatprep.subr.mxu0 0.0
      %4424 = vmatpush1.msra.mxu0 0.0
      %4425 = vmatprep.subr.mxu0 0.0
      %4426 = vmatpush1.msra.mxu0 0.0
      %4427 = vmatprep.subr.mxu0 0.0
      %4428 = vmatpush1.msra.mxu0 0.0
      %4429 = vmatprep.subr.mxu0 0.0
      %4430 = vmatpush1.msra.mxu0 0.0
      %4431 = vmatprep.subr.mxu0 0.0
      %4432 = vmatpush1.msra.mxu0 0.0
      %4433 = vmatprep.subr.mxu0 0.0
      %4434 = vmatpush1.msra.mxu0 0.0
      %4435 = vmatprep.subr.mxu0 0.0
      %4436 = vmatpush1.msra.mxu0 0.0
      %4437 = vmatprep.subr.mxu0 0.0
      %4438 = vmatpush1.msra.mxu0 0.0
      %4439 = vmatprep.subr.mxu0 0.0
      %4440 = vmatpush1.msra.mxu0 0.0
      %4441 = vmatprep.subr.mxu0 0.0
      %4442 = vmatpush1.msra.mxu0 0.0
      %4443 = vmatprep.subr.mxu0 0.0
      %4444 = vmatpush1.msra.mxu0 0.0
      %4445 = vmatprep.subr.mxu0 0.0
      %4446 = vmatpush1.msra.mxu0 0.0
      %4447 = vmatprep.subr.mxu0 0.0
      %4448 = vmatpush1.msra.mxu0 0.0
      %4449 = vmatprep.subr.mxu0 0.0
      %4450 = vmatpush1.msra.mxu0 0.0
      %4451 = vmatprep.subr.mxu0 0.0
      %4452 = vmatpush1.msra.mxu0 0.0
      %4453 = vmatprep.subr.mxu0 0.0
      %4454 = vmatpush1.msra.mxu0 0.0
      %4455 = vmatprep.subr.mxu0 0.0
      %4456 = vmatpush1.msra.mxu0 0.0
      %4457 = vmatprep.subr.mxu0 0.0
      %4458 = vmatpush1.msra.mxu0 0.0
      %4459 = vmatprep.subr.mxu0 0.0
      %4460 = vmatpush1.msra.mxu0 0.0
      %4461 = vmatprep.subr.mxu0 0.0
      %4462 = vmatpush1.msra.mxu0 0.0
      %4463 = vmatprep.subr.mxu0 0.0
      %4464 = vmatpush1.msra.mxu0 0.0
      %4465 = vmatprep.subr.mxu0 0.0
      %4466 = vmatpush1.msra.mxu0 0.0
      %4467 = vmatprep.subr.mxu0 0.0
      %4468 = vmatpush1.msra.mxu0 0.0
      %4469 = vmatprep.mubr.f32.mxu0 0.0
      %4470 = vmatmul.mubr.f32.gmra.mrb[0].mxu0 %v4403
      %v4471 = vpop.f32.mrb[0].mxu0
      %v4472 = vadd.f32 0.0, %v4471
      %v4473 = vpop.f32.mrb[0].mxu0
      %4474 = vdwg.mxu0
      %v4475 = vadd.f32 %v4391, %v4472
      %s4476 = scalar_lea.vmem %s5, 128
      %v4477 = vld [vmem:[%s4476] sm:$0xff]
      %v4478 = vld [vmem:[%s4476 + $0x8] sm:$0xff]
      %v4479 = vld [vmem:[%s4476 + $0x10] sm:$0xff]
      %v4480 = vld [vmem:[%s4476 + $0x18] sm:$0xff]
      %v4481 = vld [vmem:[%s4476 + $0x20] sm:$0xff]
      %v4482 = vld [vmem:[%s4476 + $0x28] sm:$0xff]
      %v4483 = vld [vmem:[%s4476 + $0x30] sm:$0xff]
      %v4484 = vld [vmem:[%s4476 + $0x38] sm:$0xff]
      %v4485 = vld [vmem:[#allocation3 + $0x2] sm:$0x1]
      %v4487 = vsel %vm383, %v4485, 0
      %4489 = vmatprep.subr.mxu0 0.0
      %4490 = vmatpush1.msra.mxu0 %v4477
      %4491 = vmatprep.subr.mxu0 0.0
      %4492 = vmatpush1.msra.mxu0 %v4478
      %4493 = vmatprep.subr.mxu0 0.0
      %4494 = vmatpush1.msra.mxu0 %v4479
      %4495 = vmatprep.subr.mxu0 0.0
      %4496 = vmatpush1.msra.mxu0 %v4480
      %4497 = vmatprep.subr.mxu0 0.0
      %4498 = vmatpush1.msra.mxu0 %v4481
      %4499 = vmatprep.subr.mxu0 0.0
      %4500 = vmatpush1.msra.mxu0 %v4482
      %4501 = vmatprep.subr.mxu0 0.0
      %4502 = vmatpush1.msra.mxu0 %v4483
      %4503 = vmatprep.subr.mxu0 0.0
      %4504 = vmatpush1.msra.mxu0 %v4484
      %4505 = vmatprep.subr.mxu0 0.0
      %4506 = vmatpush1.msra.mxu0 0.0
      %4507 = vmatprep.subr.mxu0 0.0
      %4508 = vmatpush1.msra.mxu0 0.0
      %4509 = vmatprep.subr.mxu0 0.0
      %4510 = vmatpush1.msra.mxu0 0.0
      %4511 = vmatprep.subr.mxu0 0.0
      %4512 = vmatpush1.msra.mxu0 0.0
      %4513 = vmatprep.subr.mxu0 0.0
      %4514 = vmatpush1.msra.mxu0 0.0
      %4515 = vmatprep.subr.mxu0 0.0
      %4516 = vmatpush1.msra.mxu0 0.0
      %4517 = vmatprep.subr.mxu0 0.0
      %4518 = vmatpush1.msra.mxu0 0.0
      %4519 = vmatprep.subr.mxu0 0.0
      %4520 = vmatpush1.msra.mxu0 0.0
      %4521 = vmatprep.subr.mxu0 0.0
      %4522 = vmatpush1.msra.mxu0 0.0
      %4523 = vmatprep.subr.mxu0 0.0
      %4524 = vmatpush1.msra.mxu0 0.0
      %4525 = vmatprep.subr.mxu0 0.0
      %4526 = vmatpush1.msra.mxu0 0.0
      %4527 = vmatprep.subr.mxu0 0.0
      %4528 = vmatpush1.msra.mxu0 0.0
      %4529 = vmatprep.subr.mxu0 0.0
      %4530 = vmatpush1.msra.mxu0 0.0
      %4531 = vmatprep.subr.mxu0 0.0
      %4532 = vmatpush1.msra.mxu0 0.0
      %4533 = vmatprep.subr.mxu0 0.0
      %4534 = vmatpush1.msra.mxu0 0.0
      %4535 = vmatprep.subr.mxu0 0.0
      %4536 = vmatpush1.msra.mxu0 0.0
      %4537 = vmatprep.subr.mxu0 0.0
      %4538 = vmatpush1.msra.mxu0 0.0
      %4539 = vmatprep.subr.mxu0 0.0
      %4540 = vmatpush1.msra.mxu0 0.0
      %4541 = vmatprep.subr.mxu0 0.0
      %4542 = vmatpush1.msra.mxu0 0.0
      %4543 = vmatprep.subr.mxu0 0.0
      %4544 = vmatpush1.msra.mxu0 0.0
      %4545 = vmatprep.subr.mxu0 0.0
      %4546 = vmatpush1.msra.mxu0 0.0
      %4547 = vmatprep.subr.mxu0 0.0
      %4548 = vmatpush1.msra.mxu0 0.0
      %4549 = vmatprep.subr.mxu0 0.0
      %4550 = vmatpush1.msra.mxu0 0.0
      %4551 = vmatprep.subr.mxu0 0.0
      %4552 = vmatpush1.msra.mxu0 0.0
      %4553 = vmatprep.mubr.f32.mxu0 0.0
      %4554 = vmatmul.mubr.f32.gmra.mrb[0].mxu0 %v4487
      %v4555 = vpop.f32.mrb[0].mxu0
      %v4556 = vadd.f32 0.0, %v4555
      %v4557 = vpop.f32.mrb[0].mxu0
      %4558 = vdwg.mxu0
      %v4559 = vadd.f32 %v4475, %v4556
      %v4560 = vmax.f32 %v4559, 0.0
      %v4561 = vld [vmem:[%s7] sm:$0xff]
      %v4562 = vld [vmem:[%s7 + $0x8] sm:$0xff]
      %v4563 = vld [vmem:[%s7 + $0x10] sm:$0xff]
      %v4564 = vld [vmem:[%s7 + $0x18] sm:$0xff]
      %v4565 = vld [vmem:[%s8] sm:$0x1]
      %vm4566 = vcmask 261120
      %v4568 = vsel %vm4566, %v4560, 0
      %4570 = vmatprep.subr.mxu0 0.0
      %4571 = vmatpush1.msra.mxu0 %v4561
      %4572 = vmatprep.subr.mxu0 0.0
      %4573 = vmatpush1.msra.mxu0 %v4562
      %4574 = vmatprep.subr.mxu0 0.0
      %4575 = vmatpush1.msra.mxu0 %v4563
      %4576 = vmatprep.subr.mxu0 0.0
      %4577 = vmatpush1.msra.mxu0 %v4564
      %4578 = vmatprep.subr.mxu0 0.0
      %4579 = vmatpush1.msra.mxu0 0.0
      %4580 = vmatprep.subr.mxu0 0.0
      %4581 = vmatpush1.msra.mxu0 0.0
      %4582 = vmatprep.subr.mxu0 0.0
      %4583 = vmatpush1.msra.mxu0 0.0
      %4584 = vmatprep.subr.mxu0 0.0
      %4585 = vmatpush1.msra.mxu0 0.0
      %4586 = vmatprep.subr.mxu0 0.0
      %4587 = vmatpush1.msra.mxu0 0.0
      %4588 = vmatprep.subr.mxu0 0.0
      %4589 = vmatpush1.msra.mxu0 0.0
      %4590 = vmatprep.subr.mxu0 0.0
      %4591 = vmatpush1.msra.mxu0 0.0
      %4592 = vmatprep.subr.mxu0 0.0
      %4593 = vmatpush1.msra.mxu0 0.0
      %4594 = vmatprep.subr.mxu0 0.0
      %4595 = vmatpush1.msra.mxu0 0.0
      %4596 = vmatprep.subr.mxu0 0.0
      %4597 = vmatpush1.msra.mxu0 0.0
      %4598 = vmatprep.subr.mxu0 0.0
      %4599 = vmatpush1.msra.mxu0 0.0
      %4600 = vmatprep.subr.mxu0 0.0
      %4601 = vmatpush1.msra.mxu0 0.0
      %4602 = vmatprep.subr.mxu0 0.0
      %4603 = vmatpush1.msra.mxu0 0.0
      %4604 = vmatprep.subr.mxu0 0.0
      %4605 = vmatpush1.msra.mxu0 0.0
      %4606 = vmatprep.subr.mxu0 0.0
      %4607 = vmatpush1.msra.mxu0 0.0
      %4608 = vmatprep.subr.mxu0 0.0
      %4609 = vmatpush1.msra.mxu0 0.0
      %4610 = vmatprep.subr.mxu0 0.0
      %4611 = vmatpush1.msra.mxu0 0.0
      %4612 = vmatprep.subr.mxu0 0.0
      %4613 = vmatpush1.msra.mxu0 0.0
      %4614 = vmatprep.subr.mxu0 0.0
      %4615 = vmatpush1.msra.mxu0 0.0
      %4616 = vmatprep.subr.mxu0 0.0
      %4617 = vmatpush1.msra.mxu0 0.0
      %4618 = vmatprep.subr.mxu0 0.0
      %4619 = vmatpush1.msra.mxu0 0.0
      %4620 = vmatprep.subr.mxu0 0.0
      %4621 = vmatpush1.msra.mxu0 0.0
      %4622 = vmatprep.subr.mxu0 0.0
      %4623 = vmatpush1.msra.mxu0 0.0
      %4624 = vmatprep.subr.mxu0 0.0
      %4625 = vmatpush1.msra.mxu0 0.0
      %4626 = vmatprep.subr.mxu0 0.0
      %4627 = vmatpush1.msra.mxu0 0.0
      %4628 = vmatprep.subr.mxu0 0.0
      %4629 = vmatpush1.msra.mxu0 0.0
      %4630 = vmatprep.subr.mxu0 0.0
      %4631 = vmatpush1.msra.mxu0 0.0
      %4632 = vmatprep.subr.mxu0 0.0
      %4633 = vmatpush1.msra.mxu0 0.0
      %4634 = vmatprep.mubr.f32.mxu0 0.0
      %4635 = vmatmul.mubr.f32.gmra.mrb[0].mxu0 %v4568
      %v4636 = vpop.f32.mrb[0].mxu0
      %v4637 = vadd.f32 %v4565, %v4636
      %v4638 = vpop.f32.mrb[0].mxu0
      %4639 = vdwg.mxu0
      %v4640 = vmax.f32 %v4637, 0.0
      %v4641 = vld [vmem:[%s9] sm:$0xff]
      %v4642 = vld [vmem:[%s9 + $0x8] sm:$0xff]
      %v4643 = vld [vmem:[%s9 + $0x10] sm:$0xff]
      %v4644 = vld [vmem:[%s9 + $0x18] sm:$0xff]
      %v4645 = vld [vmem:[%s9 + $0x20] sm:$0xff]
      %v4646 = vld [vmem:[%s9 + $0x28] sm:$0xff]
      %v4647 = vld [vmem:[%s9 + $0x30] sm:$0xff]
      %v4648 = vld [vmem:[%s9 + $0x38] sm:$0xff]
      %v4649 = vld [vmem:[%s10] sm:$0x1]
      %v4651 = vsel %vm383, %v4640, 0
      %4653 = vmatprep.subr.mxu0 0.0
      %4654 = vmatpush1.msra.mxu0 %v4641
      %4655 = vmatprep.subr.mxu0 0.0
      %4656 = vmatpush1.msra.mxu0 %v4642
      %4657 = vmatprep.subr.mxu0 0.0
      %4658 = vmatpush1.msra.mxu0 %v4643
      %4659 = vmatprep.subr.mxu0 0.0
      %4660 = vmatpush1.msra.mxu0 %v4644
      %4661 = vmatprep.subr.mxu0 0.0
      %4662 = vmatpush1.msra.mxu0 %v4645
      %4663 = vmatprep.subr.mxu0 0.0
      %4664 = vmatpush1.msra.mxu0 %v4646
      %4665 = vmatprep.subr.mxu0 0.0
      %4666 = vmatpush1.msra.mxu0 %v4647
      %4667 = vmatprep.subr.mxu0 0.0
      %4668 = vmatpush1.msra.mxu0 %v4648
      %4669 = vmatprep.subr.mxu0 0.0
      %4670 = vmatpush1.msra.mxu0 0.0
      %4671 = vmatprep.subr.mxu0 0.0
      %4672 = vmatpush1.msra.mxu0 0.0
      %4673 = vmatprep.subr.mxu0 0.0
      %4674 = vmatpush1.msra.mxu0 0.0
      %4675 = vmatprep.subr.mxu0 0.0
      %4676 = vmatpush1.msra.mxu0 0.0
      %4677 = vmatprep.subr.mxu0 0.0
      %4678 = vmatpush1.msra.mxu0 0.0
      %4679 = vmatprep.subr.mxu0 0.0
      %4680 = vmatpush1.msra.mxu0 0.0
      %4681 = vmatprep.subr.mxu0 0.0
      %4682 = vmatpush1.msra.mxu0 0.0
      %4683 = vmatprep.subr.mxu0 0.0
      %4684 = vmatpush1.msra.mxu0 0.0
      %4685 = vmatprep.subr.mxu0 0.0
      %4686 = vmatpush1.msra.mxu0 0.0
      %4687 = vmatprep.subr.mxu0 0.0
      %4688 = vmatpush1.msra.mxu0 0.0
      %4689 = vmatprep.subr.mxu0 0.0
      %4690 = vmatpush1.msra.mxu0 0.0
      %4691 = vmatprep.subr.mxu0 0.0
      %4692 = vmatpush1.msra.mxu0 0.0
      %4693 = vmatprep.subr.mxu0 0.0
      %4694 = vmatpush1.msra.mxu0 0.0
      %4695 = vmatprep.subr.mxu0 0.0
      %4696 = vmatpush1.msra.mxu0 0.0
      %4697 = vmatprep.subr.mxu0 0.0
      %4698 = vmatpush1.msra.mxu0 0.0
      %4699 = vmatprep.subr.mxu0 0.0
      %4700 = vmatpush1.msra.mxu0 0.0
      %4701 = vmatprep.subr.mxu0 0.0
      %4702 = vmatpush1.msra.mxu0 0.0
      %4703 = vmatprep.subr.mxu0 0.0
      %4704 = vmatpush1.msra.mxu0 0.0
      %4705 = vmatprep.subr.mxu0 0.0
      %4706 = vmatpush1.msra.mxu0 0.0
      %4707 = vmatprep.subr.mxu0 0.0
      %4708 = vmatpush1.msra.mxu0 0.0
      %4709 = vmatprep.subr.mxu0 0.0
      %4710 = vmatpush1.msra.mxu0 0.0
      %4711 = vmatprep.subr.mxu0 0.0
      %4712 = vmatpush1.msra.mxu0 0.0
      %4713 = vmatprep.subr.mxu0 0.0
      %4714 = vmatpush1.msra.mxu0 0.0
      %4715 = vmatprep.subr.mxu0 0.0
      %4716 = vmatpush1.msra.mxu0 0.0
      %4717 = vmatprep.mubr.f32.mxu0 0.0
      %4718 = vmatmul.mubr.f32.gmra.mrb[0].mxu0 %v4651
      %v4719 = vpop.f32.mrb[0].mxu0
      %v4720 = vadd.f32 %v4649, %v4719
      %v4721 = vpop.f32.mrb[0].mxu0
      %4722 = vdwg.mxu0
      %4723 = vst [vmem:[%s382] sm:$0x1] %v4720
      %p4724 = scmp.lt.s32.totalorder %s22, 1
      %s4725 = scalar_select %p4724, %s22, 1
      %s4726 = scalar_lea.vmem %s11, %s4725
      // Predicated region
      $region65: #{forward.1} parent=63 // pred_check
        %p4727 = pneg %p276
      $region66: #{forward.1} parent=63 // pred_check_branch
        %4729 = sbr.rel (%p4727) target = $region68
      $region67: #{forward.1} parent=63 // pred_region
        _
      $region68: #{forward.1} parent=63 // pred_fallthru
        _
    $region64: #{forward.1} parent=5 // pred_fallthru
      _
    %p4730 = scmp.le.s32.totalorder 2, %s17
    // Predicated region
    $region69: #{forward.1} parent=5 // pred_check
      %p4731 = pneg %p4730
    $region70: #{forward.1} parent=5 // pred_check_branch
      %4733 = sbr.rel (%p4731) target = $region72
    $region71: #{forward.1} parent=5 // pred_region
      %s4734 = ssub.s32 %s17, 2
      // Predicated region
      $region73: #{forward.1} parent=71 // pred_check
        %p4735 = pneg %p282
      $region74: #{forward.1} parent=71 // pred_check_branch
        %4737 = sbr.rel (%p4735) target = $region76
      $region75: #{forward.1} parent=71 // pred_region
        %p4738 = scmp.lt.s32.totalorder %s23, 1
        %s4739 = scalar_select %p4738, %s23, 1
        %s4740 = scalar_lea.vmem %s11, %s4739
      $region76: #{forward.1} parent=71 // pred_fallthru
        _
    $region72: #{forward.1} parent=5 // pred_fallthru
      _
  $region6: #{forward.1} parent=0 // loop_footer
    %s21 = sadd.s32 1, %s17
  $region7: #{forward.1} parent=0 // loop_footer_branch
    %16 = sbr.rel target = $region3
  $region8: #{forward.1} parent=0 // loop_exit
    _

</llo_original>
